<compile_context>
chip_gen: v5e
topology: v5e:2x2
jax: 0.10.0
libtpu: 0.0.40
codegen_flags: <defaults>
</compile_context>

<pallas_src>
import functools

import numpy as np
import jax
import jax.numpy as jnp
from jax.experimental import pallas as pl
from jax.experimental.pallas import tpu as pltpu

LANE = 128
SUBLANE = 8


def _round_up(x, m):
    return (x + m - 1) // m * m


def _fused_decoder_block_kernel(x_ref, skip_ref, w1_ref, w2_ref, sb_ref,
                                o_ref, p1_ref, p2_ref):
    """One batch element per grid step (all shapes static).

    x_ref   : (1, Hx, W, Cx)   low-H input, already nearest-duplicated along W
    skip_ref: (1, H,  W, Cs)   skip connection (NHWC, native channels)
    w1_ref  : (3, K1p, Kp)     conv1 weights, kx-major, rows = (ky, ci), 0-padded
    w2_ref  : (3, 3*Kp, Kp)    conv2 weights, kx-major, rows = (ky, cj)
    sb_ref  : (4, Kp)          folded BN rows: [scale1, bias1, scale2, bias2]
    o_ref   : (1, H*W, Kp)     lane-dense output (padded channels)
    p1_ref  : (H+2, Wp, Cin1)  VMEM scratch: zero-haloed conv1 input (concat)
    p2_ref  : (H+2, Wp, Kp)    VMEM scratch: zero-haloed conv2 input (conv1 act)
    """
    _, Hx, W, Cx = x_ref.shape
    H = 2 * Hx
    Cs = skip_ref.shape[-1]
    Kp = p2_ref.shape[-1]
    cdt = w1_ref.dtype                      # matmul operand dtype (f32 / bf16)
    sdt = p1_ref.dtype                      # scratch dtype (== cdt)

    # ---- zero only the halo ring (O(perimeter), not O(area)) --------------
    # Invariant: the interior real channels are fully rewritten every step and
    # padded-K contraction columns are explicit zero values built below, so
    # only the spatial halo ring must be zero in the scratch.
    def zero_halo(ref):
        _, WP, C = ref.shape
        zrow = jnp.zeros((WP, C), ref.dtype)
        zcol = jnp.zeros((H, 1, C), ref.dtype)
        ref[0] = zrow
        ref[H + 1] = zrow
        ref[1:H + 1, 0:1, :] = zcol
        ref[1:H + 1, W + 1:W + 2, :] = zcol     # cols >= W+2 are never read

    zero_halo(p1_ref)
    zero_halo(p2_ref)

    # ---- conv1 input: fused nearest-2x row duplication + channel concat ----
    xr = x_ref[0]                                               # (Hx, W, Cx)
    x_up = jnp.broadcast_to(xr[:, None], (Hx, 2, W, Cx)).reshape(H, W, Cx)
    p1_ref[1:H + 1, 1:W + 1, 0:Cx] = x_up.astype(sdt)
    p1_ref[1:H + 1, 1:W + 1, Cx:Cx + Cs] = skip_ref[0].astype(sdt)

    def conv3x3(src_ref, w_ref):
        # 3x3 conv as 3 MXU matmuls (one per kx); the 3 ky taps are stacked
        # along the contraction dim (K = 3*C, explicit-zero padded to
        # w_ref.shape[1]); accumulation stays in f32 values (no per-tap VMEM
        # accumulator round trip).
        C = src_ref.shape[-1]
        kdim = w_ref.shape[1]
        acc = None
        for kx in range(3):
            col = src_ref[:, kx:kx + W, :]                   # (H+2, W, C)
            taps = [col[ky:ky + H] for ky in range(3)]       # 3 x (H, W, C)
            if kdim > 3 * C:
                taps.append(jnp.zeros((H, W, kdim - 3 * C), col.dtype))
            slab = jnp.concatenate(taps, axis=-1).reshape(H * W, kdim)
            part = jnp.dot(slab.astype(cdt), w_ref[kx],
                           preferred_element_type=jnp.float32)
            acc = part if acc is None else acc + part
        return acc                                           # (H*W, Kp) f32

    # ---- conv1 -> folded BN -> ReLU (activation stays in VMEM) ----
    y1 = conv3x3(p1_ref, w1_ref)
    y1 = jnp.maximum(y1 * sb_ref[0:1, :] + sb_ref[1:2, :], 0.0)
    # padded output lanes are exactly 0 (zero weight columns + zero scale/bias)
    p2_ref[1:H + 1, 1:W + 1, :] = y1.reshape(H, W, Kp).astype(sdt)

    # ---- conv2 -> folded BN -> ReLU ----
    y2 = conv3x3(p2_ref, w2_ref)
    y2 = jnp.maximum(y2 * sb_ref[2:3, :] + sb_ref[3:4, :], 0.0)

    # lane-dense, unmasked store of the padded-channel slab
    o_ref[0] = y2.astype(o_ref.dtype)


def fold_bn(gamma, beta, running_mean, running_var, eps=1e-5):
    scale = gamma / jnp.sqrt(running_var + eps)
    bias = beta - running_mean * scale
    return scale, bias


def decoder_block_forward(x_nchw, skip_nchw, params,
                          compute_dtype=jnp.float32, out_dtype=None):
    """Forward pass matching DecoderBlock.forward (NCHW in / NCHW out).

    compute_dtype: dtype of the MXU matmul operands, the VMEM scratches and the
      streamed input blocks (use jnp.bfloat16 on v6e/v7x for full MXU rate);
      accumulation and the BN+ReLU epilogues always stay float32.
    out_dtype: dtype of the kernel output / returned array (default: x dtype).
    """
    N, Cx, Hx, Wx = x_nchw.shape
    H, W = 2 * Hx, 2 * Wx
    if out_dtype is None:
        out_dtype = x_nchw.dtype
    sdt = compute_dtype

    # Thin XLA glue: NCHW->NHWC plus only the W-duplication of the nearest-2x
    # upsample (the H-duplication is fused into the kernel, halving x DMA).
    # TODO(synk): fuse the W-duplication too (strided / roll-based VMEM stores).
    x = jnp.transpose(x_nchw, (0, 2, 3, 1)).astype(sdt)
    x_w = jnp.repeat(x, 2, axis=2)                           # (N, Hx, W, Cx)

    if skip_nchw is not None:
        skip = jnp.transpose(skip_nchw, (0, 2, 3, 1)).astype(sdt)
    else:
        # dummy skip; its weight rows are zero below, so it is a no-op
        skip = jnp.zeros((N, H, W, 8), sdt)
    Cs = skip.shape[-1]
    Cin1 = Cx + Cs

    w1, w2 = params["w1"], params["w2"]                      # HWIO
    Cin_w1, Cout = w1.shape[2], w1.shape[3]
    Kp = _round_up(Cout, LANE)                               # lane-dense N
    K1p = _round_up(3 * Cin1, LANE)                          # conv1 K (tap-stacked)
    Wp = _round_up(W + 2, SUBLANE)                           # padded scratch width

    # conv1 weights -> (kx, ky*Cin1 + ci, co), rows zero-padded to K1p
    w1e = jnp.zeros((3, 3, Cin1, Cout), jnp.float32)
    w1e = w1e.at[:, :, :Cin_w1, :].set(w1.astype(jnp.float32))
    w1t = jnp.transpose(w1e, (1, 0, 2, 3)).reshape(3, 3 * Cin1, Cout)
    w1p = jnp.zeros((3, K1p, Kp), compute_dtype)
    w1p = w1p.at[:, :3 * Cin1, :Cout].set(w1t.astype(compute_dtype))

    # conv2 weights -> (kx, ky*Kp + cj, co); rows for padded cj stay zero
    w2t = jnp.transpose(w2, (1, 0, 2, 3))                    # (kx, ky, ci, co)
    w2p = jnp.zeros((3, 3, Kp, Kp), compute_dtype)
    w2p = w2p.at[:, :, :Cout, :Cout].set(w2t.astype(compute_dtype))
    w2p = w2p.reshape(3, 3 * Kp, Kp)

    # folded BN scale/bias, zero-padded so padded output lanes stay exactly 0
    sb = jnp.zeros((4, Kp), jnp.float32)
    sb = sb.at[0, :Cout].set(params["scale1"].astype(jnp.float32))
    sb = sb.at[1, :Cout].set(params["bias1"].astype(jnp.float32))
    sb = sb.at[2, :Cout].set(params["scale2"].astype(jnp.float32))
    sb = sb.at[3, :Cout].set(params["bias2"].astype(jnp.float32))

    # explicit VMEM budget: scratch + double-buffered blocks + weights + temps
    ib = np.dtype(sdt).itemsize
    ob = np.dtype(out_dtype).itemsize
    vmem_est = ((H + 2) * Wp * (Cin1 + Kp) * ib              # p1 + p2 scratch
                + 2 * (Hx * W * Cx + H * W * Cs) * ib        # input blocks x2
                + 2 * H * W * Kp * ob                        # output block x2
                + 2 * (3 * K1p * Kp + 9 * Kp * Kp + 4 * Kp) * ib
                + 2 * H * W * (3 * Kp + Kp) * 4)             # slab/acc temps
    vmem_limit = int(min(max(2 * vmem_est, 32 << 20), 64 << 20))

    # TODO(synk): for production-scale H/W on v7x (64 MiB VMEM), add a second
    # "parallel" grid axis over output-row tiles (manual 2-row-halo DMA) so the
    # scratch is O(row_tile) instead of O(image), and single-buffer the
    # grid-invariant w1p/w2p/sb operands (pipeline_mode=pl.Buffered(1)).
    out3 = pl.pallas_call(
        _fused_decoder_block_kernel,
        out_shape=jax.ShapeDtypeStruct((N, H * W, Kp), out_dtype),
        grid=(N,),
        in_specs=[
            pl.BlockSpec((1, Hx, W, Cx), lambda n: (n, 0, 0, 0)),
            pl.BlockSpec((1, H, W, Cs), lambda n: (n, 0, 0, 0)),
            pl.BlockSpec((3, K1p, Kp), lambda n: (0, 0, 0)),
            pl.BlockSpec((3, 3 * Kp, Kp), lambda n: (0, 0, 0)),
            pl.BlockSpec((4, Kp), lambda n: (0, 0)),
        ],
        out_specs=pl.BlockSpec((1, H * W, Kp), lambda n: (n, 0, 0)),
        scratch_shapes=[
            pltpu.VMEM((H + 2, Wp, Cin1), sdt),
            pltpu.VMEM((H + 2, Wp, Kp), sdt),
        ],
        compiler_params=pltpu.CompilerParams(
            dimension_semantics=("parallel",),
            vmem_limit_bytes=vmem_limit,
        ),
    )(x_w, skip, w1p, w2p, sb)

    # lane-dense kernel store; channel slice + NHWC->NCHW transpose fuse here
    out = out3.reshape(N, H, W, Kp)[..., :Cout]
    return jnp.transpose(out, (0, 3, 1, 2)).astype(out_dtype)


def _reference_forward(x_nchw, skip_nchw, params):
    """Pure-JAX reference (lax conv) for correctness validation."""
    x = jnp.transpose(x_nchw, (0, 2, 3, 1))
    x = jnp.repeat(jnp.repeat(x, 2, axis=1), 2, axis=2)
    if skip_nchw is not None:
        x = jnp.concatenate([x, jnp.transpose(skip_nchw, (0, 2, 3, 1))], axis=-1)

    def block(x, w, scale, bias):
        y = jax.lax.conv_general_dilated(
            x, w, window_strides=(1, 1), padding="SAME",
            dimension_numbers=("NHWC", "HWIO", "NHWC"))
        return jnp.maximum(y * scale + bias, 0.0)

    y = block(x, params["w1"], params["scale1"], params["bias1"])
    y = block(y, params["w2"], params["scale2"], params["bias2"])
    return jnp.transpose(y, (0, 3, 1, 2))


if __name__ == "__main__":
    # Module config (small, deterministic)
    N = 2
    in_channels, skip_channels, out_channels = 8, 4, 8
    Hx = Wx = 8                     # x spatial; skip is at 2x resolution
    cat_channels = in_channels + skip_channels

    key = jax.random.PRNGKey(0)
    keys = jax.random.split(key, 12)

    # inputs
    x = jax.random.normal(keys[0], (N, in_channels, Hx, Wx), dtype=jnp.float32)
    skip = jax.random.normal(keys[1], (N, skip_channels, 2 * Hx, 2 * Wx),
                             dtype=jnp.float32)

    # conv1 / conv2 weights (HWIO); conv bias is False because use_batchnorm=True
    w1 = jax.random.normal(keys[2], (3, 3, cat_channels, out_channels),
                           dtype=jnp.float32) * 0.1
    w2 = jax.random.normal(keys[3], (3, 3, out_channels, out_channels),
                           dtype=jnp.float32) * 0.1

    # BatchNorm parameters (deterministic), folded for inference
    g1 = 1.0 + 0.1 * jax.random.normal(keys[4], (out_channels,), jnp.float32)
    b1 = 0.1 * jax.random.normal(keys[5], (out_channels,), jnp.float32)
    m1 = 0.1 * jax.random.normal(keys[6], (out_channels,), jnp.float32)
    v1 = jnp.abs(1.0 + 0.1 * jax.random.normal(keys[7], (out_channels,), jnp.float32))
    g2 = 1.0 + 0.1 * jax.random.normal(keys[8], (out_channels,), jnp.float32)
    b2 = 0.1 * jax.random.normal(keys[9], (out_channels,), jnp.float32)
    m2 = 0.1 * jax.random.normal(keys[10], (out_channels,), jnp.float32)
    v2 = jnp.abs(1.0 + 0.1 * jax.random.normal(keys[11], (out_channels,), jnp.float32))

    scale1, bias1 = fold_bn(g1, b1, m1, v1)
    scale2, bias2 = fold_bn(g2, b2, m2, v2)

    params = dict(w1=w1, scale1=scale1, bias1=bias1,
                  w2=w2, scale2=scale2, bias2=bias2)

    ref = jax.block_until_ready(_reference_forward(x, skip, params))

    # --- f32 fused kernel (exactness check) ---
    fwd_f32 = jax.jit(decoder_block_forward)
    out = jax.block_until_ready(fwd_f32(x, skip, params))
    assert out.shape == (N, out_channels, 2 * Hx, 2 * Wx), out.shape
    assert jnp.allclose(out, ref, atol=5e-4, rtol=5e-4), \
        float(jnp.max(jnp.abs(out - ref)))

    # --- bf16 operands / scratch / output (v6e/v7x fast path), f32 accumulate ---
    fwd_bf16 = jax.jit(functools.partial(decoder_block_forward,
                                         compute_dtype=jnp.bfloat16,
                                         out_dtype=jnp.bfloat16))
    out_b = jax.block_until_ready(fwd_bf16(x, skip, params))
    assert out_b.shape == ref.shape
    assert bool(jnp.all(jnp.isfinite(out_b.astype(jnp.float32))))
    assert float(jnp.max(jnp.abs(out_b.astype(jnp.float32) - ref))) < 1e-1

    print("KERNEL_OK")
</pallas_src>

<mosaic_0001>
module attributes {stable_mosaic.version = 11 : i64} {
  func.func @_fused_decoder_block_kernel(%arg0: i32, %arg1: memref<1x8x16x8xf32, #tpu.memory_space<vmem>>, %arg2: memref<1x16x16x4xf32, #tpu.memory_space<vmem>>, %arg3: memref<3x128x128xf32, #tpu.memory_space<vmem>>, %arg4: memref<3x384x128xf32, #tpu.memory_space<vmem>>, %arg5: memref<4x128xf32, #tpu.memory_space<vmem>>, %arg6: memref<1x256x128xf32, #tpu.memory_space<vmem>>, %arg7: memref<18x24x12xf32, #tpu.memory_space<vmem>>, %arg8: memref<18x24x128xf32, #tpu.memory_space<vmem>>) attributes {dimension_semantics = [#tpu.dimension_semantics<parallel>], iteration_bounds = array<i64: 2>, scalar_prefetch = 0 : i64, scratch_operands = 2 : i64, tpu.core_type = #tpu.core_type<tc>, window_params = [{transform_indices = @transform_0, window_bounds = array<i64: 1, 8, 16, 8>}, {transform_indices = @transform_1, window_bounds = array<i64: 1, 16, 16, 4>}, {pipeline_mode = #tpu.pipeline_mode<synchronous>, transform_indices = @transform_2, window_bounds = array<i64: 3, 128, 128>}, {pipeline_mode = #tpu.pipeline_mode<synchronous>, transform_indices = @transform_3, window_bounds = array<i64: 3, 384, 128>}, {pipeline_mode = #tpu.pipeline_mode<synchronous>, transform_indices = @transform_4, window_bounds = array<i64: 4, 128>}, {transform_indices = @transform_5, window_bounds = array<i64: 1, 256, 128>}]} {
    %cst = arith.constant 0.000000e+00 : f32
    %0 = vector.broadcast %cst : f32 to vector<24x12xf32>
    %cst_0 = arith.constant 0.000000e+00 : f32
    %1 = vector.broadcast %cst_0 : f32 to vector<16x1x12xf32>
    %c0 = arith.constant 0 : index
    %c0_1 = arith.constant 0 : index
    %c0_2 = arith.constant 0 : index
    %2 = vector.load %arg7[%c0, %c0_1, %c0_2] : memref<18x24x12xf32, #tpu.memory_space<vmem>>, vector<1x24x12xf32>
    %3 = vector.shape_cast %2 : vector<1x24x12xf32> to vector<24x12xf32>
    %4 = vector.shape_cast %0 : vector<24x12xf32> to vector<1x24x12xf32>
    tpu.vector_store %arg7[%c0, %c0_1, %c0_2], %4 {strides = array<i32>} : memref<18x24x12xf32, #tpu.memory_space<vmem>>, vector<1x24x12xf32>,
    %c17 = arith.constant 17 : index
    %c0_3 = arith.constant 0 : index
    %c0_4 = arith.constant 0 : index
    %5 = vector.load %arg7[%c17, %c0_3, %c0_4] : memref<18x24x12xf32, #tpu.memory_space<vmem>>, vector<1x24x12xf32>
    %6 = vector.shape_cast %5 : vector<1x24x12xf32> to vector<24x12xf32>
    %7 = vector.shape_cast %0 : vector<24x12xf32> to vector<1x24x12xf32>
    tpu.vector_store %arg7[%c17, %c0_3, %c0_4], %7 {strides = array<i32>} : memref<18x24x12xf32, #tpu.memory_space<vmem>>, vector<1x24x12xf32>,
    %c1 = arith.constant 1 : index
    %c0_5 = arith.constant 0 : index
    %c0_6 = arith.constant 0 : index
    %8 = vector.load %arg7[%c1, %c0_5, %c0_6] : memref<18x24x12xf32, #tpu.memory_space<vmem>>, vector<16x1x12xf32>
    tpu.vector_store %arg7[%c1, %c0_5, %c0_6], %1 {strides = array<i32>} : memref<18x24x12xf32, #tpu.memory_space<vmem>>, vector<16x1x12xf32>,
    %c1_7 = arith.constant 1 : index
    %c17_8 = arith.constant 17 : index
    %c0_9 = arith.constant 0 : index
    %9 = vector.load %arg7[%c1_7, %c17_8, %c0_9] : memref<18x24x12xf32, #tpu.memory_space<vmem>>, vector<16x1x12xf32>
    tpu.vector_store %arg7[%c1_7, %c17_8, %c0_9], %1 {strides = array<i32>} : memref<18x24x12xf32, #tpu.memory_space<vmem>>, vector<16x1x12xf32>,
    %cst_10 = arith.constant 0.000000e+00 : f32
    %10 = vector.broadcast %cst_10 : f32 to vector<24x128xf32>
    %cst_11 = arith.constant 0.000000e+00 : f32
    %11 = vector.broadcast %cst_11 : f32 to vector<16x1x128xf32>
    %c0_12 = arith.constant 0 : index
    %c0_13 = arith.constant 0 : index
    %c0_14 = arith.constant 0 : index
    %12 = vector.load %arg8[%c0_12, %c0_13, %c0_14] : memref<18x24x128xf32, #tpu.memory_space<vmem>>, vector<1x24x128xf32>
    %13 = vector.shape_cast %12 : vector<1x24x128xf32> to vector<24x128xf32>
    %14 = vector.shape_cast %10 : vector<24x128xf32> to vector<1x24x128xf32>
    tpu.vector_store %arg8[%c0_12, %c0_13, %c0_14], %14 {strides = array<i32>} : memref<18x24x128xf32, #tpu.memory_space<vmem>>, vector<1x24x128xf32>,
    %c17_15 = arith.constant 17 : index
    %c0_16 = arith.constant 0 : index
    %c0_17 = arith.constant 0 : index
    %15 = vector.load %arg8[%c17_15, %c0_16, %c0_17] : memref<18x24x128xf32, #tpu.memory_space<vmem>>, vector<1x24x128xf32>
    %16 = vector.shape_cast %15 : vector<1x24x128xf32> to vector<24x128xf32>
    %17 = vector.shape_cast %10 : vector<24x128xf32> to vector<1x24x128xf32>
    tpu.vector_store %arg8[%c17_15, %c0_16, %c0_17], %17 {strides = array<i32>} : memref<18x24x128xf32, #tpu.memory_space<vmem>>, vector<1x24x128xf32>,
    %c1_18 = arith.constant 1 : index
    %c0_19 = arith.constant 0 : index
    %c0_20 = arith.constant 0 : index
    %18 = vector.load %arg8[%c1_18, %c0_19, %c0_20] : memref<18x24x128xf32, #tpu.memory_space<vmem>>, vector<16x1x128xf32>
    tpu.vector_store %arg8[%c1_18, %c0_19, %c0_20], %11 {strides = array<i32>} : memref<18x24x128xf32, #tpu.memory_space<vmem>>, vector<16x1x128xf32>,
    %c1_21 = arith.constant 1 : index
    %c17_22 = arith.constant 17 : index
    %c0_23 = arith.constant 0 : index
    %19 = vector.load %arg8[%c1_21, %c17_22, %c0_23] : memref<18x24x128xf32, #tpu.memory_space<vmem>>, vector<16x1x128xf32>
    tpu.vector_store %arg8[%c1_21, %c17_22, %c0_23], %11 {strides = array<i32>} : memref<18x24x128xf32, #tpu.memory_space<vmem>>, vector<16x1x128xf32>,
    %c0_24 = arith.constant 0 : index
    %c0_25 = arith.constant 0 : index
    %c0_26 = arith.constant 0 : index
    %c0_27 = arith.constant 0 : index
    %20 = vector.load %arg1[%c0_24, %c0_25, %c0_26, %c0_27] : memref<1x8x16x8xf32, #tpu.memory_space<vmem>>, vector<1x8x16x8xf32>
    %21 = vector.shape_cast %20 : vector<1x8x16x8xf32> to vector<8x16x8xf32>
    %22 = vector.shape_cast %21 : vector<8x16x8xf32> to vector<8x1x16x8xf32>
    %23 = vector.shape_cast %22 : vector<8x1x16x8xf32> to vector<8x1x16x8xf32>
    %24 = vector.broadcast %23 : vector<8x1x16x8xf32> to vector<8x2x16x8xf32>
    %25 = vector.shape_cast %24 : vector<8x2x16x8xf32> to vector<16x16x8xf32>
    %c1_28 = arith.constant 1 : index
    %c1_29 = arith.constant 1 : index
    %c0_30 = arith.constant 0 : index
    %26 = vector.load %arg7[%c1_28, %c1_29, %c0_30] : memref<18x24x12xf32, #tpu.memory_space<vmem>>, vector<16x16x8xf32>
    tpu.vector_store %arg7[%c1_28, %c1_29, %c0_30], %25 {strides = array<i32>} : memref<18x24x12xf32, #tpu.memory_space<vmem>>, vector<16x16x8xf32>,
    %c0_31 = arith.constant 0 : index
    %c0_32 = arith.constant 0 : index
    %c0_33 = arith.constant 0 : index
    %c0_34 = arith.constant 0 : index
    %27 = vector.load %arg2[%c0_31, %c0_32, %c0_33, %c0_34] : memref<1x16x16x4xf32, #tpu.memory_space<vmem>>, vector<1x16x16x4xf32>
    %28 = vector.shape_cast %27 : vector<1x16x16x4xf32> to vector<16x16x4xf32>
    %c1_35 = arith.constant 1 : index
    %c1_36 = arith.constant 1 : index
    %c8 = arith.constant 8 : index
    %29 = vector.load %arg7[%c1_35, %c1_36, %c8] : memref<18x24x12xf32, #tpu.memory_space<vmem>>, vector<16x16x4xf32>
    tpu.vector_store %arg7[%c1_35, %c1_36, %c8], %28 {strides = array<i32>} : memref<18x24x12xf32, #tpu.memory_space<vmem>>, vector<16x16x4xf32>,
    %c0_37 = arith.constant 0 : index
    %c0_38 = arith.constant 0 : index
    %c0_39 = arith.constant 0 : index
    %30 = vector.load %arg7[%c0_37, %c0_38, %c0_39] : memref<18x24x12xf32, #tpu.memory_space<vmem>>, vector<18x16x12xf32>
    %31 = vector.extract_strided_slice %30 {offsets = [0, 0, 0], sizes = [16, 16, 12], strides = [1, 1, 1]} : vector<18x16x12xf32> to vector<16x16x12xf32>
    %32 = vector.extract_strided_slice %30 {offsets = [1, 0, 0], sizes = [16, 16, 12], strides = [1, 1, 1]} : vector<18x16x12xf32> to vector<16x16x12xf32>
    %33 = vector.extract_strided_slice %30 {offsets = [2, 0, 0], sizes = [16, 16, 12], strides = [1, 1, 1]} : vector<18x16x12xf32> to vector<16x16x12xf32>
    %cst_40 = arith.constant 0.000000e+00 : f32
    %34 = vector.broadcast %cst_40 : f32 to vector<16x16x92xf32>
    %35 = tpu.concatenate %31, %32, %33, %34 in 2 : vector<16x16x12xf32>, vector<16x16x12xf32>, vector<16x16x12xf32>, vector<16x16x92xf32> -> vector<16x16x128xf32>
    %36 = vector.shape_cast %35 : vector<16x16x128xf32> to vector<256x128xf32>
    %c0_41 = arith.constant 0 : index
    %c0_42 = arith.constant 0 : index
    %c0_43 = arith.constant 0 : index
    %37 = vector.load %arg3[%c0_41, %c0_42, %c0_43] : memref<3x128x128xf32, #tpu.memory_space<vmem>>, vector<1x128x128xf32>
    %38 = vector.shape_cast %37 : vector<1x128x128xf32> to vector<128x128xf32>
    %cst_44 = arith.constant dense<0.000000e+00> : vector<256x128xf32>
    %39 = tpu.matmul %36, %38, %cst_44 {dimension_numbers = #tpu.dot_dimension_numbers<[1], [0], [0], [1], [0, 0, 1, 1], [], []>} : vector<256x128xf32>, vector<128x128xf32>, vector<256x128xf32> -> vector<256x128xf32>
    %c0_45 = arith.constant 0 : index
    %c1_46 = arith.constant 1 : index
    %c0_47 = arith.constant 0 : index
    %40 = vector.load %arg7[%c0_45, %c1_46, %c0_47] : memref<18x24x12xf32, #tpu.memory_space<vmem>>, vector<18x16x12xf32>
    %41 = vector.extract_strided_slice %40 {offsets = [0, 0, 0], sizes = [16, 16, 12], strides = [1, 1, 1]} : vector<18x16x12xf32> to vector<16x16x12xf32>
    %42 = vector.extract_strided_slice %40 {offsets = [1, 0, 0], sizes = [16, 16, 12], strides = [1, 1, 1]} : vector<18x16x12xf32> to vector<16x16x12xf32>
    %43 = vector.extract_strided_slice %40 {offsets = [2, 0, 0], sizes = [16, 16, 12], strides = [1, 1, 1]} : vector<18x16x12xf32> to vector<16x16x12xf32>
    %cst_48 = arith.constant 0.000000e+00 : f32
    %44 = vector.broadcast %cst_48 : f32 to vector<16x16x92xf32>
    %45 = tpu.concatenate %41, %42, %43, %44 in 2 : vector<16x16x12xf32>, vector<16x16x12xf32>, vector<16x16x12xf32>, vector<16x16x92xf32> -> vector<16x16x128xf32>
    %46 = vector.shape_cast %45 : vector<16x16x128xf32> to vector<256x128xf32>
    %c1_49 = arith.constant 1 : index
    %c0_50 = arith.constant 0 : index
    %c0_51 = arith.constant 0 : index
    %47 = vector.load %arg3[%c1_49, %c0_50, %c0_51] : memref<3x128x128xf32, #tpu.memory_space<vmem>>, vector<1x128x128xf32>
    %48 = vector.shape_cast %47 : vector<1x128x128xf32> to vector<128x128xf32>
    %cst_52 = arith.constant dense<0.000000e+00> : vector<256x128xf32>
    %49 = tpu.matmul %46, %48, %cst_52 {dimension_numbers = #tpu.dot_dimension_numbers<[1], [0], [0], [1], [0, 0, 1, 1], [], []>} : vector<256x128xf32>, vector<128x128xf32>, vector<256x128xf32> -> vector<256x128xf32>
    %50 = arith.addf %39, %49 : vector<256x128xf32>
    %c0_53 = arith.constant 0 : index
    %c2 = arith.constant 2 : index
    %c0_54 = arith.constant 0 : index
    %51 = vector.load %arg7[%c0_53, %c2, %c0_54] : memref<18x24x12xf32, #tpu.memory_space<vmem>>, vector<18x16x12xf32>
    %52 = vector.extract_strided_slice %51 {offsets = [0, 0, 0], sizes = [16, 16, 12], strides = [1, 1, 1]} : vector<18x16x12xf32> to vector<16x16x12xf32>
    %53 = vector.extract_strided_slice %51 {offsets = [1, 0, 0], sizes = [16, 16, 12], strides = [1, 1, 1]} : vector<18x16x12xf32> to vector<16x16x12xf32>
    %54 = vector.extract_strided_slice %51 {offsets = [2, 0, 0], sizes = [16, 16, 12], strides = [1, 1, 1]} : vector<18x16x12xf32> to vector<16x16x12xf32>
    %cst_55 = arith.constant 0.000000e+00 : f32
    %55 = vector.broadcast %cst_55 : f32 to vector<16x16x92xf32>
    %56 = tpu.concatenate %52, %53, %54, %55 in 2 : vector<16x16x12xf32>, vector<16x16x12xf32>, vector<16x16x12xf32>, vector<16x16x92xf32> -> vector<16x16x128xf32>
    %57 = vector.shape_cast %56 : vector<16x16x128xf32> to vector<256x128xf32>
    %c2_56 = arith.constant 2 : index
    %c0_57 = arith.constant 0 : index
    %c0_58 = arith.constant 0 : index
    %58 = vector.load %arg3[%c2_56, %c0_57, %c0_58] : memref<3x128x128xf32, #tpu.memory_space<vmem>>, vector<1x128x128xf32>
    %59 = vector.shape_cast %58 : vector<1x128x128xf32> to vector<128x128xf32>
    %cst_59 = arith.constant dense<0.000000e+00> : vector<256x128xf32>
    %60 = tpu.matmul %57, %59, %cst_59 {dimension_numbers = #tpu.dot_dimension_numbers<[1], [0], [0], [1], [0, 0, 1, 1], [], []>} : vector<256x128xf32>, vector<128x128xf32>, vector<256x128xf32> -> vector<256x128xf32>
    %61 = arith.addf %50, %60 : vector<256x128xf32>
    %c0_60 = arith.constant 0 : index
    %c0_61 = arith.constant 0 : index
    %62 = vector.load %arg5[%c0_60, %c0_61] : memref<4x128xf32, #tpu.memory_space<vmem>>, vector<1x128xf32>
    %63 = vector.broadcast %62 : vector<1x128xf32> to vector<256x128xf32>
    %64 = arith.mulf %61, %63 : vector<256x128xf32>
    %c1_62 = arith.constant 1 : index
    %c0_63 = arith.constant 0 : index
    %65 = vector.load %arg5[%c1_62, %c0_63] : memref<4x128xf32, #tpu.memory_space<vmem>>, vector<1x128xf32>
    %66 = vector.broadcast %65 : vector<1x128xf32> to vector<256x128xf32>
    %67 = arith.addf %64, %66 : vector<256x128xf32>
    %cst_64 = arith.constant 0.000000e+00 : f32
    %68 = vector.broadcast %cst_64 : f32 to vector<256x128xf32>
    %69 = arith.maximumf %67, %68 : vector<256x128xf32>
    %70 = vector.shape_cast %69 : vector<256x128xf32> to vector<16x16x128xf32>
    %c1_65 = arith.constant 1 : index
    %c1_66 = arith.constant 1 : index
    %c0_67 = arith.constant 0 : index
    %71 = vector.load %arg8[%c1_65, %c1_66, %c0_67] : memref<18x24x128xf32, #tpu.memory_space<vmem>>, vector<16x16x128xf32>
    tpu.vector_store %arg8[%c1_65, %c1_66, %c0_67], %70 {strides = array<i32>} : memref<18x24x128xf32, #tpu.memory_space<vmem>>, vector<16x16x128xf32>,
    %c0_68 = arith.constant 0 : index
    %c0_69 = arith.constant 0 : index
    %c0_70 = arith.constant 0 : index
    %72 = vector.load %arg8[%c0_68, %c0_69, %c0_70] : memref<18x24x128xf32, #tpu.memory_space<vmem>>, vector<18x16x128xf32>
    %73 = vector.extract_strided_slice %72 {offsets = [0, 0, 0], sizes = [16, 16, 128], strides = [1, 1, 1]} : vector<18x16x128xf32> to vector<16x16x128xf32>
    %74 = vector.extract_strided_slice %72 {offsets = [1, 0, 0], sizes = [16, 16, 128], strides = [1, 1, 1]} : vector<18x16x128xf32> to vector<16x16x128xf32>
    %75 = vector.extract_strided_slice %72 {offsets = [2, 0, 0], sizes = [16, 16, 128], strides = [1, 1, 1]} : vector<18x16x128xf32> to vector<16x16x128xf32>
    %76 = tpu.concatenate %73, %74, %75 in 2 : vector<16x16x128xf32>, vector<16x16x128xf32>, vector<16x16x128xf32> -> vector<16x16x384xf32>
    %77 = vector.shape_cast %76 : vector<16x16x384xf32> to vector<256x384xf32>
    %c0_71 = arith.constant 0 : index
    %c0_72 = arith.constant 0 : index
    %c0_73 = arith.constant 0 : index
    %78 = vector.load %arg4[%c0_71, %c0_72, %c0_73] : memref<3x384x128xf32, #tpu.memory_space<vmem>>, vector<1x384x128xf32>
    %79 = vector.shape_cast %78 : vector<1x384x128xf32> to vector<384x128xf32>
    %cst_74 = arith.constant dense<0.000000e+00> : vector<256x128xf32>
    %80 = tpu.matmul %77, %79, %cst_74 {dimension_numbers = #tpu.dot_dimension_numbers<[1], [0], [0], [1], [0, 0, 1, 1], [], []>} : vector<256x384xf32>, vector<384x128xf32>, vector<256x128xf32> -> vector<256x128xf32>
    %c0_75 = arith.constant 0 : index
    %c1_76 = arith.constant 1 : index
    %c0_77 = arith.constant 0 : index
    %81 = vector.load %arg8[%c0_75, %c1_76, %c0_77] : memref<18x24x128xf32, #tpu.memory_space<vmem>>, vector<18x16x128xf32>
    %82 = vector.extract_strided_slice %81 {offsets = [0, 0, 0], sizes = [16, 16, 128], strides = [1, 1, 1]} : vector<18x16x128xf32> to vector<16x16x128xf32>
    %83 = vector.extract_strided_slice %81 {offsets = [1, 0, 0], sizes = [16, 16, 128], strides = [1, 1, 1]} : vector<18x16x128xf32> to vector<16x16x128xf32>
    %84 = vector.extract_strided_slice %81 {offsets = [2, 0, 0], sizes = [16, 16, 128], strides = [1, 1, 1]} : vector<18x16x128xf32> to vector<16x16x128xf32>
    %85 = tpu.concatenate %82, %83, %84 in 2 : vector<16x16x128xf32>, vector<16x16x128xf32>, vector<16x16x128xf32> -> vector<16x16x384xf32>
    %86 = vector.shape_cast %85 : vector<16x16x384xf32> to vector<256x384xf32>
    %c1_78 = arith.constant 1 : index
    %c0_79 = arith.constant 0 : index
    %c0_80 = arith.constant 0 : index
    %87 = vector.load %arg4[%c1_78, %c0_79, %c0_80] : memref<3x384x128xf32, #tpu.memory_space<vmem>>, vector<1x384x128xf32>
    %88 = vector.shape_cast %87 : vector<1x384x128xf32> to vector<384x128xf32>
    %cst_81 = arith.constant dense<0.000000e+00> : vector<256x128xf32>
    %89 = tpu.matmul %86, %88, %cst_81 {dimension_numbers = #tpu.dot_dimension_numbers<[1], [0], [0], [1], [0, 0, 1, 1], [], []>} : vector<256x384xf32>, vector<384x128xf32>, vector<256x128xf32> -> vector<256x128xf32>
    %90 = arith.addf %80, %89 : vector<256x128xf32>
    %c0_82 = arith.constant 0 : index
    %c2_83 = arith.constant 2 : index
    %c0_84 = arith.constant 0 : index
    %91 = vector.load %arg8[%c0_82, %c2_83, %c0_84] : memref<18x24x128xf32, #tpu.memory_space<vmem>>, vector<18x16x128xf32>
    %92 = vector.extract_strided_slice %91 {offsets = [0, 0, 0], sizes = [16, 16, 128], strides = [1, 1, 1]} : vector<18x16x128xf32> to vector<16x16x128xf32>
    %93 = vector.extract_strided_slice %91 {offsets = [1, 0, 0], sizes = [16, 16, 128], strides = [1, 1, 1]} : vector<18x16x128xf32> to vector<16x16x128xf32>
    %94 = vector.extract_strided_slice %91 {offsets = [2, 0, 0], sizes = [16, 16, 128], strides = [1, 1, 1]} : vector<18x16x128xf32> to vector<16x16x128xf32>
    %95 = tpu.concatenate %92, %93, %94 in 2 : vector<16x16x128xf32>, vector<16x16x128xf32>, vector<16x16x128xf32> -> vector<16x16x384xf32>
    %96 = vector.shape_cast %95 : vector<16x16x384xf32> to vector<256x384xf32>
    %c2_85 = arith.constant 2 : index
    %c0_86 = arith.constant 0 : index
    %c0_87 = arith.constant 0 : index
    %97 = vector.load %arg4[%c2_85, %c0_86, %c0_87] : memref<3x384x128xf32, #tpu.memory_space<vmem>>, vector<1x384x128xf32>
    %98 = vector.shape_cast %97 : vector<1x384x128xf32> to vector<384x128xf32>
    %cst_88 = arith.constant dense<0.000000e+00> : vector<256x128xf32>
    %99 = tpu.matmul %96, %98, %cst_88 {dimension_numbers = #tpu.dot_dimension_numbers<[1], [0], [0], [1], [0, 0, 1, 1], [], []>} : vector<256x384xf32>, vector<384x128xf32>, vector<256x128xf32> -> vector<256x128xf32>
    %100 = arith.addf %90, %99 : vector<256x128xf32>
    %c2_89 = arith.constant 2 : index
    %c0_90 = arith.constant 0 : index
    %101 = vector.load %arg5[%c2_89, %c0_90] : memref<4x128xf32, #tpu.memory_space<vmem>>, vector<1x128xf32>
    %102 = vector.broadcast %101 : vector<1x128xf32> to vector<256x128xf32>
    %103 = arith.mulf %100, %102 : vector<256x128xf32>
    %c3 = arith.constant 3 : index
    %c0_91 = arith.constant 0 : index
    %104 = vector.load %arg5[%c3, %c0_91] : memref<4x128xf32, #tpu.memory_space<vmem>>, vector<1x128xf32>
    %105 = vector.broadcast %104 : vector<1x128xf32> to vector<256x128xf32>
    %106 = arith.addf %103, %105 : vector<256x128xf32>
    %cst_92 = arith.constant 0.000000e+00 : f32
    %107 = vector.broadcast %cst_92 : f32 to vector<256x128xf32>
    %108 = arith.maximumf %106, %107 : vector<256x128xf32>
    %c0_93 = arith.constant 0 : index
    %c0_94 = arith.constant 0 : index
    %c0_95 = arith.constant 0 : index
    %109 = vector.load %arg6[%c0_93, %c0_94, %c0_95] : memref<1x256x128xf32, #tpu.memory_space<vmem>>, vector<1x256x128xf32>
    %110 = vector.shape_cast %109 : vector<1x256x128xf32> to vector<256x128xf32>
    %111 = vector.shape_cast %108 : vector<256x128xf32> to vector<1x256x128xf32>
    tpu.vector_store %arg6[%c0_93, %c0_94, %c0_95], %111 {strides = array<i32>} : memref<1x256x128xf32, #tpu.memory_space<vmem>>, vector<1x256x128xf32>,
    return
  }
  func.func @transform_0(%arg0: i32) -> (i32, i32, i32, i32) {
    %c0_i32 = arith.constant 0 : i32
    %c0_i32_0 = arith.constant 0 : i32
    %c0_i32_1 = arith.constant 0 : i32
    %c0_i32_2 = arith.constant 0 : i32
    return %arg0, %c0_i32, %c0_i32_0, %c0_i32_1 : i32, i32, i32, i32
  }
  func.func @transform_1(%arg0: i32) -> (i32, i32, i32, i32) {
    %c0_i32 = arith.constant 0 : i32
    %c0_i32_0 = arith.constant 0 : i32
    %c0_i32_1 = arith.constant 0 : i32
    %c0_i32_2 = arith.constant 0 : i32
    return %arg0, %c0_i32, %c0_i32_0, %c0_i32_1 : i32, i32, i32, i32
  }
  func.func @transform_2(%arg0: i32) -> (i32, i32, i32) {
    %c0_i32 = arith.constant 0 : i32
    %c0_i32_0 = arith.constant 0 : i32
    %c0_i32_1 = arith.constant 0 : i32
    %c0_i32_2 = arith.constant 0 : i32
    return %c0_i32, %c0_i32_0, %c0_i32_1 : i32, i32, i32
  }
  func.func @transform_3(%arg0: i32) -> (i32, i32, i32) {
    %c0_i32 = arith.constant 0 : i32
    %c0_i32_0 = arith.constant 0 : i32
    %c0_i32_1 = arith.constant 0 : i32
    %c0_i32_2 = arith.constant 0 : i32
    return %c0_i32, %c0_i32_0, %c0_i32_1 : i32, i32, i32
  }
  func.func @transform_4(%arg0: i32) -> (i32, i32) {
    %c0_i32 = arith.constant 0 : i32
    %c0_i32_0 = arith.constant 0 : i32
    %c0_i32_1 = arith.constant 0 : i32
    return %c0_i32, %c0_i32_0 : i32, i32
  }
  func.func @transform_5(%arg0: i32) -> (i32, i32, i32) {
    %c0_i32 = arith.constant 0 : i32
    %c0_i32_0 = arith.constant 0 : i32
    %c0_i32_1 = arith.constant 0 : i32
    return %arg0, %c0_i32, %c0_i32_0 : i32, i32, i32
  }
}

</mosaic_0001>

<llo_original>
// kernel: decoder_block_forward.1
$region0: #{decoder_block_forward.1}
  #allocation0 [shape = 'u32[]', space=smem, size = 0x4, offset = 0x4, fixed_abs, tag = 'smem constant byte address 0x4 - core index']
  #allocation1 [shape = 'u32[72,128]{1,0:T(1,128)}', space=vmem, size = 0x9000, scoped, tag = 'internal scratch']
  #allocation2 [shape = 'f32[18,24,12]{2,1,0:T(8,128)}', space=vmem, size = 0x36000, scoped, tag = 'scratch operand']
  #allocation3 [shape = 'f32[18,24,128]{2,1,0:T(8,128)}', space=vmem, size = 0x36000, scoped, tag = 'scratch operand']
  %s0 = inlined_call_operand.vmem [shape: f32[2,8,16,8], index: 0, kind: input, shape index: {}]
  %s1 = inlined_call_operand.vmem [shape: f32[2,16,16,4], index: 1, kind: input, shape index: {}]
  %s2 = inlined_call_operand.vmem [shape: f32[3,128,128], index: 2, kind: input, shape index: {}]
  %s3 = inlined_call_operand.vmem [shape: f32[3,384,128], index: 3, kind: input, shape index: {}]
  %s4 = inlined_call_operand.vmem [shape: f32[4,128], index: 4, kind: input, shape index: {}]
  %s5 = inlined_call_operand.vmem [shape: f32[2,256,128], index: 5, kind: output, shape index: {}]
  %s6 = sld [smem:[#allocation0]]
  $region53: #{decoder_block_forward.1} parent=0
    _
  %s8 = ssub.s32 1, %s6
  %s9 = scalar_select 0, %s8, %s6
  loop: start=0, step=1, limit=4
  $region2: #{decoder_block_forward.1} parent=0 // loop_pre_header
    _
  $region3: #{decoder_block_forward.1} parent=0 // loop_header
    %s11 = sphi 0, %s15
    %p12 = scmp.ge.s32.totalorder %s11, 4
    %s21 = sphi 0, %s23
    %s24 = sphi 0, %s21
    %s25 = sphi 0, %s24
    %s41 = sphi 0, %s25
    %s47 = sphi 0, %s49
    %s50 = sphi 0, %s47
    %s51 = sphi 0, %s50
    %s67 = sphi 0, %s51
    %s71 = sphi 0, %s71
    %s73 = sphi 0, %s71
    %s74 = sphi 0, %s73
    %s88 = sphi 0, %s74
    %s92 = sphi 0, %s92
    %s94 = sphi 0, %s92
    %s95 = sphi 0, %s94
    %s109 = sphi 0, %s95
    %s113 = sphi 0, %s113
    %s115 = sphi 0, %s113
    %s116 = sphi 0, %s115
    %s130 = sphi 0, %s116
    %s136 = sphi 0, %s138
    %s139 = sphi 0, %s136
    %s140 = sphi 0, %s139
    %s156 = sphi 0, %s140
  $region4: #{decoder_block_forward.1} parent=0 // loop_header_branch
    %14 = sbr.rel (%p12) target = $region8
  $region5: #{decoder_block_forward.1} parent=0 // loop_body
    %s16 = ssub.s32 %s11, 1
    %s17 = ssub.s32 %s11, 2
    %s18 = sadd.s32 %s11, 1
    %s19 = ssub.s32 %s11, %s18
    %p20 = scmp.eq.s32.totalorder %s19, 0
    %s22 = sadd.s32 %s21, 1
    %s23 = scalar_select %p20, %s21, %s22
    %p26 = pneg %p20
    %p27 = scmp.eq.s32.totalorder %s11, 1
    %p28 = por %p26, %p27
    %p29 = scmp.ne.s32.totalorder %s21, %s24
    %p30 = scmp.eq.s32.totalorder %s11, 0
    %p31 = por %p29, %p30
    %p32 = scmp.ne.s32.totalorder %s21, %s24
    %p33 = scmp.eq.s32.totalorder %s16, 1
    %p34 = por %p32, %p33
    %p35 = scmp.ne.s32.totalorder %s24, %s25
    %p36 = scmp.eq.s32.totalorder %s16, 0
    %p37 = por %p35, %p36
    %p38 = scmp.ne.s32.totalorder %s24, %s25
    %p39 = scmp.eq.s32.totalorder %s17, 1
    %p40 = por %p38, %p39
    %p42 = scmp.ne.s32.totalorder %s25, %s41
    %p43 = scmp.eq.s32.totalorder %s17, 0
    %p44 = por %p42, %p43
    %s45 = ssub.s32 %s11, %s18
    %p46 = scmp.eq.s32.totalorder %s45, 0
    %s48 = sadd.s32 %s47, 1
    %s49 = scalar_select %p46, %s47, %s48
    %p52 = pneg %p46
    %p53 = scmp.eq.s32.totalorder %s11, 1
    %p54 = por %p52, %p53
    %p55 = scmp.ne.s32.totalorder %s47, %s50
    %p56 = scmp.eq.s32.totalorder %s11, 0
    %p57 = por %p55, %p56
    %p58 = scmp.ne.s32.totalorder %s47, %s50
    %p59 = scmp.eq.s32.totalorder %s16, 1
    %p60 = por %p58, %p59
    %p61 = scmp.ne.s32.totalorder %s50, %s51
    %p62 = scmp.eq.s32.totalorder %s16, 0
    %p63 = por %p61, %p62
    %p64 = scmp.ne.s32.totalorder %s50, %s51
    %p65 = scmp.eq.s32.totalorder %s17, 1
    %p66 = por %p64, %p65
    %p68 = scmp.ne.s32.totalorder %s51, %s67
    %p69 = scmp.eq.s32.totalorder %s17, 0
    %p70 = por %p68, %p69
    %s72 = sadd.s32 %s71, 1
    %p75 = scmp.eq.s32.totalorder %s11, 1
    %p76 = scmp.ne.s32.totalorder %s71, %s73
    %p77 = scmp.eq.s32.totalorder %s11, 0
    %p78 = por %p76, %p77
    %p79 = scmp.ne.s32.totalorder %s71, %s73
    %p80 = scmp.eq.s32.totalorder %s16, 1
    %p81 = por %p79, %p80
    %p82 = scmp.ne.s32.totalorder %s73, %s74
    %p83 = scmp.eq.s32.totalorder %s16, 0
    %p84 = por %p82, %p83
    %p85 = scmp.ne.s32.totalorder %s73, %s74
    %p86 = scmp.eq.s32.totalorder %s17, 1
    %p87 = por %p85, %p86
    %p89 = scmp.ne.s32.totalorder %s74, %s88
    %p90 = scmp.eq.s32.totalorder %s17, 0
    %p91 = por %p89, %p90
    %s93 = sadd.s32 %s92, 1
    %p96 = scmp.eq.s32.totalorder %s11, 1
    %p97 = scmp.ne.s32.totalorder %s92, %s94
    %p98 = scmp.eq.s32.totalorder %s11, 0
    %p99 = por %p97, %p98
    %p100 = scmp.ne.s32.totalorder %s92, %s94
    %p101 = scmp.eq.s32.totalorder %s16, 1
    %p102 = por %p100, %p101
    %p103 = scmp.ne.s32.totalorder %s94, %s95
    %p104 = scmp.eq.s32.totalorder %s16, 0
    %p105 = por %p103, %p104
    %p106 = scmp.ne.s32.totalorder %s94, %s95
    %p107 = scmp.eq.s32.totalorder %s17, 1
    %p108 = por %p106, %p107
    %p110 = scmp.ne.s32.totalorder %s95, %s109
    %p111 = scmp.eq.s32.totalorder %s17, 0
    %p112 = por %p110, %p111
    %s114 = sadd.s32 %s113, 1
    %p117 = scmp.eq.s32.totalorder %s11, 1
    %p118 = scmp.ne.s32.totalorder %s113, %s115
    %p119 = scmp.eq.s32.totalorder %s11, 0
    %p120 = por %p118, %p119
    %p121 = scmp.ne.s32.totalorder %s113, %s115
    %p122 = scmp.eq.s32.totalorder %s16, 1
    %p123 = por %p121, %p122
    %p124 = scmp.ne.s32.totalorder %s115, %s116
    %p125 = scmp.eq.s32.totalorder %s16, 0
    %p126 = por %p124, %p125
    %p127 = scmp.ne.s32.totalorder %s115, %s116
    %p128 = scmp.eq.s32.totalorder %s17, 1
    %p129 = por %p127, %p128
    %p131 = scmp.ne.s32.totalorder %s116, %s130
    %p132 = scmp.eq.s32.totalorder %s17, 0
    %p133 = por %p131, %p132
    %s134 = ssub.s32 %s11, %s18
    %p135 = scmp.eq.s32.totalorder %s134, 0
    %s137 = sadd.s32 %s136, 1
    %s138 = scalar_select %p135, %s136, %s137
    %p141 = pneg %p135
    %p142 = scmp.eq.s32.totalorder %s11, 1
    %p143 = por %p141, %p142
    %p144 = scmp.ne.s32.totalorder %s136, %s139
    %p145 = scmp.eq.s32.totalorder %s11, 0
    %p146 = por %p144, %p145
    %p147 = scmp.ne.s32.totalorder %s136, %s139
    %p148 = scmp.eq.s32.totalorder %s16, 1
    %p149 = por %p147, %p148
    %p150 = scmp.ne.s32.totalorder %s139, %s140
    %p151 = scmp.eq.s32.totalorder %s16, 0
    %p152 = por %p150, %p151
    %p153 = scmp.ne.s32.totalorder %s139, %s140
    %p154 = scmp.eq.s32.totalorder %s17, 1
    %p155 = por %p153, %p154
    %p157 = scmp.ne.s32.totalorder %s140, %s156
    %p158 = scmp.eq.s32.totalorder %s17, 0
    %p159 = por %p157, %p158
    %p160 = scmp.le.s32.totalorder 1, %s11
    %p161 = scmp.lt.s32.totalorder %s11, 3
    %p162 = pnand %p160, %p161
    %p163 = pneg %p162
    // Predicated region
    $region9: #{decoder_block_forward.1} parent=5 // pred_check
      _
    $region10: #{decoder_block_forward.1} parent=5 // pred_check_branch
      %165 = sbr.rel (%p162) target = $region12
    $region11: #{decoder_block_forward.1} parent=5 // pred_region
      %s166 = ssub.s32 %s11, 1
      // Predicated region
      $region13: #{decoder_block_forward.1} parent=11 // pred_check
        %p167 = pneg %p84
      $region14: #{decoder_block_forward.1} parent=11 // pred_check_branch
        %169 = sbr.rel (%p167) target = $region16
      $region15: #{decoder_block_forward.1} parent=11 // pred_region
        _
      $region16: #{decoder_block_forward.1} parent=11 // pred_fallthru
        _
      // Predicated region
      $region17: #{decoder_block_forward.1} parent=11 // pred_check
        %p170 = pneg %p105
      $region18: #{decoder_block_forward.1} parent=11 // pred_check_branch
        %172 = sbr.rel (%p170) target = $region20
      $region19: #{decoder_block_forward.1} parent=11 // pred_region
        _
      $region20: #{decoder_block_forward.1} parent=11 // pred_fallthru
        _
      // Predicated region
      $region21: #{decoder_block_forward.1} parent=11 // pred_check
        %p173 = pneg %p126
      $region22: #{decoder_block_forward.1} parent=11 // pred_check_branch
        %175 = sbr.rel (%p173) target = $region24
      $region23: #{decoder_block_forward.1} parent=11 // pred_region
        _
      $region24: #{decoder_block_forward.1} parent=11 // pred_fallthru
        _
    $region12: #{decoder_block_forward.1} parent=5 // pred_fallthru
      _
    %p176 = scmp.lt.s32.totalorder %s11, 2
    // Predicated region
    $region25: #{decoder_block_forward.1} parent=5 // pred_check
      %p177 = pneg %p176
    $region26: #{decoder_block_forward.1} parent=5 // pred_check_branch
      %179 = sbr.rel (%p177) target = $region28
    $region27: #{decoder_block_forward.1} parent=5 // pred_region
      // Predicated region
      $region29: #{decoder_block_forward.1} parent=27 // pred_check
        %p180 = pneg %p31
      $region30: #{decoder_block_forward.1} parent=27 // pred_check_branch
        %182 = sbr.rel (%p180) target = $region32
      $region31: #{decoder_block_forward.1} parent=27 // pred_region
        %p183 = scmp.lt.s32.totalorder %s11, 1
        %s184 = scalar_select %p183, %s11, 1
        %s185 = smul.addr %s184, 16
        %s186 = smul.addr %s185, 8
        %s187 = scalar_lea.vmem %s0, %s186
      $region32: #{decoder_block_forward.1} parent=27 // pred_fallthru
        _
      // Predicated region
      $region33: #{decoder_block_forward.1} parent=27 // pred_check
        %p188 = pneg %p57
      $region34: #{decoder_block_forward.1} parent=27 // pred_check_branch
        %190 = sbr.rel (%p188) target = $region36
      $region35: #{decoder_block_forward.1} parent=27 // pred_region
        %p191 = scmp.lt.s32.totalorder %s11, 1
        %s192 = scalar_select %p191, %s11, 1
        %s193 = smul.addr %s192, 32
        %s194 = smul.addr %s193, 8
        %s195 = scalar_lea.vmem %s1, %s194
      $region36: #{decoder_block_forward.1} parent=27 // pred_fallthru
        _
    $region28: #{decoder_block_forward.1} parent=5 // pred_fallthru
      _
    %p196 = scmp.le.s32.totalorder 1, %s11
    %p197 = scmp.lt.s32.totalorder %s11, 3
    %p198 = pnand %p196, %p197
    %p199 = pneg %p198
    // Predicated region
    $region37: #{decoder_block_forward.1} parent=5 // pred_check
      _
    $region38: #{decoder_block_forward.1} parent=5 // pred_check_branch
      %201 = sbr.rel (%p198) target = $region40
    $region39: #{decoder_block_forward.1} parent=5 // pred_region
      %s202 = ssub.s32 %s11, 1
      %p203 = scmp.lt.s32.totalorder %s16, 1
      %s204 = scalar_select %p203, %s16, 1
      %s205 = smul.addr %s204, 16
      %s206 = smul.addr %s205, 8
      %s207 = scalar_lea.vmem %s0, %s206
      %p208 = pneg %p37
      %p209 = pneg %p34
      %p210 = scmp.lt.s32.totalorder %s16, 1
      %s211 = scalar_select %p210, %s16, 1
      %s212 = smul.addr %s211, 32
      %s213 = smul.addr %s212, 8
      %s214 = scalar_lea.vmem %s1, %s213
      %p215 = pneg %p63
      %p216 = pneg %p60
      %p217 = pneg %p84
      %p218 = pneg %p81
      %p219 = pneg %p105
      %p220 = pneg %p102
      %p221 = pneg %p126
      %p222 = pneg %p123
      %p223 = pneg %p152
      %p224 = pneg %p149
      %p225 = scmp.lt.s32.totalorder %s16, 1
      %s226 = scalar_select %p225, %s16, 1
      %s227 = smul.addr %s226, 32
      %s228 = smul.addr %s227, 8
      %s229 = scalar_lea.vmem %s5, %s228
      %p230 = scmp.lt.s32.totalorder %s16, 1
      %s231 = scalar_select %p230, %s16, 1
      %s232 = smul.addr %s231, 16
      %s233 = smul.addr %s232, 8
      %s234 = scalar_lea.vmem %s0, %s233
      %p235 = scmp.lt.s32.totalorder %s16, 1
      %s236 = scalar_select %p235, %s16, 1
      %s237 = smul.addr %s236, 32
      %s238 = smul.addr %s237, 8
      %s239 = scalar_lea.vmem %s1, %s238
      %p240 = scmp.lt.s32.totalorder %s16, 1
      %s241 = scalar_select %p240, %s16, 1
      %s242 = smul.addr %s241, 32
      %s243 = smul.addr %s242, 8
      %s244 = scalar_lea.vmem %s5, %s243
      %vm245 = vcmask 97280
      %246 = vst.msk [vmem:[#allocation2] sm:$0xff] %vm245, 0.0
      %247 = vst.msk [vmem:[#allocation2 + $0x8] sm:$0xff] %vm245, 0.0
      %248 = vst.msk [vmem:[#allocation2 + $0x10] sm:$0xff] %vm245, 0.0
      %s249 = scalar_lea.vmem [#allocation2], 408
      %250 = vst.msk [vmem:[%s249] sm:$0xff] %vm245, 0.0
      %251 = vst.msk [vmem:[%s249 + $0x8] sm:$0xff] %vm245, 0.0
      %252 = vst.msk [vmem:[%s249 + $0x10] sm:$0xff] %vm245, 0.0
      %s253 = scalar_lea.vmem [#allocation2], 24
      %vm254 = vcmask 90112
      %255 = vst.msk [vmem:[%s253] sm:$0x1] %vm254, 0.0
      %256 = vst.msk [vmem:[%s253 + $0x18] sm:$0x1] %vm254, 0.0
      %257 = vst.msk [vmem:[%s253 + $0x30] sm:$0x1] %vm254, 0.0
      %258 = vst.msk [vmem:[%s253 + $0x48] sm:$0x1] %vm254, 0.0
      %259 = vst.msk [vmem:[%s253 + $0x60] sm:$0x1] %vm254, 0.0
      %260 = vst.msk [vmem:[%s253 + $0x78] sm:$0x1] %vm254, 0.0
      %261 = vst.msk [vmem:[%s253 + $0x90] sm:$0x1] %vm254, 0.0
      %262 = vst.msk [vmem:[%s253 + $0xa8] sm:$0x1] %vm254, 0.0
      %263 = vst.msk [vmem:[%s253 + $0xc0] sm:$0x1] %vm254, 0.0
      %264 = vst.msk [vmem:[%s253 + $0xd8] sm:$0x1] %vm254, 0.0
      %265 = vst.msk [vmem:[%s253 + $0xf0] sm:$0x1] %vm254, 0.0
      %266 = vst.msk [vmem:[%s253 + $0x108] sm:$0x1] %vm254, 0.0
      %267 = vst.msk [vmem:[%s253 + $0x120] sm:$0x1] %vm254, 0.0
      %268 = vst.msk [vmem:[%s253 + $0x138] sm:$0x1] %vm254, 0.0
      %269 = vst.msk [vmem:[%s253 + $0x150] sm:$0x1] %vm254, 0.0
      %270 = vst.msk [vmem:[%s253 + $0x168] sm:$0x1] %vm254, 0.0
      %271 = vst.msk [vmem:[%s253 + $0x11] sm:$0x1] %vm254, 0.0
      %272 = vst.msk [vmem:[%s253 + $0x29] sm:$0x1] %vm254, 0.0
      %273 = vst.msk [vmem:[%s253 + $0x41] sm:$0x1] %vm254, 0.0
      %274 = vst.msk [vmem:[%s253 + $0x59] sm:$0x1] %vm254, 0.0
      %275 = vst.msk [vmem:[%s253 + $0x71] sm:$0x1] %vm254, 0.0
      %276 = vst.msk [vmem:[%s253 + $0x89] sm:$0x1] %vm254, 0.0
      %277 = vst.msk [vmem:[%s253 + $0xa1] sm:$0x1] %vm254, 0.0
      %278 = vst.msk [vmem:[%s253 + $0xb9] sm:$0x1] %vm254, 0.0
      %279 = vst.msk [vmem:[%s253 + $0xd1] sm:$0x1] %vm254, 0.0
      %280 = vst.msk [vmem:[%s253 + $0xe9] sm:$0x1] %vm254, 0.0
      %281 = vst.msk [vmem:[%s253 + $0x101] sm:$0x1] %vm254, 0.0
      %282 = vst.msk [vmem:[%s253 + $0x119] sm:$0x1] %vm254, 0.0
      %283 = vst.msk [vmem:[%s253 + $0x131] sm:$0x1] %vm254, 0.0
      %284 = vst.msk [vmem:[%s253 + $0x149] sm:$0x1] %vm254, 0.0
      %285 = vst.msk [vmem:[%s253 + $0x161] sm:$0x1] %vm254, 0.0
      %286 = vst.msk [vmem:[%s253 + $0x179] sm:$0x1] %vm254, 0.0
      %287 = vst [vmem:[#allocation3] sm:$0xff] 0.0
      %288 = vst [vmem:[#allocation3 + $0x8] sm:$0xff] 0.0
      %289 = vst [vmem:[#allocation3 + $0x10] sm:$0xff] 0.0
      %s290 = scalar_lea.vmem [#allocation3], 408
      %291 = vst [vmem:[%s290] sm:$0xff] 0.0
      %292 = vst [vmem:[%s290 + $0x8] sm:$0xff] 0.0
      %293 = vst [vmem:[%s290 + $0x10] sm:$0xff] 0.0
      %s294 = scalar_lea.vmem [#allocation3], 24
      %295 = vst [vmem:[%s294] sm:$0x1] 0.0
      %296 = vst [vmem:[%s294 + $0x18] sm:$0x1] 0.0
      %297 = vst [vmem:[%s294 + $0x30] sm:$0x1] 0.0
      %298 = vst [vmem:[%s294 + $0x48] sm:$0x1] 0.0
      %299 = vst [vmem:[%s294 + $0x60] sm:$0x1] 0.0
      %300 = vst [vmem:[%s294 + $0x78] sm:$0x1] 0.0
      %301 = vst [vmem:[%s294 + $0x90] sm:$0x1] 0.0
      %302 = vst [vmem:[%s294 + $0xa8] sm:$0x1] 0.0
      %303 = vst [vmem:[%s294 + $0xc0] sm:$0x1] 0.0
      %304 = vst [vmem:[%s294 + $0xd8] sm:$0x1] 0.0
      %305 = vst [vmem:[%s294 + $0xf0] sm:$0x1] 0.0
      %306 = vst [vmem:[%s294 + $0x108] sm:$0x1] 0.0
      %307 = vst [vmem:[%s294 + $0x120] sm:$0x1] 0.0
      %308 = vst [vmem:[%s294 + $0x138] sm:$0x1] 0.0
      %309 = vst [vmem:[%s294 + $0x150] sm:$0x1] 0.0
      %310 = vst [vmem:[%s294 + $0x168] sm:$0x1] 0.0
      %311 = vst [vmem:[%s294 + $0x11] sm:$0x1] 0.0
      %312 = vst [vmem:[%s294 + $0x29] sm:$0x1] 0.0
      %313 = vst [vmem:[%s294 + $0x41] sm:$0x1] 0.0
      %314 = vst [vmem:[%s294 + $0x59] sm:$0x1] 0.0
      %315 = vst [vmem:[%s294 + $0x71] sm:$0x1] 0.0
      %316 = vst [vmem:[%s294 + $0x89] sm:$0x1] 0.0
      %317 = vst [vmem:[%s294 + $0xa1] sm:$0x1] 0.0
      %318 = vst [vmem:[%s294 + $0xb9] sm:$0x1] 0.0
      %319 = vst [vmem:[%s294 + $0xd1] sm:$0x1] 0.0
      %320 = vst [vmem:[%s294 + $0xe9] sm:$0x1] 0.0
      %321 = vst [vmem:[%s294 + $0x101] sm:$0x1] 0.0
      %322 = vst [vmem:[%s294 + $0x119] sm:$0x1] 0.0
      %323 = vst [vmem:[%s294 + $0x131] sm:$0x1] 0.0
      %324 = vst [vmem:[%s294 + $0x149] sm:$0x1] 0.0
      %325 = vst [vmem:[%s294 + $0x161] sm:$0x1] 0.0
      %326 = vst [vmem:[%s294 + $0x179] sm:$0x1] 0.0
      %v327 = vld [vmem:[%s234] sm:$0xff]
      %v328 = vld [vmem:[%s234 + $0x8] sm:$0xff]
      %v329 = vld [vmem:[%s234 + $0x10] sm:$0xff]
      %v330 = vld [vmem:[%s234 + $0x18] sm:$0xff]
      %v331 = vld [vmem:[%s234 + $0x20] sm:$0xff]
      %v332 = vld [vmem:[%s234 + $0x28] sm:$0xff]
      %v333 = vld [vmem:[%s234 + $0x30] sm:$0xff]
      %v334 = vld [vmem:[%s234 + $0x38] sm:$0xff]
      %v335 = vld [vmem:[%s234 + $0x40] sm:$0xff]
      %v336 = vld [vmem:[%s234 + $0x48] sm:$0xff]
      %v337 = vld [vmem:[%s234 + $0x50] sm:$0xff]
      %v338 = vld [vmem:[%s234 + $0x58] sm:$0xff]
      %v339 = vld [vmem:[%s234 + $0x60] sm:$0xff]
      %v340 = vld [vmem:[%s234 + $0x68] sm:$0xff]
      %v341 = vld [vmem:[%s234 + $0x70] sm:$0xff]
      %v342 = vld [vmem:[%s234 + $0x78] sm:$0xff]
      %vm343 = vcmask 64512
      %344 = vst.msk [vmem:[%s253 + $0x1] sm:$0xff] %vm343, %v327
      %345 = vst.msk [vmem:[%s253 + $0x9] sm:$0xff] %vm343, %v328
      %346 = vst.msk [vmem:[%s253 + $0x19] sm:$0xff] %vm343, %v327
      %347 = vst.msk [vmem:[%s253 + $0x21] sm:$0xff] %vm343, %v328
      %348 = vst.msk [vmem:[%s253 + $0x31] sm:$0xff] %vm343, %v329
      %349 = vst.msk [vmem:[%s253 + $0x39] sm:$0xff] %vm343, %v330
      %350 = vst.msk [vmem:[%s253 + $0x49] sm:$0xff] %vm343, %v329
      %351 = vst.msk [vmem:[%s253 + $0x51] sm:$0xff] %vm343, %v330
      %352 = vst.msk [vmem:[%s253 + $0x61] sm:$0xff] %vm343, %v331
      %353 = vst.msk [vmem:[%s253 + $0x69] sm:$0xff] %vm343, %v332
      %354 = vst.msk [vmem:[%s253 + $0x79] sm:$0xff] %vm343, %v331
      %355 = vst.msk [vmem:[%s253 + $0x81] sm:$0xff] %vm343, %v332
      %356 = vst.msk [vmem:[%s253 + $0x91] sm:$0xff] %vm343, %v333
      %357 = vst.msk [vmem:[%s253 + $0x99] sm:$0xff] %vm343, %v334
      %358 = vst.msk [vmem:[%s253 + $0xa9] sm:$0xff] %vm343, %v333
      %359 = vst.msk [vmem:[%s253 + $0xb1] sm:$0xff] %vm343, %v334
      %360 = vst.msk [vmem:[%s253 + $0xc1] sm:$0xff] %vm343, %v335
      %361 = vst.msk [vmem:[%s253 + $0xc9] sm:$0xff] %vm343, %v336
      %362 = vst.msk [vmem:[%s253 + $0xd9] sm:$0xff] %vm343, %v335
      %363 = vst.msk [vmem:[%s253 + $0xe1] sm:$0xff] %vm343, %v336
      %364 = vst.msk [vmem:[%s253 + $0xf1] sm:$0xff] %vm343, %v337
      %365 = vst.msk [vmem:[%s253 + $0xf9] sm:$0xff] %vm343, %v338
      %366 = vst.msk [vmem:[%s253 + $0x109] sm:$0xff] %vm343, %v337
      %367 = vst.msk [vmem:[%s253 + $0x111] sm:$0xff] %vm343, %v338
      %368 = vst.msk [vmem:[%s253 + $0x121] sm:$0xff] %vm343, %v339
      %369 = vst.msk [vmem:[%s253 + $0x129] sm:$0xff] %vm343, %v340
      %370 = vst.msk [vmem:[%s253 + $0x139] sm:$0xff] %vm343, %v339
      %371 = vst.msk [vmem:[%s253 + $0x141] sm:$0xff] %vm343, %v340
      %372 = vst.msk [vmem:[%s253 + $0x151] sm:$0xff] %vm343, %v341
      %373 = vst.msk [vmem:[%s253 + $0x159] sm:$0xff] %vm343, %v342
      %374 = vst.msk [vmem:[%s253 + $0x169] sm:$0xff] %vm343, %v341
      %375 = vst.msk [vmem:[%s253 + $0x171] sm:$0xff] %vm343, %v342
      %v376 = vld [vmem:[%s239] sm:$0xff]
      %v377 = vld [vmem:[%s239 + $0x8] sm:$0xff]
      %v378 = vld [vmem:[%s239 + $0x10] sm:$0xff]
      %v379 = vld [vmem:[%s239 + $0x18] sm:$0xff]
      %v380 = vld [vmem:[%s239 + $0x20] sm:$0xff]
      %v381 = vld [vmem:[%s239 + $0x28] sm:$0xff]
      %v382 = vld [vmem:[%s239 + $0x30] sm:$0xff]
      %v383 = vld [vmem:[%s239 + $0x38] sm:$0xff]
      %v384 = vld [vmem:[%s239 + $0x40] sm:$0xff]
      %v385 = vld [vmem:[%s239 + $0x48] sm:$0xff]
      %v386 = vld [vmem:[%s239 + $0x50] sm:$0xff]
      %v387 = vld [vmem:[%s239 + $0x58] sm:$0xff]
      %v388 = vld [vmem:[%s239 + $0x60] sm:$0xff]
      %v389 = vld [vmem:[%s239 + $0x68] sm:$0xff]
      %v390 = vld [vmem:[%s239 + $0x70] sm:$0xff]
      %v391 = vld [vmem:[%s239 + $0x78] sm:$0xff]
      %v392 = vld [vmem:[%s239 + $0x80] sm:$0xff]
      %v393 = vld [vmem:[%s239 + $0x88] sm:$0xff]
      %v394 = vld [vmem:[%s239 + $0x90] sm:$0xff]
      %v395 = vld [vmem:[%s239 + $0x98] sm:$0xff]
      %v396 = vld [vmem:[%s239 + $0xa0] sm:$0xff]
      %v397 = vld [vmem:[%s239 + $0xa8] sm:$0xff]
      %v398 = vld [vmem:[%s239 + $0xb0] sm:$0xff]
      %v399 = vld [vmem:[%s239 + $0xb8] sm:$0xff]
      %v400 = vld [vmem:[%s239 + $0xc0] sm:$0xff]
      %v401 = vld [vmem:[%s239 + $0xc8] sm:$0xff]
      %v402 = vld [vmem:[%s239 + $0xd0] sm:$0xff]
      %v403 = vld [vmem:[%s239 + $0xd8] sm:$0xff]
      %v404 = vld [vmem:[%s239 + $0xe0] sm:$0xff]
      %v405 = vld [vmem:[%s239 + $0xe8] sm:$0xff]
      %v406 = vld [vmem:[%s239 + $0xf0] sm:$0xff]
      %v407 = vld [vmem:[%s239 + $0xf8] sm:$0xff]
      %440 = vrot.lane.b32.xlu0 %v376, 8
      %v441 = vpop.permute.xlu0 %440
      %442 = vrot.lane.b32.xlu0 %v377, 8
      %v443 = vpop.permute.xlu0 %442
      %444 = vrot.lane.b32.xlu0 %v378, 8
      %v445 = vpop.permute.xlu0 %444
      %446 = vrot.lane.b32.xlu0 %v379, 8
      %v447 = vpop.permute.xlu0 %446
      %448 = vrot.lane.b32.xlu0 %v380, 8
      %v449 = vpop.permute.xlu0 %448
      %450 = vrot.lane.b32.xlu0 %v381, 8
      %v451 = vpop.permute.xlu0 %450
      %452 = vrot.lane.b32.xlu0 %v382, 8
      %v453 = vpop.permute.xlu0 %452
      %454 = vrot.lane.b32.xlu0 %v383, 8
      %v455 = vpop.permute.xlu0 %454
      %456 = vrot.lane.b32.xlu0 %v384, 8
      %v457 = vpop.permute.xlu0 %456
      %458 = vrot.lane.b32.xlu0 %v385, 8
      %v459 = vpop.permute.xlu0 %458
      %460 = vrot.lane.b32.xlu0 %v386, 8
      %v461 = vpop.permute.xlu0 %460
      %462 = vrot.lane.b32.xlu0 %v387, 8
      %v463 = vpop.permute.xlu0 %462
      %464 = vrot.lane.b32.xlu0 %v388, 8
      %v465 = vpop.permute.xlu0 %464
      %466 = vrot.lane.b32.xlu0 %v389, 8
      %v467 = vpop.permute.xlu0 %466
      %468 = vrot.lane.b32.xlu0 %v390, 8
      %v469 = vpop.permute.xlu0 %468
      %470 = vrot.lane.b32.xlu0 %v391, 8
      %v471 = vpop.permute.xlu0 %470
      %472 = vrot.lane.b32.xlu0 %v392, 8
      %v473 = vpop.permute.xlu0 %472
      %474 = vrot.lane.b32.xlu0 %v393, 8
      %v475 = vpop.permute.xlu0 %474
      %476 = vrot.lane.b32.xlu0 %v394, 8
      %v477 = vpop.permute.xlu0 %476
      %478 = vrot.lane.b32.xlu0 %v395, 8
      %v479 = vpop.permute.xlu0 %478
      %480 = vrot.lane.b32.xlu0 %v396, 8
      %v481 = vpop.permute.xlu0 %480
      %482 = vrot.lane.b32.xlu0 %v397, 8
      %v483 = vpop.permute.xlu0 %482
      %484 = vrot.lane.b32.xlu0 %v398, 8
      %v485 = vpop.permute.xlu0 %484
      %486 = vrot.lane.b32.xlu0 %v399, 8
      %v487 = vpop.permute.xlu0 %486
      %488 = vrot.lane.b32.xlu0 %v400, 8
      %v489 = vpop.permute.xlu0 %488
      %490 = vrot.lane.b32.xlu0 %v401, 8
      %v491 = vpop.permute.xlu0 %490
      %492 = vrot.lane.b32.xlu0 %v402, 8
      %v493 = vpop.permute.xlu0 %492
      %494 = vrot.lane.b32.xlu0 %v403, 8
      %v495 = vpop.permute.xlu0 %494
      %496 = vrot.lane.b32.xlu0 %v404, 8
      %v497 = vpop.permute.xlu0 %496
      %498 = vrot.lane.b32.xlu0 %v405, 8
      %v499 = vpop.permute.xlu0 %498
      %500 = vrot.lane.b32.xlu0 %v406, 8
      %v501 = vpop.permute.xlu0 %500
      %502 = vrot.lane.b32.xlu0 %v407, 8
      %v503 = vpop.permute.xlu0 %502
      %vm536 = vcmask 97344
      %537 = vst.msk [vmem:[%s253 + $0x1] sm:$0xff] %vm536, %v441
      %538 = vst.msk [vmem:[%s253 + $0x9] sm:$0xff] %vm536, %v443
      %539 = vst.msk [vmem:[%s253 + $0x19] sm:$0xff] %vm536, %v445
      %540 = vst.msk [vmem:[%s253 + $0x21] sm:$0xff] %vm536, %v447
      %541 = vst.msk [vmem:[%s253 + $0x31] sm:$0xff] %vm536, %v449
      %542 = vst.msk [vmem:[%s253 + $0x39] sm:$0xff] %vm536, %v451
      %543 = vst.msk [vmem:[%s253 + $0x49] sm:$0xff] %vm536, %v453
      %544 = vst.msk [vmem:[%s253 + $0x51] sm:$0xff] %vm536, %v455
      %545 = vst.msk [vmem:[%s253 + $0x61] sm:$0xff] %vm536, %v457
      %546 = vst.msk [vmem:[%s253 + $0x69] sm:$0xff] %vm536, %v459
      %547 = vst.msk [vmem:[%s253 + $0x79] sm:$0xff] %vm536, %v461
      %548 = vst.msk [vmem:[%s253 + $0x81] sm:$0xff] %vm536, %v463
      %549 = vst.msk [vmem:[%s253 + $0x91] sm:$0xff] %vm536, %v465
      %550 = vst.msk [vmem:[%s253 + $0x99] sm:$0xff] %vm536, %v467
      %551 = vst.msk [vmem:[%s253 + $0xa9] sm:$0xff] %vm536, %v469
      %552 = vst.msk [vmem:[%s253 + $0xb1] sm:$0xff] %vm536, %v471
      %553 = vst.msk [vmem:[%s253 + $0xc1] sm:$0xff] %vm536, %v473
      %554 = vst.msk [vmem:[%s253 + $0xc9] sm:$0xff] %vm536, %v475
      %555 = vst.msk [vmem:[%s253 + $0xd9] sm:$0xff] %vm536, %v477
      %556 = vst.msk [vmem:[%s253 + $0xe1] sm:$0xff] %vm536, %v479
      %557 = vst.msk [vmem:[%s253 + $0xf1] sm:$0xff] %vm536, %v481
      %558 = vst.msk [vmem:[%s253 + $0xf9] sm:$0xff] %vm536, %v483
      %559 = vst.msk [vmem:[%s253 + $0x109] sm:$0xff] %vm536, %v485
      %560 = vst.msk [vmem:[%s253 + $0x111] sm:$0xff] %vm536, %v487
      %561 = vst.msk [vmem:[%s253 + $0x121] sm:$0xff] %vm536, %v489
      %562 = vst.msk [vmem:[%s253 + $0x129] sm:$0xff] %vm536, %v491
      %563 = vst.msk [vmem:[%s253 + $0x139] sm:$0xff] %vm536, %v493
      %564 = vst.msk [vmem:[%s253 + $0x141] sm:$0xff] %vm536, %v495
      %565 = vst.msk [vmem:[%s253 + $0x151] sm:$0xff] %vm536, %v497
      %566 = vst.msk [vmem:[%s253 + $0x159] sm:$0xff] %vm536, %v499
      %567 = vst.msk [vmem:[%s253 + $0x169] sm:$0xff] %vm536, %v501
      %568 = vst.msk [vmem:[%s253 + $0x171] sm:$0xff] %vm536, %v503
      %v569 = vld [vmem:[#allocation2] sm:$0xff]
      %v570 = vld [vmem:[#allocation2 + $0x8] sm:$0xff]
      %v571 = vld [vmem:[#allocation2 + $0x18] sm:$0xff]
      %v572 = vld [vmem:[#allocation2 + $0x20] sm:$0xff]
      %v573 = vld [vmem:[#allocation2 + $0x30] sm:$0xff]
      %v574 = vld [vmem:[#allocation2 + $0x38] sm:$0xff]
      %v575 = vld [vmem:[#allocation2 + $0x48] sm:$0xff]
      %v576 = vld [vmem:[#allocation2 + $0x50] sm:$0xff]
      %v577 = vld [vmem:[#allocation2 + $0x60] sm:$0xff]
      %v578 = vld [vmem:[#allocation2 + $0x68] sm:$0xff]
      %v579 = vld [vmem:[#allocation2 + $0x78] sm:$0xff]
      %v580 = vld [vmem:[#allocation2 + $0x80] sm:$0xff]
      %v581 = vld [vmem:[#allocation2 + $0x90] sm:$0xff]
      %v582 = vld [vmem:[#allocation2 + $0x98] sm:$0xff]
      %v583 = vld [vmem:[#allocation2 + $0xa8] sm:$0xff]
      %v584 = vld [vmem:[#allocation2 + $0xb0] sm:$0xff]
      %v585 = vld [vmem:[#allocation2 + $0xc0] sm:$0xff]
      %v586 = vld [vmem:[#allocation2 + $0xc8] sm:$0xff]
      %v587 = vld [vmem:[#allocation2 + $0xd8] sm:$0xff]
      %v588 = vld [vmem:[#allocation2 + $0xe0] sm:$0xff]
      %v589 = vld [vmem:[#allocation2 + $0xf0] sm:$0xff]
      %v590 = vld [vmem:[#allocation2 + $0xf8] sm:$0xff]
      %v591 = vld [vmem:[#allocation2 + $0x108] sm:$0xff]
      %v592 = vld [vmem:[#allocation2 + $0x110] sm:$0xff]
      %v593 = vld [vmem:[#allocation2 + $0x120] sm:$0xff]
      %v594 = vld [vmem:[#allocation2 + $0x128] sm:$0xff]
      %v595 = vld [vmem:[#allocation2 + $0x138] sm:$0xff]
      %v596 = vld [vmem:[#allocation2 + $0x140] sm:$0xff]
      %v597 = vld [vmem:[#allocation2 + $0x150] sm:$0xff]
      %v598 = vld [vmem:[#allocation2 + $0x158] sm:$0xff]
      %v599 = vld [vmem:[#allocation2 + $0x168] sm:$0xff]
      %v600 = vld [vmem:[#allocation2 + $0x170] sm:$0xff]
      %v601 = vld [vmem:[#allocation2 + $0x180] sm:$0xff]
      %v602 = vld [vmem:[#allocation2 + $0x188] sm:$0xff]
      %v603 = vld [vmem:[#allocation2 + $0x198] sm:$0xff]
      %v604 = vld [vmem:[#allocation2 + $0x1a0] sm:$0xff]
      %637 = vrot.lane.b32.xlu0 %v571, 12
      %v638 = vpop.permute.xlu0 %637
      %639 = vrot.lane.b32.xlu0 %v572, 12
      %v640 = vpop.permute.xlu0 %639
      %641 = vrot.lane.b32.xlu0 %v573, 12
      %v642 = vpop.permute.xlu0 %641
      %643 = vrot.lane.b32.xlu0 %v574, 12
      %v644 = vpop.permute.xlu0 %643
      %645 = vrot.lane.b32.xlu0 %v575, 12
      %v646 = vpop.permute.xlu0 %645
      %647 = vrot.lane.b32.xlu0 %v576, 12
      %v648 = vpop.permute.xlu0 %647
      %649 = vrot.lane.b32.xlu0 %v577, 12
      %v650 = vpop.permute.xlu0 %649
      %651 = vrot.lane.b32.xlu0 %v578, 12
      %v652 = vpop.permute.xlu0 %651
      %653 = vrot.lane.b32.xlu0 %v579, 12
      %v654 = vpop.permute.xlu0 %653
      %655 = vrot.lane.b32.xlu0 %v580, 12
      %v656 = vpop.permute.xlu0 %655
      %657 = vrot.lane.b32.xlu0 %v581, 12
      %v658 = vpop.permute.xlu0 %657
      %659 = vrot.lane.b32.xlu0 %v582, 12
      %v660 = vpop.permute.xlu0 %659
      %661 = vrot.lane.b32.xlu0 %v583, 12
      %v662 = vpop.permute.xlu0 %661
      %663 = vrot.lane.b32.xlu0 %v584, 12
      %v664 = vpop.permute.xlu0 %663
      %665 = vrot.lane.b32.xlu0 %v585, 12
      %v666 = vpop.permute.xlu0 %665
      %667 = vrot.lane.b32.xlu0 %v586, 12
      %v668 = vpop.permute.xlu0 %667
      %669 = vrot.lane.b32.xlu0 %v587, 12
      %v670 = vpop.permute.xlu0 %669
      %671 = vrot.lane.b32.xlu0 %v588, 12
      %v672 = vpop.permute.xlu0 %671
      %673 = vrot.lane.b32.xlu0 %v589, 12
      %v674 = vpop.permute.xlu0 %673
      %675 = vrot.lane.b32.xlu0 %v590, 12
      %v676 = vpop.permute.xlu0 %675
      %677 = vrot.lane.b32.xlu0 %v591, 12
      %v678 = vpop.permute.xlu0 %677
      %679 = vrot.lane.b32.xlu0 %v592, 12
      %v680 = vpop.permute.xlu0 %679
      %681 = vrot.lane.b32.xlu0 %v593, 12
      %v682 = vpop.permute.xlu0 %681
      %683 = vrot.lane.b32.xlu0 %v594, 12
      %v684 = vpop.permute.xlu0 %683
      %685 = vrot.lane.b32.xlu0 %v595, 12
      %v686 = vpop.permute.xlu0 %685
      %687 = vrot.lane.b32.xlu0 %v596, 12
      %v688 = vpop.permute.xlu0 %687
      %689 = vrot.lane.b32.xlu0 %v597, 12
      %v690 = vpop.permute.xlu0 %689
      %691 = vrot.lane.b32.xlu0 %v598, 12
      %v692 = vpop.permute.xlu0 %691
      %693 = vrot.lane.b32.xlu0 %v599, 12
      %v694 = vpop.permute.xlu0 %693
      %695 = vrot.lane.b32.xlu0 %v600, 12
      %v696 = vpop.permute.xlu0 %695
      %697 = vrot.lane.b32.xlu0 %v601, 12
      %v698 = vpop.permute.xlu0 %697
      %699 = vrot.lane.b32.xlu0 %v602, 12
      %v700 = vpop.permute.xlu0 %699
      %735 = vrot.lane.b32.xlu0 %v573, 24
      %v736 = vpop.permute.xlu0 %735
      %737 = vrot.lane.b32.xlu0 %v574, 24
      %v738 = vpop.permute.xlu0 %737
      %739 = vrot.lane.b32.xlu0 %v575, 24
      %v740 = vpop.permute.xlu0 %739
      %741 = vrot.lane.b32.xlu0 %v576, 24
      %v742 = vpop.permute.xlu0 %741
      %743 = vrot.lane.b32.xlu0 %v577, 24
      %v744 = vpop.permute.xlu0 %743
      %745 = vrot.lane.b32.xlu0 %v578, 24
      %v746 = vpop.permute.xlu0 %745
      %747 = vrot.lane.b32.xlu0 %v579, 24
      %v748 = vpop.permute.xlu0 %747
      %749 = vrot.lane.b32.xlu0 %v580, 24
      %v750 = vpop.permute.xlu0 %749
      %751 = vrot.lane.b32.xlu0 %v581, 24
      %v752 = vpop.permute.xlu0 %751
      %753 = vrot.lane.b32.xlu0 %v582, 24
      %v754 = vpop.permute.xlu0 %753
      %755 = vrot.lane.b32.xlu0 %v583, 24
      %v756 = vpop.permute.xlu0 %755
      %757 = vrot.lane.b32.xlu0 %v584, 24
      %v758 = vpop.permute.xlu0 %757
      %759 = vrot.lane.b32.xlu0 %v585, 24
      %v760 = vpop.permute.xlu0 %759
      %761 = vrot.lane.b32.xlu0 %v586, 24
      %v762 = vpop.permute.xlu0 %761
      %763 = vrot.lane.b32.xlu0 %v587, 24
      %v764 = vpop.permute.xlu0 %763
      %765 = vrot.lane.b32.xlu0 %v588, 24
      %v766 = vpop.permute.xlu0 %765
      %767 = vrot.lane.b32.xlu0 %v589, 24
      %v768 = vpop.permute.xlu0 %767
      %769 = vrot.lane.b32.xlu0 %v590, 24
      %v770 = vpop.permute.xlu0 %769
      %771 = vrot.lane.b32.xlu0 %v591, 24
      %v772 = vpop.permute.xlu0 %771
      %773 = vrot.lane.b32.xlu0 %v592, 24
      %v774 = vpop.permute.xlu0 %773
      %775 = vrot.lane.b32.xlu0 %v593, 24
      %v776 = vpop.permute.xlu0 %775
      %777 = vrot.lane.b32.xlu0 %v594, 24
      %v778 = vpop.permute.xlu0 %777
      %779 = vrot.lane.b32.xlu0 %v595, 24
      %v780 = vpop.permute.xlu0 %779
      %781 = vrot.lane.b32.xlu0 %v596, 24
      %v782 = vpop.permute.xlu0 %781
      %783 = vrot.lane.b32.xlu0 %v597, 24
      %v784 = vpop.permute.xlu0 %783
      %785 = vrot.lane.b32.xlu0 %v598, 24
      %v786 = vpop.permute.xlu0 %785
      %787 = vrot.lane.b32.xlu0 %v599, 24
      %v788 = vpop.permute.xlu0 %787
      %789 = vrot.lane.b32.xlu0 %v600, 24
      %v790 = vpop.permute.xlu0 %789
      %791 = vrot.lane.b32.xlu0 %v601, 24
      %v792 = vpop.permute.xlu0 %791
      %793 = vrot.lane.b32.xlu0 %v602, 24
      %v794 = vpop.permute.xlu0 %793
      %795 = vrot.lane.b32.xlu0 %v603, 24
      %v796 = vpop.permute.xlu0 %795
      %797 = vrot.lane.b32.xlu0 %v604, 24
      %v798 = vpop.permute.xlu0 %797
      %v831 = vsel %vm245, %v569, %v638
      %v832 = vsel %vm245, %v570, %v640
      %v833 = vsel %vm245, %v571, %v642
      %v834 = vsel %vm245, %v572, %v644
      %v835 = vsel %vm245, %v573, %v646
      %v836 = vsel %vm245, %v574, %v648
      %v837 = vsel %vm245, %v575, %v650
      %v838 = vsel %vm245, %v576, %v652
      %v839 = vsel %vm245, %v577, %v654
      %v840 = vsel %vm245, %v578, %v656
      %v841 = vsel %vm245, %v579, %v658
      %v842 = vsel %vm245, %v580, %v660
      %v843 = vsel %vm245, %v581, %v662
      %v844 = vsel %vm245, %v582, %v664
      %v845 = vsel %vm245, %v583, %v666
      %v846 = vsel %vm245, %v584, %v668
      %v847 = vsel %vm245, %v585, %v670
      %v848 = vsel %vm245, %v586, %v672
      %v849 = vsel %vm245, %v587, %v674
      %v850 = vsel %vm245, %v588, %v676
      %v851 = vsel %vm245, %v589, %v678
      %v852 = vsel %vm245, %v590, %v680
      %v853 = vsel %vm245, %v591, %v682
      %v854 = vsel %vm245, %v592, %v684
      %v855 = vsel %vm245, %v593, %v686
      %v856 = vsel %vm245, %v594, %v688
      %v857 = vsel %vm245, %v595, %v690
      %v858 = vsel %vm245, %v596, %v692
      %v859 = vsel %vm245, %v597, %v694
      %v860 = vsel %vm245, %v598, %v696
      %v861 = vsel %vm245, %v599, %v698
      %v862 = vsel %vm245, %v600, %v700
      %vm863 = vcmask 195584
      %v864 = vsel %vm863, %v831, %v736
      %v865 = vsel %vm863, %v832, %v738
      %v866 = vsel %vm863, %v833, %v740
      %v867 = vsel %vm863, %v834, %v742
      %v868 = vsel %vm863, %v835, %v744
      %v869 = vsel %vm863, %v836, %v746
      %v870 = vsel %vm863, %v837, %v748
      %v871 = vsel %vm863, %v838, %v750
      %v872 = vsel %vm863, %v839, %v752
      %v873 = vsel %vm863, %v840, %v754
      %v874 = vsel %vm863, %v841, %v756
      %v875 = vsel %vm863, %v842, %v758
      %v876 = vsel %vm863, %v843, %v760
      %v877 = vsel %vm863, %v844, %v762
      %v878 = vsel %vm863, %v845, %v764
      %v879 = vsel %vm863, %v846, %v766
      %v880 = vsel %vm863, %v847, %v768
      %v881 = vsel %vm863, %v848, %v770
      %v882 = vsel %vm863, %v849, %v772
      %v883 = vsel %vm863, %v850, %v774
      %v884 = vsel %vm863, %v851, %v776
      %v885 = vsel %vm863, %v852, %v778
      %v886 = vsel %vm863, %v853, %v780
      %v887 = vsel %vm863, %v854, %v782
      %v888 = vsel %vm863, %v855, %v784
      %v889 = vsel %vm863, %v856, %v786
      %v890 = vsel %vm863, %v857, %v788
      %v891 = vsel %vm863, %v858, %v790
      %v892 = vsel %vm863, %v859, %v792
      %v893 = vsel %vm863, %v860, %v794
      %v894 = vsel %vm863, %v861, %v796
      %v895 = vsel %vm863, %v862, %v798
      %vm896 = vcmask 293888
      %v897 = vsel %vm896, %v864, 0.0
      %v898 = vsel %vm896, %v865, 0.0
      %v899 = vsel %vm896, %v866, 0.0
      %v900 = vsel %vm896, %v867, 0.0
      %v901 = vsel %vm896, %v868, 0.0
      %v902 = vsel %vm896, %v869, 0.0
      %v903 = vsel %vm896, %v870, 0.0
      %v904 = vsel %vm896, %v871, 0.0
      %v905 = vsel %vm896, %v872, 0.0
      %v906 = vsel %vm896, %v873, 0.0
      %v907 = vsel %vm896, %v874, 0.0
      %v908 = vsel %vm896, %v875, 0.0
      %v909 = vsel %vm896, %v876, 0.0
      %v910 = vsel %vm896, %v877, 0.0
      %v911 = vsel %vm896, %v878, 0.0
      %v912 = vsel %vm896, %v879, 0.0
      %v913 = vsel %vm896, %v880, 0.0
      %v914 = vsel %vm896, %v881, 0.0
      %v915 = vsel %vm896, %v882, 0.0
      %v916 = vsel %vm896, %v883, 0.0
      %v917 = vsel %vm896, %v884, 0.0
      %v918 = vsel %vm896, %v885, 0.0
      %v919 = vsel %vm896, %v886, 0.0
      %v920 = vsel %vm896, %v887, 0.0
      %v921 = vsel %vm896, %v888, 0.0
      %v922 = vsel %vm896, %v889, 0.0
      %v923 = vsel %vm896, %v890, 0.0
      %v924 = vsel %vm896, %v891, 0.0
      %v925 = vsel %vm896, %v892, 0.0
      %v926 = vsel %vm896, %v893, 0.0
      %v927 = vsel %vm896, %v894, 0.0
      %v928 = vsel %vm896, %v895, 0.0
      %v929 = vld [vmem:[%s2] sm:$0xff]
      %v930 = vld [vmem:[%s2 + $0x8] sm:$0xff]
      %v931 = vld [vmem:[%s2 + $0x10] sm:$0xff]
      %v932 = vld [vmem:[%s2 + $0x18] sm:$0xff]
      %v933 = vld [vmem:[%s2 + $0x20] sm:$0xff]
      %v934 = vld [vmem:[%s2 + $0x28] sm:$0xff]
      %v935 = vld [vmem:[%s2 + $0x30] sm:$0xff]
      %v936 = vld [vmem:[%s2 + $0x38] sm:$0xff]
      %v937 = vld [vmem:[%s2 + $0x40] sm:$0xff]
      %v938 = vld [vmem:[%s2 + $0x48] sm:$0xff]
      %v939 = vld [vmem:[%s2 + $0x50] sm:$0xff]
      %v940 = vld [vmem:[%s2 + $0x58] sm:$0xff]
      %v941 = vld [vmem:[%s2 + $0x60] sm:$0xff]
      %v942 = vld [vmem:[%s2 + $0x68] sm:$0xff]
      %v943 = vld [vmem:[%s2 + $0x70] sm:$0xff]
      %v944 = vld [vmem:[%s2 + $0x78] sm:$0xff]
      %v945 = vld [vmem:[#allocation2 + $0x1] sm:$0xff]
      %v946 = vld [vmem:[#allocation2 + $0x9] sm:$0xff]
      %v947 = vld [vmem:[#allocation2 + $0x19] sm:$0xff]
      %v948 = vld [vmem:[#allocation2 + $0x21] sm:$0xff]
      %v949 = vld [vmem:[#allocation2 + $0x31] sm:$0xff]
      %v950 = vld [vmem:[#allocation2 + $0x39] sm:$0xff]
      %v951 = vld [vmem:[#allocation2 + $0x49] sm:$0xff]
      %v952 = vld [vmem:[#allocation2 + $0x51] sm:$0xff]
      %v953 = vld [vmem:[#allocation2 + $0x61] sm:$0xff]
      %v954 = vld [vmem:[#allocation2 + $0x69] sm:$0xff]
      %v955 = vld [vmem:[#allocation2 + $0x79] sm:$0xff]
      %v956 = vld [vmem:[#allocation2 + $0x81] sm:$0xff]
      %v957 = vld [vmem:[#allocation2 + $0x91] sm:$0xff]
      %v958 = vld [vmem:[#allocation2 + $0x99] sm:$0xff]
      %v959 = vld [vmem:[#allocation2 + $0xa9] sm:$0xff]
      %v960 = vld [vmem:[#allocation2 + $0xb1] sm:$0xff]
      %v961 = vld [vmem:[#allocation2 + $0xc1] sm:$0xff]
      %v962 = vld [vmem:[#allocation2 + $0xc9] sm:$0xff]
      %v963 = vld [vmem:[#allocation2 + $0xd9] sm:$0xff]
      %v964 = vld [vmem:[#allocation2 + $0xe1] sm:$0xff]
      %v965 = vld [vmem:[#allocation2 + $0xf1] sm:$0xff]
      %v966 = vld [vmem:[#allocation2 + $0xf9] sm:$0xff]
      %v967 = vld [vmem:[#allocation2 + $0x109] sm:$0xff]
      %v968 = vld [vmem:[#allocation2 + $0x111] sm:$0xff]
      %v969 = vld [vmem:[#allocation2 + $0x121] sm:$0xff]
      %v970 = vld [vmem:[#allocation2 + $0x129] sm:$0xff]
      %v971 = vld [vmem:[#allocation2 + $0x139] sm:$0xff]
      %v972 = vld [vmem:[#allocation2 + $0x141] sm:$0xff]
      %v973 = vld [vmem:[#allocation2 + $0x151] sm:$0xff]
      %v974 = vld [vmem:[#allocation2 + $0x159] sm:$0xff]
      %v975 = vld [vmem:[#allocation2 + $0x169] sm:$0xff]
      %v976 = vld [vmem:[#allocation2 + $0x171] sm:$0xff]
      %v977 = vld [vmem:[#allocation2 + $0x181] sm:$0xff]
      %v978 = vld [vmem:[#allocation2 + $0x189] sm:$0xff]
      %v979 = vld [vmem:[#allocation2 + $0x199] sm:$0xff]
      %v980 = vld [vmem:[#allocation2 + $0x1a1] sm:$0xff]
      %1013 = vrot.lane.b32.xlu0 %v947, 12
      %v1014 = vpop.permute.xlu0 %1013
      %1015 = vrot.lane.b32.xlu0 %v948, 12
      %v1016 = vpop.permute.xlu0 %1015
      %1017 = vrot.lane.b32.xlu0 %v949, 12
      %v1018 = vpop.permute.xlu0 %1017
      %1019 = vrot.lane.b32.xlu0 %v950, 12
      %v1020 = vpop.permute.xlu0 %1019
      %1021 = vrot.lane.b32.xlu0 %v951, 12
      %v1022 = vpop.permute.xlu0 %1021
      %1023 = vrot.lane.b32.xlu0 %v952, 12
      %v1024 = vpop.permute.xlu0 %1023
      %1025 = vrot.lane.b32.xlu0 %v953, 12
      %v1026 = vpop.permute.xlu0 %1025
      %1027 = vrot.lane.b32.xlu0 %v954, 12
      %v1028 = vpop.permute.xlu0 %1027
      %1029 = vrot.lane.b32.xlu0 %v955, 12
      %v1030 = vpop.permute.xlu0 %1029
      %1031 = vrot.lane.b32.xlu0 %v956, 12
      %v1032 = vpop.permute.xlu0 %1031
      %1033 = vrot.lane.b32.xlu0 %v957, 12
      %v1034 = vpop.permute.xlu0 %1033
      %1035 = vrot.lane.b32.xlu0 %v958, 12
      %v1036 = vpop.permute.xlu0 %1035
      %1037 = vrot.lane.b32.xlu0 %v959, 12
      %v1038 = vpop.permute.xlu0 %1037
      %1039 = vrot.lane.b32.xlu0 %v960, 12
      %v1040 = vpop.permute.xlu0 %1039
      %1041 = vrot.lane.b32.xlu0 %v961, 12
      %v1042 = vpop.permute.xlu0 %1041
      %1043 = vrot.lane.b32.xlu0 %v962, 12
      %v1044 = vpop.permute.xlu0 %1043
      %1045 = vrot.lane.b32.xlu0 %v963, 12
      %v1046 = vpop.permute.xlu0 %1045
      %1047 = vrot.lane.b32.xlu0 %v964, 12
      %v1048 = vpop.permute.xlu0 %1047
      %1049 = vrot.lane.b32.xlu0 %v965, 12
      %v1050 = vpop.permute.xlu0 %1049
      %1051 = vrot.lane.b32.xlu0 %v966, 12
      %v1052 = vpop.permute.xlu0 %1051
      %1053 = vrot.lane.b32.xlu0 %v967, 12
      %v1054 = vpop.permute.xlu0 %1053
      %1055 = vrot.lane.b32.xlu0 %v968, 12
      %v1056 = vpop.permute.xlu0 %1055
      %1057 = vrot.lane.b32.xlu0 %v969, 12
      %v1058 = vpop.permute.xlu0 %1057
      %1059 = vrot.lane.b32.xlu0 %v970, 12
      %v1060 = vpop.permute.xlu0 %1059
      %1061 = vrot.lane.b32.xlu0 %v971, 12
      %v1062 = vpop.permute.xlu0 %1061
      %1063 = vrot.lane.b32.xlu0 %v972, 12
      %v1064 = vpop.permute.xlu0 %1063
      %1065 = vrot.lane.b32.xlu0 %v973, 12
      %v1066 = vpop.permute.xlu0 %1065
      %1067 = vrot.lane.b32.xlu0 %v974, 12
      %v1068 = vpop.permute.xlu0 %1067
      %1069 = vrot.lane.b32.xlu0 %v975, 12
      %v1070 = vpop.permute.xlu0 %1069
      %1071 = vrot.lane.b32.xlu0 %v976, 12
      %v1072 = vpop.permute.xlu0 %1071
      %1073 = vrot.lane.b32.xlu0 %v977, 12
      %v1074 = vpop.permute.xlu0 %1073
      %1075 = vrot.lane.b32.xlu0 %v978, 12
      %v1076 = vpop.permute.xlu0 %1075
      %1111 = vrot.lane.b32.xlu0 %v949, 24
      %v1112 = vpop.permute.xlu0 %1111
      %1113 = vrot.lane.b32.xlu0 %v950, 24
      %v1114 = vpop.permute.xlu0 %1113
      %1115 = vrot.lane.b32.xlu0 %v951, 24
      %v1116 = vpop.permute.xlu0 %1115
      %1117 = vrot.lane.b32.xlu0 %v952, 24
      %v1118 = vpop.permute.xlu0 %1117
      %1119 = vrot.lane.b32.xlu0 %v953, 24
      %v1120 = vpop.permute.xlu0 %1119
      %1121 = vrot.lane.b32.xlu0 %v954, 24
      %v1122 = vpop.permute.xlu0 %1121
      %1123 = vrot.lane.b32.xlu0 %v955, 24
      %v1124 = vpop.permute.xlu0 %1123
      %1125 = vrot.lane.b32.xlu0 %v956, 24
      %v1126 = vpop.permute.xlu0 %1125
      %1127 = vrot.lane.b32.xlu0 %v957, 24
      %v1128 = vpop.permute.xlu0 %1127
      %1129 = vrot.lane.b32.xlu0 %v958, 24
      %v1130 = vpop.permute.xlu0 %1129
      %1131 = vrot.lane.b32.xlu0 %v959, 24
      %v1132 = vpop.permute.xlu0 %1131
      %1133 = vrot.lane.b32.xlu0 %v960, 24
      %v1134 = vpop.permute.xlu0 %1133
      %1135 = vrot.lane.b32.xlu0 %v961, 24
      %v1136 = vpop.permute.xlu0 %1135
      %1137 = vrot.lane.b32.xlu0 %v962, 24
      %v1138 = vpop.permute.xlu0 %1137
      %1139 = vrot.lane.b32.xlu0 %v963, 24
      %v1140 = vpop.permute.xlu0 %1139
      %1141 = vrot.lane.b32.xlu0 %v964, 24
      %v1142 = vpop.permute.xlu0 %1141
      %1143 = vrot.lane.b32.xlu0 %v965, 24
      %v1144 = vpop.permute.xlu0 %1143
      %1145 = vrot.lane.b32.xlu0 %v966, 24
      %v1146 = vpop.permute.xlu0 %1145
      %1147 = vrot.lane.b32.xlu0 %v967, 24
      %v1148 = vpop.permute.xlu0 %1147
      %1149 = vrot.lane.b32.xlu0 %v968, 24
      %v1150 = vpop.permute.xlu0 %1149
      %1151 = vrot.lane.b32.xlu0 %v969, 24
      %v1152 = vpop.permute.xlu0 %1151
      %1153 = vrot.lane.b32.xlu0 %v970, 24
      %v1154 = vpop.permute.xlu0 %1153
      %1155 = vrot.lane.b32.xlu0 %v971, 24
      %v1156 = vpop.permute.xlu0 %1155
      %1157 = vrot.lane.b32.xlu0 %v972, 24
      %v1158 = vpop.permute.xlu0 %1157
      %1159 = vrot.lane.b32.xlu0 %v973, 24
      %v1160 = vpop.permute.xlu0 %1159
      %1161 = vrot.lane.b32.xlu0 %v974, 24
      %v1162 = vpop.permute.xlu0 %1161
      %1163 = vrot.lane.b32.xlu0 %v975, 24
      %v1164 = vpop.permute.xlu0 %1163
      %1165 = vrot.lane.b32.xlu0 %v976, 24
      %v1166 = vpop.permute.xlu0 %1165
      %1167 = vrot.lane.b32.xlu0 %v977, 24
      %v1168 = vpop.permute.xlu0 %1167
      %1169 = vrot.lane.b32.xlu0 %v978, 24
      %v1170 = vpop.permute.xlu0 %1169
      %1171 = vrot.lane.b32.xlu0 %v979, 24
      %v1172 = vpop.permute.xlu0 %1171
      %1173 = vrot.lane.b32.xlu0 %v980, 24
      %v1174 = vpop.permute.xlu0 %1173
      %v1207 = vsel %vm245, %v945, %v1014
      %v1208 = vsel %vm245, %v946, %v1016
      %v1209 = vsel %vm245, %v947, %v1018
      %v1210 = vsel %vm245, %v948, %v1020
      %v1211 = vsel %vm245, %v949, %v1022
      %v1212 = vsel %vm245, %v950, %v1024
      %v1213 = vsel %vm245, %v951, %v1026
      %v1214 = vsel %vm245, %v952, %v1028
      %v1215 = vsel %vm245, %v953, %v1030
      %v1216 = vsel %vm245, %v954, %v1032
      %v1217 = vsel %vm245, %v955, %v1034
      %v1218 = vsel %vm245, %v956, %v1036
      %v1219 = vsel %vm245, %v957, %v1038
      %v1220 = vsel %vm245, %v958, %v1040
      %v1221 = vsel %vm245, %v959, %v1042
      %v1222 = vsel %vm245, %v960, %v1044
      %v1223 = vsel %vm245, %v961, %v1046
      %v1224 = vsel %vm245, %v962, %v1048
      %v1225 = vsel %vm245, %v963, %v1050
      %v1226 = vsel %vm245, %v964, %v1052
      %v1227 = vsel %vm245, %v965, %v1054
      %v1228 = vsel %vm245, %v966, %v1056
      %v1229 = vsel %vm245, %v967, %v1058
      %v1230 = vsel %vm245, %v968, %v1060
      %v1231 = vsel %vm245, %v969, %v1062
      %v1232 = vsel %vm245, %v970, %v1064
      %v1233 = vsel %vm245, %v971, %v1066
      %v1234 = vsel %vm245, %v972, %v1068
      %v1235 = vsel %vm245, %v973, %v1070
      %v1236 = vsel %vm245, %v974, %v1072
      %v1237 = vsel %vm245, %v975, %v1074
      %v1238 = vsel %vm245, %v976, %v1076
      %v1239 = vsel %vm863, %v1207, %v1112
      %v1240 = vsel %vm863, %v1208, %v1114
      %v1241 = vsel %vm863, %v1209, %v1116
      %v1242 = vsel %vm863, %v1210, %v1118
      %v1243 = vsel %vm863, %v1211, %v1120
      %v1244 = vsel %vm863, %v1212, %v1122
      %v1245 = vsel %vm863, %v1213, %v1124
      %v1246 = vsel %vm863, %v1214, %v1126
      %v1247 = vsel %vm863, %v1215, %v1128
      %v1248 = vsel %vm863, %v1216, %v1130
      %v1249 = vsel %vm863, %v1217, %v1132
      %v1250 = vsel %vm863, %v1218, %v1134
      %v1251 = vsel %vm863, %v1219, %v1136
      %v1252 = vsel %vm863, %v1220, %v1138
      %v1253 = vsel %vm863, %v1221, %v1140
      %v1254 = vsel %vm863, %v1222, %v1142
      %v1255 = vsel %vm863, %v1223, %v1144
      %v1256 = vsel %vm863, %v1224, %v1146
      %v1257 = vsel %vm863, %v1225, %v1148
      %v1258 = vsel %vm863, %v1226, %v1150
      %v1259 = vsel %vm863, %v1227, %v1152
      %v1260 = vsel %vm863, %v1228, %v1154
      %v1261 = vsel %vm863, %v1229, %v1156
      %v1262 = vsel %vm863, %v1230, %v1158
      %v1263 = vsel %vm863, %v1231, %v1160
      %v1264 = vsel %vm863, %v1232, %v1162
      %v1265 = vsel %vm863, %v1233, %v1164
      %v1266 = vsel %vm863, %v1234, %v1166
      %v1267 = vsel %vm863, %v1235, %v1168
      %v1268 = vsel %vm863, %v1236, %v1170
      %v1269 = vsel %vm863, %v1237, %v1172
      %v1270 = vsel %vm863, %v1238, %v1174
      %v1271 = vsel %vm896, %v1239, 0.0
      %v1272 = vsel %vm896, %v1240, 0.0
      %v1273 = vsel %vm896, %v1241, 0.0
      %v1274 = vsel %vm896, %v1242, 0.0
      %v1275 = vsel %vm896, %v1243, 0.0
      %v1276 = vsel %vm896, %v1244, 0.0
      %v1277 = vsel %vm896, %v1245, 0.0
      %v1278 = vsel %vm896, %v1246, 0.0
      %v1279 = vsel %vm896, %v1247, 0.0
      %v1280 = vsel %vm896, %v1248, 0.0
      %v1281 = vsel %vm896, %v1249, 0.0
      %v1282 = vsel %vm896, %v1250, 0.0
      %v1283 = vsel %vm896, %v1251, 0.0
      %v1284 = vsel %vm896, %v1252, 0.0
      %v1285 = vsel %vm896, %v1253, 0.0
      %v1286 = vsel %vm896, %v1254, 0.0
      %v1287 = vsel %vm896, %v1255, 0.0
      %v1288 = vsel %vm896, %v1256, 0.0
      %v1289 = vsel %vm896, %v1257, 0.0
      %v1290 = vsel %vm896, %v1258, 0.0
      %v1291 = vsel %vm896, %v1259, 0.0
      %v1292 = vsel %vm896, %v1260, 0.0
      %v1293 = vsel %vm896, %v1261, 0.0
      %v1294 = vsel %vm896, %v1262, 0.0
      %v1295 = vsel %vm896, %v1263, 0.0
      %v1296 = vsel %vm896, %v1264, 0.0
      %v1297 = vsel %vm896, %v1265, 0.0
      %v1298 = vsel %vm896, %v1266, 0.0
      %v1299 = vsel %vm896, %v1267, 0.0
      %v1300 = vsel %vm896, %v1268, 0.0
      %v1301 = vsel %vm896, %v1269, 0.0
      %v1302 = vsel %vm896, %v1270, 0.0
      %s1303 = scalar_lea.vmem %s2, 128
      %v1304 = vld [vmem:[%s1303] sm:$0xff]
      %v1305 = vld [vmem:[%s1303 + $0x8] sm:$0xff]
      %v1306 = vld [vmem:[%s1303 + $0x10] sm:$0xff]
      %v1307 = vld [vmem:[%s1303 + $0x18] sm:$0xff]
      %v1308 = vld [vmem:[%s1303 + $0x20] sm:$0xff]
      %v1309 = vld [vmem:[%s1303 + $0x28] sm:$0xff]
      %v1310 = vld [vmem:[%s1303 + $0x30] sm:$0xff]
      %v1311 = vld [vmem:[%s1303 + $0x38] sm:$0xff]
      %v1312 = vld [vmem:[%s1303 + $0x40] sm:$0xff]
      %v1313 = vld [vmem:[%s1303 + $0x48] sm:$0xff]
      %v1314 = vld [vmem:[%s1303 + $0x50] sm:$0xff]
      %v1315 = vld [vmem:[%s1303 + $0x58] sm:$0xff]
      %v1316 = vld [vmem:[%s1303 + $0x60] sm:$0xff]
      %v1317 = vld [vmem:[%s1303 + $0x68] sm:$0xff]
      %v1318 = vld [vmem:[%s1303 + $0x70] sm:$0xff]
      %v1319 = vld [vmem:[%s1303 + $0x78] sm:$0xff]
      %1320 = vmatpush.msra.mxu0 %v1319
      %1321 = vmatpush.msra.mxu0 %v1318
      %1322 = vmatpush.msra.mxu0 %v1317
      %1323 = vmatpush.msra.mxu0 %v1316
      %1324 = vmatpush.msra.mxu0 %v1315
      %1325 = vmatpush.msra.mxu0 %v1314
      %1326 = vmatpush.msra.mxu0 %v1313
      %1327 = vmatpush.msra.mxu0 %v1312
      %1328 = vmatpush.msra.mxu0 %v1311
      %1329 = vmatpush.msra.mxu0 %v1310
      %1330 = vmatpush.msra.mxu0 %v1309
      %1331 = vmatpush.msra.mxu0 %v1308
      %1332 = vmatpush.msra.mxu0 %v1307
      %1333 = vmatpush.msra.mxu0 %v1306
      %1334 = vmatpush.msra.mxu0 %v1305
      %1335 = vmatpush.msra.mxu0 %v1304
      %1336 = vmatmul.f32.gmra.mxu0 %v1271
      %v1337 = vpop.f32.mrf.mxu0
      %v1338 = vadd.f32 0.0, %v1337
      %1339 = vmatmul.f32.gmra.mxu0 %v1272
      %v1340 = vpop.f32.mrf.mxu0
      %v1341 = vadd.f32 0.0, %v1340
      %1342 = vmatmul.f32.gmra.mxu0 %v1273
      %v1343 = vpop.f32.mrf.mxu0
      %v1344 = vadd.f32 0.0, %v1343
      %1345 = vmatmul.f32.gmra.mxu0 %v1274
      %v1346 = vpop.f32.mrf.mxu0
      %v1347 = vadd.f32 0.0, %v1346
      %1348 = vmatmul.f32.gmra.mxu0 %v1275
      %v1349 = vpop.f32.mrf.mxu0
      %v1350 = vadd.f32 0.0, %v1349
      %1351 = vmatmul.f32.gmra.mxu0 %v1276
      %v1352 = vpop.f32.mrf.mxu0
      %v1353 = vadd.f32 0.0, %v1352
      %1354 = vmatmul.f32.gmra.mxu0 %v1277
      %v1355 = vpop.f32.mrf.mxu0
      %v1356 = vadd.f32 0.0, %v1355
      %1357 = vmatmul.f32.gmra.mxu0 %v1278
      %v1358 = vpop.f32.mrf.mxu0
      %v1359 = vadd.f32 0.0, %v1358
      %1360 = vmatmul.f32.gmra.mxu0 %v1279
      %v1361 = vpop.f32.mrf.mxu0
      %v1362 = vadd.f32 0.0, %v1361
      %1363 = vmatmul.f32.gmra.mxu0 %v1280
      %v1364 = vpop.f32.mrf.mxu0
      %v1365 = vadd.f32 0.0, %v1364
      %1366 = vmatmul.f32.gmra.mxu0 %v1281
      %v1367 = vpop.f32.mrf.mxu0
      %v1368 = vadd.f32 0.0, %v1367
      %1369 = vmatmul.f32.gmra.mxu0 %v1282
      %v1370 = vpop.f32.mrf.mxu0
      %v1371 = vadd.f32 0.0, %v1370
      %1372 = vmatmul.f32.gmra.mxu0 %v1283
      %v1373 = vpop.f32.mrf.mxu0
      %v1374 = vadd.f32 0.0, %v1373
      %1375 = vmatmul.f32.gmra.mxu0 %v1284
      %v1376 = vpop.f32.mrf.mxu0
      %v1377 = vadd.f32 0.0, %v1376
      %1378 = vmatmul.f32.gmra.mxu0 %v1285
      %v1379 = vpop.f32.mrf.mxu0
      %v1380 = vadd.f32 0.0, %v1379
      %1381 = vmatmul.f32.gmra.mxu0 %v1286
      %v1382 = vpop.f32.mrf.mxu0
      %v1383 = vadd.f32 0.0, %v1382
      %1384 = vmatmul.f32.gmra.mxu0 %v1287
      %v1385 = vpop.f32.mrf.mxu0
      %v1386 = vadd.f32 0.0, %v1385
      %1387 = vmatmul.f32.gmra.mxu0 %v1288
      %v1388 = vpop.f32.mrf.mxu0
      %v1389 = vadd.f32 0.0, %v1388
      %1390 = vmatmul.f32.gmra.mxu0 %v1289
      %v1391 = vpop.f32.mrf.mxu0
      %v1392 = vadd.f32 0.0, %v1391
      %1393 = vmatmul.f32.gmra.mxu0 %v1290
      %v1394 = vpop.f32.mrf.mxu0
      %v1395 = vadd.f32 0.0, %v1394
      %1396 = vmatmul.f32.gmra.mxu0 %v1291
      %v1397 = vpop.f32.mrf.mxu0
      %v1398 = vadd.f32 0.0, %v1397
      %1399 = vmatmul.f32.gmra.mxu0 %v1292
      %v1400 = vpop.f32.mrf.mxu0
      %v1401 = vadd.f32 0.0, %v1400
      %1402 = vmatmul.f32.gmra.mxu0 %v1293
      %v1403 = vpop.f32.mrf.mxu0
      %v1404 = vadd.f32 0.0, %v1403
      %1405 = vmatmul.f32.gmra.mxu0 %v1294
      %v1406 = vpop.f32.mrf.mxu0
      %v1407 = vadd.f32 0.0, %v1406
      %1408 = vmatmul.f32.gmra.mxu0 %v1295
      %v1409 = vpop.f32.mrf.mxu0
      %v1410 = vadd.f32 0.0, %v1409
      %1411 = vmatmul.f32.gmra.mxu0 %v1296
      %v1412 = vpop.f32.mrf.mxu0
      %v1413 = vadd.f32 0.0, %v1412
      %1414 = vmatmul.f32.gmra.mxu0 %v1297
      %v1415 = vpop.f32.mrf.mxu0
      %v1416 = vadd.f32 0.0, %v1415
      %1417 = vmatmul.f32.gmra.mxu0 %v1298
      %v1418 = vpop.f32.mrf.mxu0
      %v1419 = vadd.f32 0.0, %v1418
      %1420 = vmatmul.f32.gmra.mxu0 %v1299
      %v1421 = vpop.f32.mrf.mxu0
      %v1422 = vadd.f32 0.0, %v1421
      %1423 = vmatmul.f32.gmra.mxu0 %v1300
      %v1424 = vpop.f32.mrf.mxu0
      %v1425 = vadd.f32 0.0, %v1424
      %1426 = vmatmul.f32.gmra.mxu0 %v1301
      %v1427 = vpop.f32.mrf.mxu0
      %v1428 = vadd.f32 0.0, %v1427
      %1429 = vmatmul.f32.gmra.mxu0 %v1302
      %v1430 = vpop.f32.mrf.mxu0
      %v1431 = vadd.f32 0.0, %v1430
      %1432 = vdwg.mxu0
      %1433 = vmatpush.msra.mxu0 %v944
      %1434 = vmatpush.msra.mxu0 %v943
      %1435 = vmatpush.msra.mxu0 %v942
      %1436 = vmatpush.msra.mxu0 %v941
      %1437 = vmatpush.msra.mxu0 %v940
      %1438 = vmatpush.msra.mxu0 %v939
      %1439 = vmatpush.msra.mxu0 %v938
      %1440 = vmatpush.msra.mxu0 %v937
      %1441 = vmatpush.msra.mxu0 %v936
      %1442 = vmatpush.msra.mxu0 %v935
      %1443 = vmatpush.msra.mxu0 %v934
      %1444 = vmatpush.msra.mxu0 %v933
      %1445 = vmatpush.msra.mxu0 %v932
      %1446 = vmatpush.msra.mxu0 %v931
      %1447 = vmatpush.msra.mxu0 %v930
      %1448 = vmatpush.msra.mxu0 %v929
      %1449 = vmatmul.f32.gmra.mxu0 %v897
      %v1450 = vpop.f32.mrf.mxu0
      %v1451 = vadd.f32 %v1338, %v1450
      %1452 = vmatmul.f32.gmra.mxu0 %v898
      %v1453 = vpop.f32.mrf.mxu0
      %v1454 = vadd.f32 %v1341, %v1453
      %1455 = vmatmul.f32.gmra.mxu0 %v899
      %v1456 = vpop.f32.mrf.mxu0
      %v1457 = vadd.f32 %v1344, %v1456
      %1458 = vmatmul.f32.gmra.mxu0 %v900
      %v1459 = vpop.f32.mrf.mxu0
      %v1460 = vadd.f32 %v1347, %v1459
      %1461 = vmatmul.f32.gmra.mxu0 %v901
      %v1462 = vpop.f32.mrf.mxu0
      %v1463 = vadd.f32 %v1350, %v1462
      %1464 = vmatmul.f32.gmra.mxu0 %v902
      %v1465 = vpop.f32.mrf.mxu0
      %v1466 = vadd.f32 %v1353, %v1465
      %1467 = vmatmul.f32.gmra.mxu0 %v903
      %v1468 = vpop.f32.mrf.mxu0
      %v1469 = vadd.f32 %v1356, %v1468
      %1470 = vmatmul.f32.gmra.mxu0 %v904
      %v1471 = vpop.f32.mrf.mxu0
      %v1472 = vadd.f32 %v1359, %v1471
      %1473 = vmatmul.f32.gmra.mxu0 %v905
      %v1474 = vpop.f32.mrf.mxu0
      %v1475 = vadd.f32 %v1362, %v1474
      %1476 = vmatmul.f32.gmra.mxu0 %v906
      %v1477 = vpop.f32.mrf.mxu0
      %v1478 = vadd.f32 %v1365, %v1477
      %1479 = vmatmul.f32.gmra.mxu0 %v907
      %v1480 = vpop.f32.mrf.mxu0
      %v1481 = vadd.f32 %v1368, %v1480
      %1482 = vmatmul.f32.gmra.mxu0 %v908
      %v1483 = vpop.f32.mrf.mxu0
      %v1484 = vadd.f32 %v1371, %v1483
      %1485 = vmatmul.f32.gmra.mxu0 %v909
      %v1486 = vpop.f32.mrf.mxu0
      %v1487 = vadd.f32 %v1374, %v1486
      %1488 = vmatmul.f32.gmra.mxu0 %v910
      %v1489 = vpop.f32.mrf.mxu0
      %v1490 = vadd.f32 %v1377, %v1489
      %1491 = vmatmul.f32.gmra.mxu0 %v911
      %v1492 = vpop.f32.mrf.mxu0
      %v1493 = vadd.f32 %v1380, %v1492
      %1494 = vmatmul.f32.gmra.mxu0 %v912
      %v1495 = vpop.f32.mrf.mxu0
      %v1496 = vadd.f32 %v1383, %v1495
      %1497 = vmatmul.f32.gmra.mxu0 %v913
      %v1498 = vpop.f32.mrf.mxu0
      %v1499 = vadd.f32 %v1386, %v1498
      %1500 = vmatmul.f32.gmra.mxu0 %v914
      %v1501 = vpop.f32.mrf.mxu0
      %v1502 = vadd.f32 %v1389, %v1501
      %1503 = vmatmul.f32.gmra.mxu0 %v915
      %v1504 = vpop.f32.mrf.mxu0
      %v1505 = vadd.f32 %v1392, %v1504
      %1506 = vmatmul.f32.gmra.mxu0 %v916
      %v1507 = vpop.f32.mrf.mxu0
      %v1508 = vadd.f32 %v1395, %v1507
      %1509 = vmatmul.f32.gmra.mxu0 %v917
      %v1510 = vpop.f32.mrf.mxu0
      %v1511 = vadd.f32 %v1398, %v1510
      %1512 = vmatmul.f32.gmra.mxu0 %v918
      %v1513 = vpop.f32.mrf.mxu0
      %v1514 = vadd.f32 %v1401, %v1513
      %1515 = vmatmul.f32.gmra.mxu0 %v919
      %v1516 = vpop.f32.mrf.mxu0
      %v1517 = vadd.f32 %v1404, %v1516
      %1518 = vmatmul.f32.gmra.mxu0 %v920
      %v1519 = vpop.f32.mrf.mxu0
      %v1520 = vadd.f32 %v1407, %v1519
      %1521 = vmatmul.f32.gmra.mxu0 %v921
      %v1522 = vpop.f32.mrf.mxu0
      %v1523 = vadd.f32 %v1410, %v1522
      %1524 = vmatmul.f32.gmra.mxu0 %v922
      %v1525 = vpop.f32.mrf.mxu0
      %v1526 = vadd.f32 %v1413, %v1525
      %1527 = vmatmul.f32.gmra.mxu0 %v923
      %v1528 = vpop.f32.mrf.mxu0
      %v1529 = vadd.f32 %v1416, %v1528
      %1530 = vmatmul.f32.gmra.mxu0 %v924
      %v1531 = vpop.f32.mrf.mxu0
      %v1532 = vadd.f32 %v1419, %v1531
      %1533 = vmatmul.f32.gmra.mxu0 %v925
      %v1534 = vpop.f32.mrf.mxu0
      %v1535 = vadd.f32 %v1422, %v1534
      %1536 = vmatmul.f32.gmra.mxu0 %v926
      %v1537 = vpop.f32.mrf.mxu0
      %v1538 = vadd.f32 %v1425, %v1537
      %1539 = vmatmul.f32.gmra.mxu0 %v927
      %v1540 = vpop.f32.mrf.mxu0
      %v1541 = vadd.f32 %v1428, %v1540
      %1542 = vmatmul.f32.gmra.mxu0 %v928
      %v1543 = vpop.f32.mrf.mxu0
      %v1544 = vadd.f32 %v1431, %v1543
      %1545 = vdwg.mxu0
      %v1546 = vld [vmem:[#allocation2 + $0x2] sm:$0xff]
      %v1547 = vld [vmem:[#allocation2 + $0xa] sm:$0xff]
      %v1548 = vld [vmem:[#allocation2 + $0x1a] sm:$0xff]
      %v1549 = vld [vmem:[#allocation2 + $0x22] sm:$0xff]
      %v1550 = vld [vmem:[#allocation2 + $0x32] sm:$0xff]
      %v1551 = vld [vmem:[#allocation2 + $0x3a] sm:$0xff]
      %v1552 = vld [vmem:[#allocation2 + $0x4a] sm:$0xff]
      %v1553 = vld [vmem:[#allocation2 + $0x52] sm:$0xff]
      %v1554 = vld [vmem:[#allocation2 + $0x62] sm:$0xff]
      %v1555 = vld [vmem:[#allocation2 + $0x6a] sm:$0xff]
      %v1556 = vld [vmem:[#allocation2 + $0x7a] sm:$0xff]
      %v1557 = vld [vmem:[#allocation2 + $0x82] sm:$0xff]
      %v1558 = vld [vmem:[#allocation2 + $0x92] sm:$0xff]
      %v1559 = vld [vmem:[#allocation2 + $0x9a] sm:$0xff]
      %v1560 = vld [vmem:[#allocation2 + $0xaa] sm:$0xff]
      %v1561 = vld [vmem:[#allocation2 + $0xb2] sm:$0xff]
      %v1562 = vld [vmem:[#allocation2 + $0xc2] sm:$0xff]
      %v1563 = vld [vmem:[#allocation2 + $0xca] sm:$0xff]
      %v1564 = vld [vmem:[#allocation2 + $0xda] sm:$0xff]
      %v1565 = vld [vmem:[#allocation2 + $0xe2] sm:$0xff]
      %v1566 = vld [vmem:[#allocation2 + $0xf2] sm:$0xff]
      %v1567 = vld [vmem:[#allocation2 + $0xfa] sm:$0xff]
      %v1568 = vld [vmem:[#allocation2 + $0x10a] sm:$0xff]
      %v1569 = vld [vmem:[#allocation2 + $0x112] sm:$0xff]
      %v1570 = vld [vmem:[#allocation2 + $0x122] sm:$0xff]
      %v1571 = vld [vmem:[#allocation2 + $0x12a] sm:$0xff]
      %v1572 = vld [vmem:[#allocation2 + $0x13a] sm:$0xff]
      %v1573 = vld [vmem:[#allocation2 + $0x142] sm:$0xff]
      %v1574 = vld [vmem:[#allocation2 + $0x152] sm:$0xff]
      %v1575 = vld [vmem:[#allocation2 + $0x15a] sm:$0xff]
      %v1576 = vld [vmem:[#allocation2 + $0x16a] sm:$0xff]
      %v1577 = vld [vmem:[#allocation2 + $0x172] sm:$0xff]
      %v1578 = vld [vmem:[#allocation2 + $0x182] sm:$0xff]
      %v1579 = vld [vmem:[#allocation2 + $0x18a] sm:$0xff]
      %v1580 = vld [vmem:[#allocation2 + $0x19a] sm:$0xff]
      %v1581 = vld [vmem:[#allocation2 + $0x1a2] sm:$0xff]
      %1614 = vrot.lane.b32.xlu0 %v1548, 12
      %v1615 = vpop.permute.xlu0 %1614
      %1616 = vrot.lane.b32.xlu0 %v1549, 12
      %v1617 = vpop.permute.xlu0 %1616
      %1618 = vrot.lane.b32.xlu0 %v1550, 12
      %v1619 = vpop.permute.xlu0 %1618
      %1620 = vrot.lane.b32.xlu0 %v1551, 12
      %v1621 = vpop.permute.xlu0 %1620
      %1622 = vrot.lane.b32.xlu0 %v1552, 12
      %v1623 = vpop.permute.xlu0 %1622
      %1624 = vrot.lane.b32.xlu0 %v1553, 12
      %v1625 = vpop.permute.xlu0 %1624
      %1626 = vrot.lane.b32.xlu0 %v1554, 12
      %v1627 = vpop.permute.xlu0 %1626
      %1628 = vrot.lane.b32.xlu0 %v1555, 12
      %v1629 = vpop.permute.xlu0 %1628
      %1630 = vrot.lane.b32.xlu0 %v1556, 12
      %v1631 = vpop.permute.xlu0 %1630
      %1632 = vrot.lane.b32.xlu0 %v1557, 12
      %v1633 = vpop.permute.xlu0 %1632
      %1634 = vrot.lane.b32.xlu0 %v1558, 12
      %v1635 = vpop.permute.xlu0 %1634
      %1636 = vrot.lane.b32.xlu0 %v1559, 12
      %v1637 = vpop.permute.xlu0 %1636
      %1638 = vrot.lane.b32.xlu0 %v1560, 12
      %v1639 = vpop.permute.xlu0 %1638
      %1640 = vrot.lane.b32.xlu0 %v1561, 12
      %v1641 = vpop.permute.xlu0 %1640
      %1642 = vrot.lane.b32.xlu0 %v1562, 12
      %v1643 = vpop.permute.xlu0 %1642
      %1644 = vrot.lane.b32.xlu0 %v1563, 12
      %v1645 = vpop.permute.xlu0 %1644
      %1646 = vrot.lane.b32.xlu0 %v1564, 12
      %v1647 = vpop.permute.xlu0 %1646
      %1648 = vrot.lane.b32.xlu0 %v1565, 12
      %v1649 = vpop.permute.xlu0 %1648
      %1650 = vrot.lane.b32.xlu0 %v1566, 12
      %v1651 = vpop.permute.xlu0 %1650
      %1652 = vrot.lane.b32.xlu0 %v1567, 12
      %v1653 = vpop.permute.xlu0 %1652
      %1654 = vrot.lane.b32.xlu0 %v1568, 12
      %v1655 = vpop.permute.xlu0 %1654
      %1656 = vrot.lane.b32.xlu0 %v1569, 12
      %v1657 = vpop.permute.xlu0 %1656
      %1658 = vrot.lane.b32.xlu0 %v1570, 12
      %v1659 = vpop.permute.xlu0 %1658
      %1660 = vrot.lane.b32.xlu0 %v1571, 12
      %v1661 = vpop.permute.xlu0 %1660
      %1662 = vrot.lane.b32.xlu0 %v1572, 12
      %v1663 = vpop.permute.xlu0 %1662
      %1664 = vrot.lane.b32.xlu0 %v1573, 12
      %v1665 = vpop.permute.xlu0 %1664
      %1666 = vrot.lane.b32.xlu0 %v1574, 12
      %v1667 = vpop.permute.xlu0 %1666
      %1668 = vrot.lane.b32.xlu0 %v1575, 12
      %v1669 = vpop.permute.xlu0 %1668
      %1670 = vrot.lane.b32.xlu0 %v1576, 12
      %v1671 = vpop.permute.xlu0 %1670
      %1672 = vrot.lane.b32.xlu0 %v1577, 12
      %v1673 = vpop.permute.xlu0 %1672
      %1674 = vrot.lane.b32.xlu0 %v1578, 12
      %v1675 = vpop.permute.xlu0 %1674
      %1676 = vrot.lane.b32.xlu0 %v1579, 12
      %v1677 = vpop.permute.xlu0 %1676
      %1712 = vrot.lane.b32.xlu0 %v1550, 24
      %v1713 = vpop.permute.xlu0 %1712
      %1714 = vrot.lane.b32.xlu0 %v1551, 24
      %v1715 = vpop.permute.xlu0 %1714
      %1716 = vrot.lane.b32.xlu0 %v1552, 24
      %v1717 = vpop.permute.xlu0 %1716
      %1718 = vrot.lane.b32.xlu0 %v1553, 24
      %v1719 = vpop.permute.xlu0 %1718
      %1720 = vrot.lane.b32.xlu0 %v1554, 24
      %v1721 = vpop.permute.xlu0 %1720
      %1722 = vrot.lane.b32.xlu0 %v1555, 24
      %v1723 = vpop.permute.xlu0 %1722
      %1724 = vrot.lane.b32.xlu0 %v1556, 24
      %v1725 = vpop.permute.xlu0 %1724
      %1726 = vrot.lane.b32.xlu0 %v1557, 24
      %v1727 = vpop.permute.xlu0 %1726
      %1728 = vrot.lane.b32.xlu0 %v1558, 24
      %v1729 = vpop.permute.xlu0 %1728
      %1730 = vrot.lane.b32.xlu0 %v1559, 24
      %v1731 = vpop.permute.xlu0 %1730
      %1732 = vrot.lane.b32.xlu0 %v1560, 24
      %v1733 = vpop.permute.xlu0 %1732
      %1734 = vrot.lane.b32.xlu0 %v1561, 24
      %v1735 = vpop.permute.xlu0 %1734
      %1736 = vrot.lane.b32.xlu0 %v1562, 24
      %v1737 = vpop.permute.xlu0 %1736
      %1738 = vrot.lane.b32.xlu0 %v1563, 24
      %v1739 = vpop.permute.xlu0 %1738
      %1740 = vrot.lane.b32.xlu0 %v1564, 24
      %v1741 = vpop.permute.xlu0 %1740
      %1742 = vrot.lane.b32.xlu0 %v1565, 24
      %v1743 = vpop.permute.xlu0 %1742
      %1744 = vrot.lane.b32.xlu0 %v1566, 24
      %v1745 = vpop.permute.xlu0 %1744
      %1746 = vrot.lane.b32.xlu0 %v1567, 24
      %v1747 = vpop.permute.xlu0 %1746
      %1748 = vrot.lane.b32.xlu0 %v1568, 24
      %v1749 = vpop.permute.xlu0 %1748
      %1750 = vrot.lane.b32.xlu0 %v1569, 24
      %v1751 = vpop.permute.xlu0 %1750
      %1752 = vrot.lane.b32.xlu0 %v1570, 24
      %v1753 = vpop.permute.xlu0 %1752
      %1754 = vrot.lane.b32.xlu0 %v1571, 24
      %v1755 = vpop.permute.xlu0 %1754
      %1756 = vrot.lane.b32.xlu0 %v1572, 24
      %v1757 = vpop.permute.xlu0 %1756
      %1758 = vrot.lane.b32.xlu0 %v1573, 24
      %v1759 = vpop.permute.xlu0 %1758
      %1760 = vrot.lane.b32.xlu0 %v1574, 24
      %v1761 = vpop.permute.xlu0 %1760
      %1762 = vrot.lane.b32.xlu0 %v1575, 24
      %v1763 = vpop.permute.xlu0 %1762
      %1764 = vrot.lane.b32.xlu0 %v1576, 24
      %v1765 = vpop.permute.xlu0 %1764
      %1766 = vrot.lane.b32.xlu0 %v1577, 24
      %v1767 = vpop.permute.xlu0 %1766
      %1768 = vrot.lane.b32.xlu0 %v1578, 24
      %v1769 = vpop.permute.xlu0 %1768
      %1770 = vrot.lane.b32.xlu0 %v1579, 24
      %v1771 = vpop.permute.xlu0 %1770
      %1772 = vrot.lane.b32.xlu0 %v1580, 24
      %v1773 = vpop.permute.xlu0 %1772
      %1774 = vrot.lane.b32.xlu0 %v1581, 24
      %v1775 = vpop.permute.xlu0 %1774
      %v1808 = vsel %vm245, %v1546, %v1615
      %v1809 = vsel %vm245, %v1547, %v1617
      %v1810 = vsel %vm245, %v1548, %v1619
      %v1811 = vsel %vm245, %v1549, %v1621
      %v1812 = vsel %vm245, %v1550, %v1623
      %v1813 = vsel %vm245, %v1551, %v1625
      %v1814 = vsel %vm245, %v1552, %v1627
      %v1815 = vsel %vm245, %v1553, %v1629
      %v1816 = vsel %vm245, %v1554, %v1631
      %v1817 = vsel %vm245, %v1555, %v1633
      %v1818 = vsel %vm245, %v1556, %v1635
      %v1819 = vsel %vm245, %v1557, %v1637
      %v1820 = vsel %vm245, %v1558, %v1639
      %v1821 = vsel %vm245, %v1559, %v1641
      %v1822 = vsel %vm245, %v1560, %v1643
      %v1823 = vsel %vm245, %v1561, %v1645
      %v1824 = vsel %vm245, %v1562, %v1647
      %v1825 = vsel %vm245, %v1563, %v1649
      %v1826 = vsel %vm245, %v1564, %v1651
      %v1827 = vsel %vm245, %v1565, %v1653
      %v1828 = vsel %vm245, %v1566, %v1655
      %v1829 = vsel %vm245, %v1567, %v1657
      %v1830 = vsel %vm245, %v1568, %v1659
      %v1831 = vsel %vm245, %v1569, %v1661
      %v1832 = vsel %vm245, %v1570, %v1663
      %v1833 = vsel %vm245, %v1571, %v1665
      %v1834 = vsel %vm245, %v1572, %v1667
      %v1835 = vsel %vm245, %v1573, %v1669
      %v1836 = vsel %vm245, %v1574, %v1671
      %v1837 = vsel %vm245, %v1575, %v1673
      %v1838 = vsel %vm245, %v1576, %v1675
      %v1839 = vsel %vm245, %v1577, %v1677
      %v1840 = vsel %vm863, %v1808, %v1713
      %v1841 = vsel %vm863, %v1809, %v1715
      %v1842 = vsel %vm863, %v1810, %v1717
      %v1843 = vsel %vm863, %v1811, %v1719
      %v1844 = vsel %vm863, %v1812, %v1721
      %v1845 = vsel %vm863, %v1813, %v1723
      %v1846 = vsel %vm863, %v1814, %v1725
      %v1847 = vsel %vm863, %v1815, %v1727
      %v1848 = vsel %vm863, %v1816, %v1729
      %v1849 = vsel %vm863, %v1817, %v1731
      %v1850 = vsel %vm863, %v1818, %v1733
      %v1851 = vsel %vm863, %v1819, %v1735
      %v1852 = vsel %vm863, %v1820, %v1737
      %v1853 = vsel %vm863, %v1821, %v1739
      %v1854 = vsel %vm863, %v1822, %v1741
      %v1855 = vsel %vm863, %v1823, %v1743
      %v1856 = vsel %vm863, %v1824, %v1745
      %v1857 = vsel %vm863, %v1825, %v1747
      %v1858 = vsel %vm863, %v1826, %v1749
      %v1859 = vsel %vm863, %v1827, %v1751
      %v1860 = vsel %vm863, %v1828, %v1753
      %v1861 = vsel %vm863, %v1829, %v1755
      %v1862 = vsel %vm863, %v1830, %v1757
      %v1863 = vsel %vm863, %v1831, %v1759
      %v1864 = vsel %vm863, %v1832, %v1761
      %v1865 = vsel %vm863, %v1833, %v1763
      %v1866 = vsel %vm863, %v1834, %v1765
      %v1867 = vsel %vm863, %v1835, %v1767
      %v1868 = vsel %vm863, %v1836, %v1769
      %v1869 = vsel %vm863, %v1837, %v1771
      %v1870 = vsel %vm863, %v1838, %v1773
      %v1871 = vsel %vm863, %v1839, %v1775
      %v1872 = vsel %vm896, %v1840, 0.0
      %v1873 = vsel %vm896, %v1841, 0.0
      %v1874 = vsel %vm896, %v1842, 0.0
      %v1875 = vsel %vm896, %v1843, 0.0
      %v1876 = vsel %vm896, %v1844, 0.0
      %v1877 = vsel %vm896, %v1845, 0.0
      %v1878 = vsel %vm896, %v1846, 0.0
      %v1879 = vsel %vm896, %v1847, 0.0
      %v1880 = vsel %vm896, %v1848, 0.0
      %v1881 = vsel %vm896, %v1849, 0.0
      %v1882 = vsel %vm896, %v1850, 0.0
      %v1883 = vsel %vm896, %v1851, 0.0
      %v1884 = vsel %vm896, %v1852, 0.0
      %v1885 = vsel %vm896, %v1853, 0.0
      %v1886 = vsel %vm896, %v1854, 0.0
      %v1887 = vsel %vm896, %v1855, 0.0
      %v1888 = vsel %vm896, %v1856, 0.0
      %v1889 = vsel %vm896, %v1857, 0.0
      %v1890 = vsel %vm896, %v1858, 0.0
      %v1891 = vsel %vm896, %v1859, 0.0
      %v1892 = vsel %vm896, %v1860, 0.0
      %v1893 = vsel %vm896, %v1861, 0.0
      %v1894 = vsel %vm896, %v1862, 0.0
      %v1895 = vsel %vm896, %v1863, 0.0
      %v1896 = vsel %vm896, %v1864, 0.0
      %v1897 = vsel %vm896, %v1865, 0.0
      %v1898 = vsel %vm896, %v1866, 0.0
      %v1899 = vsel %vm896, %v1867, 0.0
      %v1900 = vsel %vm896, %v1868, 0.0
      %v1901 = vsel %vm896, %v1869, 0.0
      %v1902 = vsel %vm896, %v1870, 0.0
      %v1903 = vsel %vm896, %v1871, 0.0
      %s1904 = scalar_lea.vmem %s2, 256
      %v1905 = vld [vmem:[%s1904] sm:$0xff]
      %v1906 = vld [vmem:[%s1904 + $0x8] sm:$0xff]
      %v1907 = vld [vmem:[%s1904 + $0x10] sm:$0xff]
      %v1908 = vld [vmem:[%s1904 + $0x18] sm:$0xff]
      %v1909 = vld [vmem:[%s1904 + $0x20] sm:$0xff]
      %v1910 = vld [vmem:[%s1904 + $0x28] sm:$0xff]
      %v1911 = vld [vmem:[%s1904 + $0x30] sm:$0xff]
      %v1912 = vld [vmem:[%s1904 + $0x38] sm:$0xff]
      %v1913 = vld [vmem:[%s1904 + $0x40] sm:$0xff]
      %v1914 = vld [vmem:[%s1904 + $0x48] sm:$0xff]
      %v1915 = vld [vmem:[%s1904 + $0x50] sm:$0xff]
      %v1916 = vld [vmem:[%s1904 + $0x58] sm:$0xff]
      %v1917 = vld [vmem:[%s1904 + $0x60] sm:$0xff]
      %v1918 = vld [vmem:[%s1904 + $0x68] sm:$0xff]
      %v1919 = vld [vmem:[%s1904 + $0x70] sm:$0xff]
      %v1920 = vld [vmem:[%s1904 + $0x78] sm:$0xff]
      %1921 = vmatpush.msra.mxu0 %v1920
      %1922 = vmatpush.msra.mxu0 %v1919
      %1923 = vmatpush.msra.mxu0 %v1918
      %1924 = vmatpush.msra.mxu0 %v1917
      %1925 = vmatpush.msra.mxu0 %v1916
      %1926 = vmatpush.msra.mxu0 %v1915
      %1927 = vmatpush.msra.mxu0 %v1914
      %1928 = vmatpush.msra.mxu0 %v1913
      %1929 = vmatpush.msra.mxu0 %v1912
      %1930 = vmatpush.msra.mxu0 %v1911
      %1931 = vmatpush.msra.mxu0 %v1910
      %1932 = vmatpush.msra.mxu0 %v1909
      %1933 = vmatpush.msra.mxu0 %v1908
      %1934 = vmatpush.msra.mxu0 %v1907
      %1935 = vmatpush.msra.mxu0 %v1906
      %1936 = vmatpush.msra.mxu0 %v1905
      %1937 = vmatmul.f32.gmra.mxu0 %v1872
      %v1938 = vpop.f32.mrf.mxu0
      %v1939 = vadd.f32 0.0, %v1938
      %1940 = vmatmul.f32.gmra.mxu0 %v1873
      %v1941 = vpop.f32.mrf.mxu0
      %v1942 = vadd.f32 0.0, %v1941
      %1943 = vmatmul.f32.gmra.mxu0 %v1874
      %v1944 = vpop.f32.mrf.mxu0
      %v1945 = vadd.f32 0.0, %v1944
      %1946 = vmatmul.f32.gmra.mxu0 %v1875
      %v1947 = vpop.f32.mrf.mxu0
      %v1948 = vadd.f32 0.0, %v1947
      %1949 = vmatmul.f32.gmra.mxu0 %v1876
      %v1950 = vpop.f32.mrf.mxu0
      %v1951 = vadd.f32 0.0, %v1950
      %1952 = vmatmul.f32.gmra.mxu0 %v1877
      %v1953 = vpop.f32.mrf.mxu0
      %v1954 = vadd.f32 0.0, %v1953
      %1955 = vmatmul.f32.gmra.mxu0 %v1878
      %v1956 = vpop.f32.mrf.mxu0
      %v1957 = vadd.f32 0.0, %v1956
      %1958 = vmatmul.f32.gmra.mxu0 %v1879
      %v1959 = vpop.f32.mrf.mxu0
      %v1960 = vadd.f32 0.0, %v1959
      %1961 = vmatmul.f32.gmra.mxu0 %v1880
      %v1962 = vpop.f32.mrf.mxu0
      %v1963 = vadd.f32 0.0, %v1962
      %1964 = vmatmul.f32.gmra.mxu0 %v1881
      %v1965 = vpop.f32.mrf.mxu0
      %v1966 = vadd.f32 0.0, %v1965
      %1967 = vmatmul.f32.gmra.mxu0 %v1882
      %v1968 = vpop.f32.mrf.mxu0
      %v1969 = vadd.f32 0.0, %v1968
      %1970 = vmatmul.f32.gmra.mxu0 %v1883
      %v1971 = vpop.f32.mrf.mxu0
      %v1972 = vadd.f32 0.0, %v1971
      %1973 = vmatmul.f32.gmra.mxu0 %v1884
      %v1974 = vpop.f32.mrf.mxu0
      %v1975 = vadd.f32 0.0, %v1974
      %1976 = vmatmul.f32.gmra.mxu0 %v1885
      %v1977 = vpop.f32.mrf.mxu0
      %v1978 = vadd.f32 0.0, %v1977
      %1979 = vmatmul.f32.gmra.mxu0 %v1886
      %v1980 = vpop.f32.mrf.mxu0
      %v1981 = vadd.f32 0.0, %v1980
      %1982 = vmatmul.f32.gmra.mxu0 %v1887
      %v1983 = vpop.f32.mrf.mxu0
      %v1984 = vadd.f32 0.0, %v1983
      %1985 = vmatmul.f32.gmra.mxu0 %v1888
      %v1986 = vpop.f32.mrf.mxu0
      %v1987 = vadd.f32 0.0, %v1986
      %1988 = vmatmul.f32.gmra.mxu0 %v1889
      %v1989 = vpop.f32.mrf.mxu0
      %v1990 = vadd.f32 0.0, %v1989
      %1991 = vmatmul.f32.gmra.mxu0 %v1890
      %v1992 = vpop.f32.mrf.mxu0
      %v1993 = vadd.f32 0.0, %v1992
      %1994 = vmatmul.f32.gmra.mxu0 %v1891
      %v1995 = vpop.f32.mrf.mxu0
      %v1996 = vadd.f32 0.0, %v1995
      %1997 = vmatmul.f32.gmra.mxu0 %v1892
      %v1998 = vpop.f32.mrf.mxu0
      %v1999 = vadd.f32 0.0, %v1998
      %2000 = vmatmul.f32.gmra.mxu0 %v1893
      %v2001 = vpop.f32.mrf.mxu0
      %v2002 = vadd.f32 0.0, %v2001
      %2003 = vmatmul.f32.gmra.mxu0 %v1894
      %v2004 = vpop.f32.mrf.mxu0
      %v2005 = vadd.f32 0.0, %v2004
      %2006 = vmatmul.f32.gmra.mxu0 %v1895
      %v2007 = vpop.f32.mrf.mxu0
      %v2008 = vadd.f32 0.0, %v2007
      %2009 = vmatmul.f32.gmra.mxu0 %v1896
      %v2010 = vpop.f32.mrf.mxu0
      %v2011 = vadd.f32 0.0, %v2010
      %2012 = vmatmul.f32.gmra.mxu0 %v1897
      %v2013 = vpop.f32.mrf.mxu0
      %v2014 = vadd.f32 0.0, %v2013
      %2015 = vmatmul.f32.gmra.mxu0 %v1898
      %v2016 = vpop.f32.mrf.mxu0
      %v2017 = vadd.f32 0.0, %v2016
      %2018 = vmatmul.f32.gmra.mxu0 %v1899
      %v2019 = vpop.f32.mrf.mxu0
      %v2020 = vadd.f32 0.0, %v2019
      %2021 = vmatmul.f32.gmra.mxu0 %v1900
      %v2022 = vpop.f32.mrf.mxu0
      %v2023 = vadd.f32 0.0, %v2022
      %2024 = vmatmul.f32.gmra.mxu0 %v1901
      %v2025 = vpop.f32.mrf.mxu0
      %v2026 = vadd.f32 0.0, %v2025
      %2027 = vmatmul.f32.gmra.mxu0 %v1902
      %v2028 = vpop.f32.mrf.mxu0
      %v2029 = vadd.f32 0.0, %v2028
      %2030 = vmatmul.f32.gmra.mxu0 %v1903
      %v2031 = vpop.f32.mrf.mxu0
      %v2032 = vadd.f32 0.0, %v2031
      %2033 = vdwg.mxu0
      %v2034 = vadd.f32 %v1451, %v1939
      %v2035 = vadd.f32 %v1454, %v1942
      %v2036 = vadd.f32 %v1457, %v1945
      %v2037 = vadd.f32 %v1460, %v1948
      %v2038 = vadd.f32 %v1463, %v1951
      %v2039 = vadd.f32 %v1466, %v1954
      %v2040 = vadd.f32 %v1469, %v1957
      %v2041 = vadd.f32 %v1472, %v1960
      %v2042 = vadd.f32 %v1475, %v1963
      %v2043 = vadd.f32 %v1478, %v1966
      %v2044 = vadd.f32 %v1481, %v1969
      %v2045 = vadd.f32 %v1484, %v1972
      %v2046 = vadd.f32 %v1487, %v1975
      %v2047 = vadd.f32 %v1490, %v1978
      %v2048 = vadd.f32 %v1493, %v1981
      %v2049 = vadd.f32 %v1496, %v1984
      %v2050 = vadd.f32 %v1499, %v1987
      %v2051 = vadd.f32 %v1502, %v1990
      %v2052 = vadd.f32 %v1505, %v1993
      %v2053 = vadd.f32 %v1508, %v1996
      %v2054 = vadd.f32 %v1511, %v1999
      %v2055 = vadd.f32 %v1514, %v2002
      %v2056 = vadd.f32 %v1517, %v2005
      %v2057 = vadd.f32 %v1520, %v2008
      %v2058 = vadd.f32 %v1523, %v2011
      %v2059 = vadd.f32 %v1526, %v2014
      %v2060 = vadd.f32 %v1529, %v2017
      %v2061 = vadd.f32 %v1532, %v2020
      %v2062 = vadd.f32 %v1535, %v2023
      %v2063 = vadd.f32 %v1538, %v2026
      %v2064 = vadd.f32 %v1541, %v2029
      %v2065 = vadd.f32 %v1544, %v2032
      %v2066 = vld [vmem:[%s4] sm:$0x1]
      %v2067 = vperm.slane %v2066, 0
      %v2068 = vmul.f32 %v2034, %v2067
      %v2069 = vmul.f32 %v2035, %v2067
      %v2070 = vmul.f32 %v2036, %v2067
      %v2071 = vmul.f32 %v2037, %v2067
      %v2072 = vmul.f32 %v2038, %v2067
      %v2073 = vmul.f32 %v2039, %v2067
      %v2074 = vmul.f32 %v2040, %v2067
      %v2075 = vmul.f32 %v2041, %v2067
      %v2076 = vmul.f32 %v2042, %v2067
      %v2077 = vmul.f32 %v2043, %v2067
      %v2078 = vmul.f32 %v2044, %v2067
      %v2079 = vmul.f32 %v2045, %v2067
      %v2080 = vmul.f32 %v2046, %v2067
      %v2081 = vmul.f32 %v2047, %v2067
      %v2082 = vmul.f32 %v2048, %v2067
      %v2083 = vmul.f32 %v2049, %v2067
      %v2084 = vmul.f32 %v2050, %v2067
      %v2085 = vmul.f32 %v2051, %v2067
      %v2086 = vmul.f32 %v2052, %v2067
      %v2087 = vmul.f32 %v2053, %v2067
      %v2088 = vmul.f32 %v2054, %v2067
      %v2089 = vmul.f32 %v2055, %v2067
      %v2090 = vmul.f32 %v2056, %v2067
      %v2091 = vmul.f32 %v2057, %v2067
      %v2092 = vmul.f32 %v2058, %v2067
      %v2093 = vmul.f32 %v2059, %v2067
      %v2094 = vmul.f32 %v2060, %v2067
      %v2095 = vmul.f32 %v2061, %v2067
      %v2096 = vmul.f32 %v2062, %v2067
      %v2097 = vmul.f32 %v2063, %v2067
      %v2098 = vmul.f32 %v2064, %v2067
      %v2099 = vmul.f32 %v2065, %v2067
      %v2100 = vld [vmem:[%s4 + $0x1] sm:$0x1]
      %v2101 = vperm.slane %v2100, 0
      %v2102 = vadd.f32 %v2068, %v2101
      %v2103 = vadd.f32 %v2069, %v2101
      %v2104 = vadd.f32 %v2070, %v2101
      %v2105 = vadd.f32 %v2071, %v2101
      %v2106 = vadd.f32 %v2072, %v2101
      %v2107 = vadd.f32 %v2073, %v2101
      %v2108 = vadd.f32 %v2074, %v2101
      %v2109 = vadd.f32 %v2075, %v2101
      %v2110 = vadd.f32 %v2076, %v2101
      %v2111 = vadd.f32 %v2077, %v2101
      %v2112 = vadd.f32 %v2078, %v2101
      %v2113 = vadd.f32 %v2079, %v2101
      %v2114 = vadd.f32 %v2080, %v2101
      %v2115 = vadd.f32 %v2081, %v2101
      %v2116 = vadd.f32 %v2082, %v2101
      %v2117 = vadd.f32 %v2083, %v2101
      %v2118 = vadd.f32 %v2084, %v2101
      %v2119 = vadd.f32 %v2085, %v2101
      %v2120 = vadd.f32 %v2086, %v2101
      %v2121 = vadd.f32 %v2087, %v2101
      %v2122 = vadd.f32 %v2088, %v2101
      %v2123 = vadd.f32 %v2089, %v2101
      %v2124 = vadd.f32 %v2090, %v2101
      %v2125 = vadd.f32 %v2091, %v2101
      %v2126 = vadd.f32 %v2092, %v2101
      %v2127 = vadd.f32 %v2093, %v2101
      %v2128 = vadd.f32 %v2094, %v2101
      %v2129 = vadd.f32 %v2095, %v2101
      %v2130 = vadd.f32 %v2096, %v2101
      %v2131 = vadd.f32 %v2097, %v2101
      %v2132 = vadd.f32 %v2098, %v2101
      %v2133 = vadd.f32 %v2099, %v2101
      %v2134 = vmax.f32 %v2102, 0.0
      %v2135 = vmax.f32 %v2103, 0.0
      %v2136 = vmax.f32 %v2104, 0.0
      %v2137 = vmax.f32 %v2105, 0.0
      %v2138 = vmax.f32 %v2106, 0.0
      %v2139 = vmax.f32 %v2107, 0.0
      %v2140 = vmax.f32 %v2108, 0.0
      %v2141 = vmax.f32 %v2109, 0.0
      %v2142 = vmax.f32 %v2110, 0.0
      %v2143 = vmax.f32 %v2111, 0.0
      %v2144 = vmax.f32 %v2112, 0.0
      %v2145 = vmax.f32 %v2113, 0.0
      %v2146 = vmax.f32 %v2114, 0.0
      %v2147 = vmax.f32 %v2115, 0.0
      %v2148 = vmax.f32 %v2116, 0.0
      %v2149 = vmax.f32 %v2117, 0.0
      %v2150 = vmax.f32 %v2118, 0.0
      %v2151 = vmax.f32 %v2119, 0.0
      %v2152 = vmax.f32 %v2120, 0.0
      %v2153 = vmax.f32 %v2121, 0.0
      %v2154 = vmax.f32 %v2122, 0.0
      %v2155 = vmax.f32 %v2123, 0.0
      %v2156 = vmax.f32 %v2124, 0.0
      %v2157 = vmax.f32 %v2125, 0.0
      %v2158 = vmax.f32 %v2126, 0.0
      %v2159 = vmax.f32 %v2127, 0.0
      %v2160 = vmax.f32 %v2128, 0.0
      %v2161 = vmax.f32 %v2129, 0.0
      %v2162 = vmax.f32 %v2130, 0.0
      %v2163 = vmax.f32 %v2131, 0.0
      %v2164 = vmax.f32 %v2132, 0.0
      %v2165 = vmax.f32 %v2133, 0.0
      %2166 = vst [vmem:[%s294 + $0x1] sm:$0xff] %v2134
      %2167 = vst [vmem:[%s294 + $0x9] sm:$0xff] %v2135
      %2168 = vst [vmem:[%s294 + $0x19] sm:$0xff] %v2136
      %2169 = vst [vmem:[%s294 + $0x21] sm:$0xff] %v2137
      %2170 = vst [vmem:[%s294 + $0x31] sm:$0xff] %v2138
      %2171 = vst [vmem:[%s294 + $0x39] sm:$0xff] %v2139
      %2172 = vst [vmem:[%s294 + $0x49] sm:$0xff] %v2140
      %2173 = vst [vmem:[%s294 + $0x51] sm:$0xff] %v2141
      %2174 = vst [vmem:[%s294 + $0x61] sm:$0xff] %v2142
      %2175 = vst [vmem:[%s294 + $0x69] sm:$0xff] %v2143
      %2176 = vst [vmem:[%s294 + $0x79] sm:$0xff] %v2144
      %2177 = vst [vmem:[%s294 + $0x81] sm:$0xff] %v2145
      %2178 = vst [vmem:[%s294 + $0x91] sm:$0xff] %v2146
      %2179 = vst [vmem:[%s294 + $0x99] sm:$0xff] %v2147
      %2180 = vst [vmem:[%s294 + $0xa9] sm:$0xff] %v2148
      %2181 = vst [vmem:[%s294 + $0xb1] sm:$0xff] %v2149
      %2182 = vst [vmem:[%s294 + $0xc1] sm:$0xff] %v2150
      %2183 = vst [vmem:[%s294 + $0xc9] sm:$0xff] %v2151
      %2184 = vst [vmem:[%s294 + $0xd9] sm:$0xff] %v2152
      %2185 = vst [vmem:[%s294 + $0xe1] sm:$0xff] %v2153
      %2186 = vst [vmem:[%s294 + $0xf1] sm:$0xff] %v2154
      %2187 = vst [vmem:[%s294 + $0xf9] sm:$0xff] %v2155
      %2188 = vst [vmem:[%s294 + $0x109] sm:$0xff] %v2156
      %2189 = vst [vmem:[%s294 + $0x111] sm:$0xff] %v2157
      %2190 = vst [vmem:[%s294 + $0x121] sm:$0xff] %v2158
      %2191 = vst [vmem:[%s294 + $0x129] sm:$0xff] %v2159
      %2192 = vst [vmem:[%s294 + $0x139] sm:$0xff] %v2160
      %2193 = vst [vmem:[%s294 + $0x141] sm:$0xff] %v2161
      %2194 = vst [vmem:[%s294 + $0x151] sm:$0xff] %v2162
      %2195 = vst [vmem:[%s294 + $0x159] sm:$0xff] %v2163
      %2196 = vst [vmem:[%s294 + $0x169] sm:$0xff] %v2164
      %2197 = vst [vmem:[%s294 + $0x171] sm:$0xff] %v2165
      %v2198 = vld [vmem:[#allocation3] sm:$0xff]
      %v2199 = vld [vmem:[#allocation3 + $0x8] sm:$0xff]
      %v2200 = vld [vmem:[#allocation3 + $0x18] sm:$0xff]
      %v2201 = vld [vmem:[#allocation3 + $0x20] sm:$0xff]
      %v2202 = vld [vmem:[#allocation3 + $0x30] sm:$0xff]
      %v2203 = vld [vmem:[#allocation3 + $0x38] sm:$0xff]
      %v2204 = vld [vmem:[#allocation3 + $0x48] sm:$0xff]
      %v2205 = vld [vmem:[#allocation3 + $0x50] sm:$0xff]
      %v2206 = vld [vmem:[#allocation3 + $0x60] sm:$0xff]
      %v2207 = vld [vmem:[#allocation3 + $0x68] sm:$0xff]
      %v2208 = vld [vmem:[#allocation3 + $0x78] sm:$0xff]
      %v2209 = vld [vmem:[#allocation3 + $0x80] sm:$0xff]
      %v2210 = vld [vmem:[#allocation3 + $0x90] sm:$0xff]
      %v2211 = vld [vmem:[#allocation3 + $0x98] sm:$0xff]
      %v2212 = vld [vmem:[#allocation3 + $0xa8] sm:$0xff]
      %v2213 = vld [vmem:[#allocation3 + $0xb0] sm:$0xff]
      %v2214 = vld [vmem:[#allocation3 + $0xc0] sm:$0xff]
      %v2215 = vld [vmem:[#allocation3 + $0xc8] sm:$0xff]
      %v2216 = vld [vmem:[#allocation3 + $0xd8] sm:$0xff]
      %v2217 = vld [vmem:[#allocation3 + $0xe0] sm:$0xff]
      %v2218 = vld [vmem:[#allocation3 + $0xf0] sm:$0xff]
      %v2219 = vld [vmem:[#allocation3 + $0xf8] sm:$0xff]
      %v2220 = vld [vmem:[#allocation3 + $0x108] sm:$0xff]
      %v2221 = vld [vmem:[#allocation3 + $0x110] sm:$0xff]
      %v2222 = vld [vmem:[#allocation3 + $0x120] sm:$0xff]
      %v2223 = vld [vmem:[#allocation3 + $0x128] sm:$0xff]
      %v2224 = vld [vmem:[#allocation3 + $0x138] sm:$0xff]
      %v2225 = vld [vmem:[#allocation3 + $0x140] sm:$0xff]
      %v2226 = vld [vmem:[#allocation3 + $0x150] sm:$0xff]
      %v2227 = vld [vmem:[#allocation3 + $0x158] sm:$0xff]
      %v2228 = vld [vmem:[#allocation3 + $0x168] sm:$0xff]
      %v2229 = vld [vmem:[#allocation3 + $0x170] sm:$0xff]
      %v2230 = vld [vmem:[#allocation3 + $0x180] sm:$0xff]
      %v2231 = vld [vmem:[#allocation3 + $0x188] sm:$0xff]
      %v2232 = vld [vmem:[#allocation3 + $0x198] sm:$0xff]
      %v2233 = vld [vmem:[#allocation3 + $0x1a0] sm:$0xff]
      %v2234 = vld [vmem:[%s3] sm:$0xff]
      %v2235 = vld [vmem:[%s3 + $0x8] sm:$0xff]
      %v2236 = vld [vmem:[%s3 + $0x10] sm:$0xff]
      %v2237 = vld [vmem:[%s3 + $0x18] sm:$0xff]
      %v2238 = vld [vmem:[%s3 + $0x20] sm:$0xff]
      %v2239 = vld [vmem:[%s3 + $0x28] sm:$0xff]
      %v2240 = vld [vmem:[%s3 + $0x30] sm:$0xff]
      %v2241 = vld [vmem:[%s3 + $0x38] sm:$0xff]
      %v2242 = vld [vmem:[%s3 + $0x40] sm:$0xff]
      %v2243 = vld [vmem:[%s3 + $0x48] sm:$0xff]
      %v2244 = vld [vmem:[%s3 + $0x50] sm:$0xff]
      %v2245 = vld [vmem:[%s3 + $0x58] sm:$0xff]
      %v2246 = vld [vmem:[%s3 + $0x60] sm:$0xff]
      %v2247 = vld [vmem:[%s3 + $0x68] sm:$0xff]
      %v2248 = vld [vmem:[%s3 + $0x70] sm:$0xff]
      %v2249 = vld [vmem:[%s3 + $0x78] sm:$0xff]
      %v2250 = vld [vmem:[%s3 + $0x80] sm:$0xff]
      %v2251 = vld [vmem:[%s3 + $0x88] sm:$0xff]
      %v2252 = vld [vmem:[%s3 + $0x90] sm:$0xff]
      %v2253 = vld [vmem:[%s3 + $0x98] sm:$0xff]
      %v2254 = vld [vmem:[%s3 + $0xa0] sm:$0xff]
      %v2255 = vld [vmem:[%s3 + $0xa8] sm:$0xff]
      %v2256 = vld [vmem:[%s3 + $0xb0] sm:$0xff]
      %v2257 = vld [vmem:[%s3 + $0xb8] sm:$0xff]
      %v2258 = vld [vmem:[%s3 + $0xc0] sm:$0xff]
      %v2259 = vld [vmem:[%s3 + $0xc8] sm:$0xff]
      %v2260 = vld [vmem:[%s3 + $0xd0] sm:$0xff]
      %v2261 = vld [vmem:[%s3 + $0xd8] sm:$0xff]
      %v2262 = vld [vmem:[%s3 + $0xe0] sm:$0xff]
      %v2263 = vld [vmem:[%s3 + $0xe8] sm:$0xff]
      %v2264 = vld [vmem:[%s3 + $0xf0] sm:$0xff]
      %v2265 = vld [vmem:[%s3 + $0xf8] sm:$0xff]
      %v2266 = vld [vmem:[%s3 + $0x100] sm:$0xff]
      %v2267 = vld [vmem:[%s3 + $0x108] sm:$0xff]
      %v2268 = vld [vmem:[%s3 + $0x110] sm:$0xff]
      %v2269 = vld [vmem:[%s3 + $0x118] sm:$0xff]
      %v2270 = vld [vmem:[%s3 + $0x120] sm:$0xff]
      %v2271 = vld [vmem:[%s3 + $0x128] sm:$0xff]
      %v2272 = vld [vmem:[%s3 + $0x130] sm:$0xff]
      %v2273 = vld [vmem:[%s3 + $0x138] sm:$0xff]
      %v2274 = vld [vmem:[%s3 + $0x140] sm:$0xff]
      %v2275 = vld [vmem:[%s3 + $0x148] sm:$0xff]
      %v2276 = vld [vmem:[%s3 + $0x150] sm:$0xff]
      %v2277 = vld [vmem:[%s3 + $0x158] sm:$0xff]
      %v2278 = vld [vmem:[%s3 + $0x160] sm:$0xff]
      %v2279 = vld [vmem:[%s3 + $0x168] sm:$0xff]
      %v2280 = vld [vmem:[%s3 + $0x170] sm:$0xff]
      %v2281 = vld [vmem:[%s3 + $0x178] sm:$0xff]
      %v2282 = vld [vmem:[#allocation3 + $0x1] sm:$0xff]
      %v2283 = vld [vmem:[#allocation3 + $0x9] sm:$0xff]
      %v2284 = vld [vmem:[#allocation3 + $0x19] sm:$0xff]
      %v2285 = vld [vmem:[#allocation3 + $0x21] sm:$0xff]
      %v2286 = vld [vmem:[#allocation3 + $0x31] sm:$0xff]
      %v2287 = vld [vmem:[#allocation3 + $0x39] sm:$0xff]
      %v2288 = vld [vmem:[#allocation3 + $0x49] sm:$0xff]
      %v2289 = vld [vmem:[#allocation3 + $0x51] sm:$0xff]
      %v2290 = vld [vmem:[#allocation3 + $0x61] sm:$0xff]
      %v2291 = vld [vmem:[#allocation3 + $0x69] sm:$0xff]
      %v2292 = vld [vmem:[#allocation3 + $0x79] sm:$0xff]
      %v2293 = vld [vmem:[#allocation3 + $0x81] sm:$0xff]
      %v2294 = vld [vmem:[#allocation3 + $0x91] sm:$0xff]
      %v2295 = vld [vmem:[#allocation3 + $0x99] sm:$0xff]
      %v2296 = vld [vmem:[#allocation3 + $0xa9] sm:$0xff]
      %v2297 = vld [vmem:[#allocation3 + $0xb1] sm:$0xff]
      %v2298 = vld [vmem:[#allocation3 + $0xc1] sm:$0xff]
      %v2299 = vld [vmem:[#allocation3 + $0xc9] sm:$0xff]
      %v2300 = vld [vmem:[#allocation3 + $0xd9] sm:$0xff]
      %v2301 = vld [vmem:[#allocation3 + $0xe1] sm:$0xff]
      %v2302 = vld [vmem:[#allocation3 + $0xf1] sm:$0xff]
      %v2303 = vld [vmem:[#allocation3 + $0xf9] sm:$0xff]
      %v2304 = vld [vmem:[#allocation3 + $0x109] sm:$0xff]
      %v2305 = vld [vmem:[#allocation3 + $0x111] sm:$0xff]
      %v2306 = vld [vmem:[#allocation3 + $0x121] sm:$0xff]
      %v2307 = vld [vmem:[#allocation3 + $0x129] sm:$0xff]
      %v2308 = vld [vmem:[#allocation3 + $0x139] sm:$0xff]
      %v2309 = vld [vmem:[#allocation3 + $0x141] sm:$0xff]
      %v2310 = vld [vmem:[#allocation3 + $0x151] sm:$0xff]
      %v2311 = vld [vmem:[#allocation3 + $0x159] sm:$0xff]
      %v2312 = vld [vmem:[#allocation3 + $0x169] sm:$0xff]
      %v2313 = vld [vmem:[#allocation3 + $0x171] sm:$0xff]
      %v2314 = vld [vmem:[#allocation3 + $0x181] sm:$0xff]
      %v2315 = vld [vmem:[#allocation3 + $0x189] sm:$0xff]
      %v2316 = vld [vmem:[#allocation3 + $0x199] sm:$0xff]
      %v2317 = vld [vmem:[#allocation3 + $0x1a1] sm:$0xff]
      %s2318 = scalar_lea.vmem %s3, 384
      %v2319 = vld [vmem:[%s2318] sm:$0xff]
      %v2320 = vld [vmem:[%s2318 + $0x8] sm:$0xff]
      %v2321 = vld [vmem:[%s2318 + $0x10] sm:$0xff]
      %v2322 = vld [vmem:[%s2318 + $0x18] sm:$0xff]
      %v2323 = vld [vmem:[%s2318 + $0x20] sm:$0xff]
      %v2324 = vld [vmem:[%s2318 + $0x28] sm:$0xff]
      %v2325 = vld [vmem:[%s2318 + $0x30] sm:$0xff]
      %v2326 = vld [vmem:[%s2318 + $0x38] sm:$0xff]
      %v2327 = vld [vmem:[%s2318 + $0x40] sm:$0xff]
      %v2328 = vld [vmem:[%s2318 + $0x48] sm:$0xff]
      %v2329 = vld [vmem:[%s2318 + $0x50] sm:$0xff]
      %v2330 = vld [vmem:[%s2318 + $0x58] sm:$0xff]
      %v2331 = vld [vmem:[%s2318 + $0x60] sm:$0xff]
      %v2332 = vld [vmem:[%s2318 + $0x68] sm:$0xff]
      %v2333 = vld [vmem:[%s2318 + $0x70] sm:$0xff]
      %v2334 = vld [vmem:[%s2318 + $0x78] sm:$0xff]
      %v2335 = vld [vmem:[%s2318 + $0x80] sm:$0xff]
      %v2336 = vld [vmem:[%s2318 + $0x88] sm:$0xff]
      %v2337 = vld [vmem:[%s2318 + $0x90] sm:$0xff]
      %v2338 = vld [vmem:[%s2318 + $0x98] sm:$0xff]
      %v2339 = vld [vmem:[%s2318 + $0xa0] sm:$0xff]
      %v2340 = vld [vmem:[%s2318 + $0xa8] sm:$0xff]
      %v2341 = vld [vmem:[%s2318 + $0xb0] sm:$0xff]
      %v2342 = vld [vmem:[%s2318 + $0xb8] sm:$0xff]
      %v2343 = vld [vmem:[%s2318 + $0xc0] sm:$0xff]
      %v2344 = vld [vmem:[%s2318 + $0xc8] sm:$0xff]
      %v2345 = vld [vmem:[%s2318 + $0xd0] sm:$0xff]
      %v2346 = vld [vmem:[%s2318 + $0xd8] sm:$0xff]
      %v2347 = vld [vmem:[%s2318 + $0xe0] sm:$0xff]
      %v2348 = vld [vmem:[%s2318 + $0xe8] sm:$0xff]
      %v2349 = vld [vmem:[%s2318 + $0xf0] sm:$0xff]
      %v2350 = vld [vmem:[%s2318 + $0xf8] sm:$0xff]
      %v2351 = vld [vmem:[%s2318 + $0x100] sm:$0xff]
      %v2352 = vld [vmem:[%s2318 + $0x108] sm:$0xff]
      %v2353 = vld [vmem:[%s2318 + $0x110] sm:$0xff]
      %v2354 = vld [vmem:[%s2318 + $0x118] sm:$0xff]
      %v2355 = vld [vmem:[%s2318 + $0x120] sm:$0xff]
      %v2356 = vld [vmem:[%s2318 + $0x128] sm:$0xff]
      %v2357 = vld [vmem:[%s2318 + $0x130] sm:$0xff]
      %v2358 = vld [vmem:[%s2318 + $0x138] sm:$0xff]
      %v2359 = vld [vmem:[%s2318 + $0x140] sm:$0xff]
      %v2360 = vld [vmem:[%s2318 + $0x148] sm:$0xff]
      %v2361 = vld [vmem:[%s2318 + $0x150] sm:$0xff]
      %v2362 = vld [vmem:[%s2318 + $0x158] sm:$0xff]
      %v2363 = vld [vmem:[%s2318 + $0x160] sm:$0xff]
      %v2364 = vld [vmem:[%s2318 + $0x168] sm:$0xff]
      %v2365 = vld [vmem:[%s2318 + $0x170] sm:$0xff]
      %v2366 = vld [vmem:[%s2318 + $0x178] sm:$0xff]
      %2367 = vmatpush.msra.mxu0 %v2334
      %2368 = vmatpush.msra.mxu0 %v2333
      %2369 = vmatpush.msra.mxu0 %v2332
      %2370 = vmatpush.msra.mxu0 %v2331
      %2371 = vmatpush.msra.mxu0 %v2330
      %2372 = vmatpush.msra.mxu0 %v2329
      %2373 = vmatpush.msra.mxu0 %v2328
      %2374 = vmatpush.msra.mxu0 %v2327
      %2375 = vmatpush.msra.mxu0 %v2326
      %2376 = vmatpush.msra.mxu0 %v2325
      %2377 = vmatpush.msra.mxu0 %v2324
      %2378 = vmatpush.msra.mxu0 %v2323
      %2379 = vmatpush.msra.mxu0 %v2322
      %2380 = vmatpush.msra.mxu0 %v2321
      %2381 = vmatpush.msra.mxu0 %v2320
      %2382 = vmatpush.msra.mxu0 %v2319
      %2383 = vmatmul.f32.gmra.mxu0 %v2282
      %v2384 = vpop.f32.mrf.mxu0
      %v2385 = vadd.f32 0.0, %v2384
      %2386 = vmatmul.f32.gmra.mxu0 %v2283
      %v2387 = vpop.f32.mrf.mxu0
      %v2388 = vadd.f32 0.0, %v2387
      %2389 = vmatmul.f32.gmra.mxu0 %v2284
      %v2390 = vpop.f32.mrf.mxu0
      %v2391 = vadd.f32 0.0, %v2390
      %2392 = vmatmul.f32.gmra.mxu0 %v2285
      %v2393 = vpop.f32.mrf.mxu0
      %v2394 = vadd.f32 0.0, %v2393
      %2395 = vmatmul.f32.gmra.mxu0 %v2286
      %v2396 = vpop.f32.mrf.mxu0
      %v2397 = vadd.f32 0.0, %v2396
      %2398 = vmatmul.f32.gmra.mxu0 %v2287
      %v2399 = vpop.f32.mrf.mxu0
      %v2400 = vadd.f32 0.0, %v2399
      %2401 = vmatmul.f32.gmra.mxu0 %v2288
      %v2402 = vpop.f32.mrf.mxu0
      %v2403 = vadd.f32 0.0, %v2402
      %2404 = vmatmul.f32.gmra.mxu0 %v2289
      %v2405 = vpop.f32.mrf.mxu0
      %v2406 = vadd.f32 0.0, %v2405
      %2407 = vmatmul.f32.gmra.mxu0 %v2290
      %v2408 = vpop.f32.mrf.mxu0
      %v2409 = vadd.f32 0.0, %v2408
      %2410 = vmatmul.f32.gmra.mxu0 %v2291
      %v2411 = vpop.f32.mrf.mxu0
      %v2412 = vadd.f32 0.0, %v2411
      %2413 = vmatmul.f32.gmra.mxu0 %v2292
      %v2414 = vpop.f32.mrf.mxu0
      %v2415 = vadd.f32 0.0, %v2414
      %2416 = vmatmul.f32.gmra.mxu0 %v2293
      %v2417 = vpop.f32.mrf.mxu0
      %v2418 = vadd.f32 0.0, %v2417
      %2419 = vmatmul.f32.gmra.mxu0 %v2294
      %v2420 = vpop.f32.mrf.mxu0
      %v2421 = vadd.f32 0.0, %v2420
      %2422 = vmatmul.f32.gmra.mxu0 %v2295
      %v2423 = vpop.f32.mrf.mxu0
      %v2424 = vadd.f32 0.0, %v2423
      %2425 = vmatmul.f32.gmra.mxu0 %v2296
      %v2426 = vpop.f32.mrf.mxu0
      %v2427 = vadd.f32 0.0, %v2426
      %2428 = vmatmul.f32.gmra.mxu0 %v2297
      %v2429 = vpop.f32.mrf.mxu0
      %v2430 = vadd.f32 0.0, %v2429
      %2431 = vmatmul.f32.gmra.mxu0 %v2298
      %v2432 = vpop.f32.mrf.mxu0
      %v2433 = vadd.f32 0.0, %v2432
      %2434 = vmatmul.f32.gmra.mxu0 %v2299
      %v2435 = vpop.f32.mrf.mxu0
      %v2436 = vadd.f32 0.0, %v2435
      %2437 = vmatmul.f32.gmra.mxu0 %v2300
      %v2438 = vpop.f32.mrf.mxu0
      %v2439 = vadd.f32 0.0, %v2438
      %2440 = vmatmul.f32.gmra.mxu0 %v2301
      %v2441 = vpop.f32.mrf.mxu0
      %v2442 = vadd.f32 0.0, %v2441
      %2443 = vmatmul.f32.gmra.mxu0 %v2302
      %v2444 = vpop.f32.mrf.mxu0
      %v2445 = vadd.f32 0.0, %v2444
      %2446 = vmatmul.f32.gmra.mxu0 %v2303
      %v2447 = vpop.f32.mrf.mxu0
      %v2448 = vadd.f32 0.0, %v2447
      %2449 = vmatmul.f32.gmra.mxu0 %v2304
      %v2450 = vpop.f32.mrf.mxu0
      %v2451 = vadd.f32 0.0, %v2450
      %2452 = vmatmul.f32.gmra.mxu0 %v2305
      %v2453 = vpop.f32.mrf.mxu0
      %v2454 = vadd.f32 0.0, %v2453
      %2455 = vmatmul.f32.gmra.mxu0 %v2306
      %v2456 = vpop.f32.mrf.mxu0
      %v2457 = vadd.f32 0.0, %v2456
      %2458 = vmatmul.f32.gmra.mxu0 %v2307
      %v2459 = vpop.f32.mrf.mxu0
      %v2460 = vadd.f32 0.0, %v2459
      %2461 = vmatmul.f32.gmra.mxu0 %v2308
      %v2462 = vpop.f32.mrf.mxu0
      %v2463 = vadd.f32 0.0, %v2462
      %2464 = vmatmul.f32.gmra.mxu0 %v2309
      %v2465 = vpop.f32.mrf.mxu0
      %v2466 = vadd.f32 0.0, %v2465
      %2467 = vmatmul.f32.gmra.mxu0 %v2310
      %v2468 = vpop.f32.mrf.mxu0
      %v2469 = vadd.f32 0.0, %v2468
      %2470 = vmatmul.f32.gmra.mxu0 %v2311
      %v2471 = vpop.f32.mrf.mxu0
      %v2472 = vadd.f32 0.0, %v2471
      %2473 = vmatmul.f32.gmra.mxu0 %v2312
      %v2474 = vpop.f32.mrf.mxu0
      %v2475 = vadd.f32 0.0, %v2474
      %2476 = vmatmul.f32.gmra.mxu0 %v2313
      %v2477 = vpop.f32.mrf.mxu0
      %v2478 = vadd.f32 0.0, %v2477
      %2479 = vdwg.mxu0
      %2480 = vmatpush.msra.mxu0 %v2350
      %2481 = vmatpush.msra.mxu0 %v2349
      %2482 = vmatpush.msra.mxu0 %v2348
      %2483 = vmatpush.msra.mxu0 %v2347
      %2484 = vmatpush.msra.mxu0 %v2346
      %2485 = vmatpush.msra.mxu0 %v2345
      %2486 = vmatpush.msra.mxu0 %v2344
      %2487 = vmatpush.msra.mxu0 %v2343
      %2488 = vmatpush.msra.mxu0 %v2342
      %2489 = vmatpush.msra.mxu0 %v2341
      %2490 = vmatpush.msra.mxu0 %v2340
      %2491 = vmatpush.msra.mxu0 %v2339
      %2492 = vmatpush.msra.mxu0 %v2338
      %2493 = vmatpush.msra.mxu0 %v2337
      %2494 = vmatpush.msra.mxu0 %v2336
      %2495 = vmatpush.msra.mxu0 %v2335
      %2496 = vmatmul.f32.gmra.mxu0 %v2284
      %v2497 = vpop.f32.mrf.mxu0
      %v2498 = vadd.f32 %v2385, %v2497
      %2499 = vmatmul.f32.gmra.mxu0 %v2285
      %v2500 = vpop.f32.mrf.mxu0
      %v2501 = vadd.f32 %v2388, %v2500
      %2502 = vmatmul.f32.gmra.mxu0 %v2286
      %v2503 = vpop.f32.mrf.mxu0
      %v2504 = vadd.f32 %v2391, %v2503
      %2505 = vmatmul.f32.gmra.mxu0 %v2287
      %v2506 = vpop.f32.mrf.mxu0
      %v2507 = vadd.f32 %v2394, %v2506
      %2508 = vmatmul.f32.gmra.mxu0 %v2288
      %v2509 = vpop.f32.mrf.mxu0
      %v2510 = vadd.f32 %v2397, %v2509
      %2511 = vmatmul.f32.gmra.mxu0 %v2289
      %v2512 = vpop.f32.mrf.mxu0
      %v2513 = vadd.f32 %v2400, %v2512
      %2514 = vmatmul.f32.gmra.mxu0 %v2290
      %v2515 = vpop.f32.mrf.mxu0
      %v2516 = vadd.f32 %v2403, %v2515
      %2517 = vmatmul.f32.gmra.mxu0 %v2291
      %v2518 = vpop.f32.mrf.mxu0
      %v2519 = vadd.f32 %v2406, %v2518
      %2520 = vmatmul.f32.gmra.mxu0 %v2292
      %v2521 = vpop.f32.mrf.mxu0
      %v2522 = vadd.f32 %v2409, %v2521
      %2523 = vmatmul.f32.gmra.mxu0 %v2293
      %v2524 = vpop.f32.mrf.mxu0
      %v2525 = vadd.f32 %v2412, %v2524
      %2526 = vmatmul.f32.gmra.mxu0 %v2294
      %v2527 = vpop.f32.mrf.mxu0
      %v2528 = vadd.f32 %v2415, %v2527
      %2529 = vmatmul.f32.gmra.mxu0 %v2295
      %v2530 = vpop.f32.mrf.mxu0
      %v2531 = vadd.f32 %v2418, %v2530
      %2532 = vmatmul.f32.gmra.mxu0 %v2296
      %v2533 = vpop.f32.mrf.mxu0
      %v2534 = vadd.f32 %v2421, %v2533
      %2535 = vmatmul.f32.gmra.mxu0 %v2297
      %v2536 = vpop.f32.mrf.mxu0
      %v2537 = vadd.f32 %v2424, %v2536
      %2538 = vmatmul.f32.gmra.mxu0 %v2298
      %v2539 = vpop.f32.mrf.mxu0
      %v2540 = vadd.f32 %v2427, %v2539
      %2541 = vmatmul.f32.gmra.mxu0 %v2299
      %v2542 = vpop.f32.mrf.mxu0
      %v2543 = vadd.f32 %v2430, %v2542
      %2544 = vmatmul.f32.gmra.mxu0 %v2300
      %v2545 = vpop.f32.mrf.mxu0
      %v2546 = vadd.f32 %v2433, %v2545
      %2547 = vmatmul.f32.gmra.mxu0 %v2301
      %v2548 = vpop.f32.mrf.mxu0
      %v2549 = vadd.f32 %v2436, %v2548
      %2550 = vmatmul.f32.gmra.mxu0 %v2302
      %v2551 = vpop.f32.mrf.mxu0
      %v2552 = vadd.f32 %v2439, %v2551
      %2553 = vmatmul.f32.gmra.mxu0 %v2303
      %v2554 = vpop.f32.mrf.mxu0
      %v2555 = vadd.f32 %v2442, %v2554
      %2556 = vmatmul.f32.gmra.mxu0 %v2304
      %v2557 = vpop.f32.mrf.mxu0
      %v2558 = vadd.f32 %v2445, %v2557
      %2559 = vmatmul.f32.gmra.mxu0 %v2305
      %v2560 = vpop.f32.mrf.mxu0
      %v2561 = vadd.f32 %v2448, %v2560
      %2562 = vmatmul.f32.gmra.mxu0 %v2306
      %v2563 = vpop.f32.mrf.mxu0
      %v2564 = vadd.f32 %v2451, %v2563
      %2565 = vmatmul.f32.gmra.mxu0 %v2307
      %v2566 = vpop.f32.mrf.mxu0
      %v2567 = vadd.f32 %v2454, %v2566
      %2568 = vmatmul.f32.gmra.mxu0 %v2308
      %v2569 = vpop.f32.mrf.mxu0
      %v2570 = vadd.f32 %v2457, %v2569
      %2571 = vmatmul.f32.gmra.mxu0 %v2309
      %v2572 = vpop.f32.mrf.mxu0
      %v2573 = vadd.f32 %v2460, %v2572
      %2574 = vmatmul.f32.gmra.mxu0 %v2310
      %v2575 = vpop.f32.mrf.mxu0
      %v2576 = vadd.f32 %v2463, %v2575
      %2577 = vmatmul.f32.gmra.mxu0 %v2311
      %v2578 = vpop.f32.mrf.mxu0
      %v2579 = vadd.f32 %v2466, %v2578
      %2580 = vmatmul.f32.gmra.mxu0 %v2312
      %v2581 = vpop.f32.mrf.mxu0
      %v2582 = vadd.f32 %v2469, %v2581
      %2583 = vmatmul.f32.gmra.mxu0 %v2313
      %v2584 = vpop.f32.mrf.mxu0
      %v2585 = vadd.f32 %v2472, %v2584
      %2586 = vmatmul.f32.gmra.mxu0 %v2314
      %v2587 = vpop.f32.mrf.mxu0
      %v2588 = vadd.f32 %v2475, %v2587
      %2589 = vmatmul.f32.gmra.mxu0 %v2315
      %v2590 = vpop.f32.mrf.mxu0
      %v2591 = vadd.f32 %v2478, %v2590
      %2592 = vdwg.mxu0
      %2593 = vmatpush.msra.mxu0 %v2366
      %2594 = vmatpush.msra.mxu0 %v2365
      %2595 = vmatpush.msra.mxu0 %v2364
      %2596 = vmatpush.msra.mxu0 %v2363
      %2597 = vmatpush.msra.mxu0 %v2362
      %2598 = vmatpush.msra.mxu0 %v2361
      %2599 = vmatpush.msra.mxu0 %v2360
      %2600 = vmatpush.msra.mxu0 %v2359
      %2601 = vmatpush.msra.mxu0 %v2358
      %2602 = vmatpush.msra.mxu0 %v2357
      %2603 = vmatpush.msra.mxu0 %v2356
      %2604 = vmatpush.msra.mxu0 %v2355
      %2605 = vmatpush.msra.mxu0 %v2354
      %2606 = vmatpush.msra.mxu0 %v2353
      %2607 = vmatpush.msra.mxu0 %v2352
      %2608 = vmatpush.msra.mxu0 %v2351
      %2609 = vmatmul.f32.gmra.mxu0 %v2286
      %v2610 = vpop.f32.mrf.mxu0
      %v2611 = vadd.f32 %v2498, %v2610
      %2612 = vmatmul.f32.gmra.mxu0 %v2287
      %v2613 = vpop.f32.mrf.mxu0
      %v2614 = vadd.f32 %v2501, %v2613
      %2615 = vmatmul.f32.gmra.mxu0 %v2288
      %v2616 = vpop.f32.mrf.mxu0
      %v2617 = vadd.f32 %v2504, %v2616
      %2618 = vmatmul.f32.gmra.mxu0 %v2289
      %v2619 = vpop.f32.mrf.mxu0
      %v2620 = vadd.f32 %v2507, %v2619
      %2621 = vmatmul.f32.gmra.mxu0 %v2290
      %v2622 = vpop.f32.mrf.mxu0
      %v2623 = vadd.f32 %v2510, %v2622
      %2624 = vmatmul.f32.gmra.mxu0 %v2291
      %v2625 = vpop.f32.mrf.mxu0
      %v2626 = vadd.f32 %v2513, %v2625
      %2627 = vmatmul.f32.gmra.mxu0 %v2292
      %v2628 = vpop.f32.mrf.mxu0
      %v2629 = vadd.f32 %v2516, %v2628
      %2630 = vmatmul.f32.gmra.mxu0 %v2293
      %v2631 = vpop.f32.mrf.mxu0
      %v2632 = vadd.f32 %v2519, %v2631
      %2633 = vmatmul.f32.gmra.mxu0 %v2294
      %v2634 = vpop.f32.mrf.mxu0
      %v2635 = vadd.f32 %v2522, %v2634
      %2636 = vmatmul.f32.gmra.mxu0 %v2295
      %v2637 = vpop.f32.mrf.mxu0
      %v2638 = vadd.f32 %v2525, %v2637
      %2639 = vmatmul.f32.gmra.mxu0 %v2296
      %v2640 = vpop.f32.mrf.mxu0
      %v2641 = vadd.f32 %v2528, %v2640
      %2642 = vmatmul.f32.gmra.mxu0 %v2297
      %v2643 = vpop.f32.mrf.mxu0
      %v2644 = vadd.f32 %v2531, %v2643
      %2645 = vmatmul.f32.gmra.mxu0 %v2298
      %v2646 = vpop.f32.mrf.mxu0
      %v2647 = vadd.f32 %v2534, %v2646
      %2648 = vmatmul.f32.gmra.mxu0 %v2299
      %v2649 = vpop.f32.mrf.mxu0
      %v2650 = vadd.f32 %v2537, %v2649
      %2651 = vmatmul.f32.gmra.mxu0 %v2300
      %v2652 = vpop.f32.mrf.mxu0
      %v2653 = vadd.f32 %v2540, %v2652
      %2654 = vmatmul.f32.gmra.mxu0 %v2301
      %v2655 = vpop.f32.mrf.mxu0
      %v2656 = vadd.f32 %v2543, %v2655
      %2657 = vmatmul.f32.gmra.mxu0 %v2302
      %v2658 = vpop.f32.mrf.mxu0
      %v2659 = vadd.f32 %v2546, %v2658
      %2660 = vmatmul.f32.gmra.mxu0 %v2303
      %v2661 = vpop.f32.mrf.mxu0
      %v2662 = vadd.f32 %v2549, %v2661
      %2663 = vmatmul.f32.gmra.mxu0 %v2304
      %v2664 = vpop.f32.mrf.mxu0
      %v2665 = vadd.f32 %v2552, %v2664
      %2666 = vmatmul.f32.gmra.mxu0 %v2305
      %v2667 = vpop.f32.mrf.mxu0
      %v2668 = vadd.f32 %v2555, %v2667
      %2669 = vmatmul.f32.gmra.mxu0 %v2306
      %v2670 = vpop.f32.mrf.mxu0
      %v2671 = vadd.f32 %v2558, %v2670
      %2672 = vmatmul.f32.gmra.mxu0 %v2307
      %v2673 = vpop.f32.mrf.mxu0
      %v2674 = vadd.f32 %v2561, %v2673
      %2675 = vmatmul.f32.gmra.mxu0 %v2308
      %v2676 = vpop.f32.mrf.mxu0
      %v2677 = vadd.f32 %v2564, %v2676
      %2678 = vmatmul.f32.gmra.mxu0 %v2309
      %v2679 = vpop.f32.mrf.mxu0
      %v2680 = vadd.f32 %v2567, %v2679
      %2681 = vmatmul.f32.gmra.mxu0 %v2310
      %v2682 = vpop.f32.mrf.mxu0
      %v2683 = vadd.f32 %v2570, %v2682
      %2684 = vmatmul.f32.gmra.mxu0 %v2311
      %v2685 = vpop.f32.mrf.mxu0
      %v2686 = vadd.f32 %v2573, %v2685
      %2687 = vmatmul.f32.gmra.mxu0 %v2312
      %v2688 = vpop.f32.mrf.mxu0
      %v2689 = vadd.f32 %v2576, %v2688
      %2690 = vmatmul.f32.gmra.mxu0 %v2313
      %v2691 = vpop.f32.mrf.mxu0
      %v2692 = vadd.f32 %v2579, %v2691
      %2693 = vmatmul.f32.gmra.mxu0 %v2314
      %v2694 = vpop.f32.mrf.mxu0
      %v2695 = vadd.f32 %v2582, %v2694
      %2696 = vmatmul.f32.gmra.mxu0 %v2315
      %v2697 = vpop.f32.mrf.mxu0
      %v2698 = vadd.f32 %v2585, %v2697
      %2699 = vmatmul.f32.gmra.mxu0 %v2316
      %v2700 = vpop.f32.mrf.mxu0
      %v2701 = vadd.f32 %v2588, %v2700
      %2702 = vmatmul.f32.gmra.mxu0 %v2317
      %v2703 = vpop.f32.mrf.mxu0
      %v2704 = vadd.f32 %v2591, %v2703
      %2705 = vdwg.mxu0
      %2706 = vmatpush.msra.mxu0 %v2249
      %2707 = vmatpush.msra.mxu0 %v2248
      %2708 = vmatpush.msra.mxu0 %v2247
      %2709 = vmatpush.msra.mxu0 %v2246
      %2710 = vmatpush.msra.mxu0 %v2245
      %2711 = vmatpush.msra.mxu0 %v2244
      %2712 = vmatpush.msra.mxu0 %v2243
      %2713 = vmatpush.msra.mxu0 %v2242
      %2714 = vmatpush.msra.mxu0 %v2241
      %2715 = vmatpush.msra.mxu0 %v2240
      %2716 = vmatpush.msra.mxu0 %v2239
      %2717 = vmatpush.msra.mxu0 %v2238
      %2718 = vmatpush.msra.mxu0 %v2237
      %2719 = vmatpush.msra.mxu0 %v2236
      %2720 = vmatpush.msra.mxu0 %v2235
      %2721 = vmatpush.msra.mxu0 %v2234
      %2722 = vmatmul.f32.gmra.mxu0 %v2198
      %v2723 = vpop.f32.mrf.mxu0
      %v2724 = vadd.f32 %v2611, %v2723
      %2725 = vmatmul.f32.gmra.mxu0 %v2199
      %v2726 = vpop.f32.mrf.mxu0
      %v2727 = vadd.f32 %v2614, %v2726
      %2728 = vmatmul.f32.gmra.mxu0 %v2200
      %v2729 = vpop.f32.mrf.mxu0
      %v2730 = vadd.f32 %v2617, %v2729
      %2731 = vmatmul.f32.gmra.mxu0 %v2201
      %v2732 = vpop.f32.mrf.mxu0
      %v2733 = vadd.f32 %v2620, %v2732
      %2734 = vmatmul.f32.gmra.mxu0 %v2202
      %v2735 = vpop.f32.mrf.mxu0
      %v2736 = vadd.f32 %v2623, %v2735
      %2737 = vmatmul.f32.gmra.mxu0 %v2203
      %v2738 = vpop.f32.mrf.mxu0
      %v2739 = vadd.f32 %v2626, %v2738
      %2740 = vmatmul.f32.gmra.mxu0 %v2204
      %v2741 = vpop.f32.mrf.mxu0
      %v2742 = vadd.f32 %v2629, %v2741
      %2743 = vmatmul.f32.gmra.mxu0 %v2205
      %v2744 = vpop.f32.mrf.mxu0
      %v2745 = vadd.f32 %v2632, %v2744
      %2746 = vmatmul.f32.gmra.mxu0 %v2206
      %v2747 = vpop.f32.mrf.mxu0
      %v2748 = vadd.f32 %v2635, %v2747
      %2749 = vmatmul.f32.gmra.mxu0 %v2207
      %v2750 = vpop.f32.mrf.mxu0
      %v2751 = vadd.f32 %v2638, %v2750
      %2752 = vmatmul.f32.gmra.mxu0 %v2208
      %v2753 = vpop.f32.mrf.mxu0
      %v2754 = vadd.f32 %v2641, %v2753
      %2755 = vmatmul.f32.gmra.mxu0 %v2209
      %v2756 = vpop.f32.mrf.mxu0
      %v2757 = vadd.f32 %v2644, %v2756
      %2758 = vmatmul.f32.gmra.mxu0 %v2210
      %v2759 = vpop.f32.mrf.mxu0
      %v2760 = vadd.f32 %v2647, %v2759
      %2761 = vmatmul.f32.gmra.mxu0 %v2211
      %v2762 = vpop.f32.mrf.mxu0
      %v2763 = vadd.f32 %v2650, %v2762
      %2764 = vmatmul.f32.gmra.mxu0 %v2212
      %v2765 = vpop.f32.mrf.mxu0
      %v2766 = vadd.f32 %v2653, %v2765
      %2767 = vmatmul.f32.gmra.mxu0 %v2213
      %v2768 = vpop.f32.mrf.mxu0
      %v2769 = vadd.f32 %v2656, %v2768
      %2770 = vmatmul.f32.gmra.mxu0 %v2214
      %v2771 = vpop.f32.mrf.mxu0
      %v2772 = vadd.f32 %v2659, %v2771
      %2773 = vmatmul.f32.gmra.mxu0 %v2215
      %v2774 = vpop.f32.mrf.mxu0
      %v2775 = vadd.f32 %v2662, %v2774
      %2776 = vmatmul.f32.gmra.mxu0 %v2216
      %v2777 = vpop.f32.mrf.mxu0
      %v2778 = vadd.f32 %v2665, %v2777
      %2779 = vmatmul.f32.gmra.mxu0 %v2217
      %v2780 = vpop.f32.mrf.mxu0
      %v2781 = vadd.f32 %v2668, %v2780
      %2782 = vmatmul.f32.gmra.mxu0 %v2218
      %v2783 = vpop.f32.mrf.mxu0
      %v2784 = vadd.f32 %v2671, %v2783
      %2785 = vmatmul.f32.gmra.mxu0 %v2219
      %v2786 = vpop.f32.mrf.mxu0
      %v2787 = vadd.f32 %v2674, %v2786
      %2788 = vmatmul.f32.gmra.mxu0 %v2220
      %v2789 = vpop.f32.mrf.mxu0
      %v2790 = vadd.f32 %v2677, %v2789
      %2791 = vmatmul.f32.gmra.mxu0 %v2221
      %v2792 = vpop.f32.mrf.mxu0
      %v2793 = vadd.f32 %v2680, %v2792
      %2794 = vmatmul.f32.gmra.mxu0 %v2222
      %v2795 = vpop.f32.mrf.mxu0
      %v2796 = vadd.f32 %v2683, %v2795
      %2797 = vmatmul.f32.gmra.mxu0 %v2223
      %v2798 = vpop.f32.mrf.mxu0
      %v2799 = vadd.f32 %v2686, %v2798
      %2800 = vmatmul.f32.gmra.mxu0 %v2224
      %v2801 = vpop.f32.mrf.mxu0
      %v2802 = vadd.f32 %v2689, %v2801
      %2803 = vmatmul.f32.gmra.mxu0 %v2225
      %v2804 = vpop.f32.mrf.mxu0
      %v2805 = vadd.f32 %v2692, %v2804
      %2806 = vmatmul.f32.gmra.mxu0 %v2226
      %v2807 = vpop.f32.mrf.mxu0
      %v2808 = vadd.f32 %v2695, %v2807
      %2809 = vmatmul.f32.gmra.mxu0 %v2227
      %v2810 = vpop.f32.mrf.mxu0
      %v2811 = vadd.f32 %v2698, %v2810
      %2812 = vmatmul.f32.gmra.mxu0 %v2228
      %v2813 = vpop.f32.mrf.mxu0
      %v2814 = vadd.f32 %v2701, %v2813
      %2815 = vmatmul.f32.gmra.mxu0 %v2229
      %v2816 = vpop.f32.mrf.mxu0
      %v2817 = vadd.f32 %v2704, %v2816
      %2818 = vdwg.mxu0
      %2819 = vmatpush.msra.mxu0 %v2265
      %2820 = vmatpush.msra.mxu0 %v2264
      %2821 = vmatpush.msra.mxu0 %v2263
      %2822 = vmatpush.msra.mxu0 %v2262
      %2823 = vmatpush.msra.mxu0 %v2261
      %2824 = vmatpush.msra.mxu0 %v2260
      %2825 = vmatpush.msra.mxu0 %v2259
      %2826 = vmatpush.msra.mxu0 %v2258
      %2827 = vmatpush.msra.mxu0 %v2257
      %2828 = vmatpush.msra.mxu0 %v2256
      %2829 = vmatpush.msra.mxu0 %v2255
      %2830 = vmatpush.msra.mxu0 %v2254
      %2831 = vmatpush.msra.mxu0 %v2253
      %2832 = vmatpush.msra.mxu0 %v2252
      %2833 = vmatpush.msra.mxu0 %v2251
      %2834 = vmatpush.msra.mxu0 %v2250
      %2835 = vmatmul.f32.gmra.mxu0 %v2200
      %v2836 = vpop.f32.mrf.mxu0
      %v2837 = vadd.f32 %v2724, %v2836
      %2838 = vmatmul.f32.gmra.mxu0 %v2201
      %v2839 = vpop.f32.mrf.mxu0
      %v2840 = vadd.f32 %v2727, %v2839
      %2841 = vmatmul.f32.gmra.mxu0 %v2202
      %v2842 = vpop.f32.mrf.mxu0
      %v2843 = vadd.f32 %v2730, %v2842
      %2844 = vmatmul.f32.gmra.mxu0 %v2203
      %v2845 = vpop.f32.mrf.mxu0
      %v2846 = vadd.f32 %v2733, %v2845
      %2847 = vmatmul.f32.gmra.mxu0 %v2204
      %v2848 = vpop.f32.mrf.mxu0
      %v2849 = vadd.f32 %v2736, %v2848
      %2850 = vmatmul.f32.gmra.mxu0 %v2205
      %v2851 = vpop.f32.mrf.mxu0
      %v2852 = vadd.f32 %v2739, %v2851
      %2853 = vmatmul.f32.gmra.mxu0 %v2206
      %v2854 = vpop.f32.mrf.mxu0
      %v2855 = vadd.f32 %v2742, %v2854
      %2856 = vmatmul.f32.gmra.mxu0 %v2207
      %v2857 = vpop.f32.mrf.mxu0
      %v2858 = vadd.f32 %v2745, %v2857
      %2859 = vmatmul.f32.gmra.mxu0 %v2208
      %v2860 = vpop.f32.mrf.mxu0
      %v2861 = vadd.f32 %v2748, %v2860
      %2862 = vmatmul.f32.gmra.mxu0 %v2209
      %v2863 = vpop.f32.mrf.mxu0
      %v2864 = vadd.f32 %v2751, %v2863
      %2865 = vmatmul.f32.gmra.mxu0 %v2210
      %v2866 = vpop.f32.mrf.mxu0
      %v2867 = vadd.f32 %v2754, %v2866
      %2868 = vmatmul.f32.gmra.mxu0 %v2211
      %v2869 = vpop.f32.mrf.mxu0
      %v2870 = vadd.f32 %v2757, %v2869
      %2871 = vmatmul.f32.gmra.mxu0 %v2212
      %v2872 = vpop.f32.mrf.mxu0
      %v2873 = vadd.f32 %v2760, %v2872
      %2874 = vmatmul.f32.gmra.mxu0 %v2213
      %v2875 = vpop.f32.mrf.mxu0
      %v2876 = vadd.f32 %v2763, %v2875
      %2877 = vmatmul.f32.gmra.mxu0 %v2214
      %v2878 = vpop.f32.mrf.mxu0
      %v2879 = vadd.f32 %v2766, %v2878
      %2880 = vmatmul.f32.gmra.mxu0 %v2215
      %v2881 = vpop.f32.mrf.mxu0
      %v2882 = vadd.f32 %v2769, %v2881
      %2883 = vmatmul.f32.gmra.mxu0 %v2216
      %v2884 = vpop.f32.mrf.mxu0
      %v2885 = vadd.f32 %v2772, %v2884
      %2886 = vmatmul.f32.gmra.mxu0 %v2217
      %v2887 = vpop.f32.mrf.mxu0
      %v2888 = vadd.f32 %v2775, %v2887
      %2889 = vmatmul.f32.gmra.mxu0 %v2218
      %v2890 = vpop.f32.mrf.mxu0
      %v2891 = vadd.f32 %v2778, %v2890
      %2892 = vmatmul.f32.gmra.mxu0 %v2219
      %v2893 = vpop.f32.mrf.mxu0
      %v2894 = vadd.f32 %v2781, %v2893
      %2895 = vmatmul.f32.gmra.mxu0 %v2220
      %v2896 = vpop.f32.mrf.mxu0
      %v2897 = vadd.f32 %v2784, %v2896
      %2898 = vmatmul.f32.gmra.mxu0 %v2221
      %v2899 = vpop.f32.mrf.mxu0
      %v2900 = vadd.f32 %v2787, %v2899
      %2901 = vmatmul.f32.gmra.mxu0 %v2222
      %v2902 = vpop.f32.mrf.mxu0
      %v2903 = vadd.f32 %v2790, %v2902
      %2904 = vmatmul.f32.gmra.mxu0 %v2223
      %v2905 = vpop.f32.mrf.mxu0
      %v2906 = vadd.f32 %v2793, %v2905
      %2907 = vmatmul.f32.gmra.mxu0 %v2224
      %v2908 = vpop.f32.mrf.mxu0
      %v2909 = vadd.f32 %v2796, %v2908
      %2910 = vmatmul.f32.gmra.mxu0 %v2225
      %v2911 = vpop.f32.mrf.mxu0
      %v2912 = vadd.f32 %v2799, %v2911
      %2913 = vmatmul.f32.gmra.mxu0 %v2226
      %v2914 = vpop.f32.mrf.mxu0
      %v2915 = vadd.f32 %v2802, %v2914
      %2916 = vmatmul.f32.gmra.mxu0 %v2227
      %v2917 = vpop.f32.mrf.mxu0
      %v2918 = vadd.f32 %v2805, %v2917
      %2919 = vmatmul.f32.gmra.mxu0 %v2228
      %v2920 = vpop.f32.mrf.mxu0
      %v2921 = vadd.f32 %v2808, %v2920
      %2922 = vmatmul.f32.gmra.mxu0 %v2229
      %v2923 = vpop.f32.mrf.mxu0
      %v2924 = vadd.f32 %v2811, %v2923
      %2925 = vmatmul.f32.gmra.mxu0 %v2230
      %v2926 = vpop.f32.mrf.mxu0
      %v2927 = vadd.f32 %v2814, %v2926
      %2928 = vmatmul.f32.gmra.mxu0 %v2231
      %v2929 = vpop.f32.mrf.mxu0
      %v2930 = vadd.f32 %v2817, %v2929
      %2931 = vdwg.mxu0
      %2932 = vmatpush.msra.mxu0 %v2281
      %2933 = vmatpush.msra.mxu0 %v2280
      %2934 = vmatpush.msra.mxu0 %v2279
      %2935 = vmatpush.msra.mxu0 %v2278
      %2936 = vmatpush.msra.mxu0 %v2277
      %2937 = vmatpush.msra.mxu0 %v2276
      %2938 = vmatpush.msra.mxu0 %v2275
      %2939 = vmatpush.msra.mxu0 %v2274
      %2940 = vmatpush.msra.mxu0 %v2273
      %2941 = vmatpush.msra.mxu0 %v2272
      %2942 = vmatpush.msra.mxu0 %v2271
      %2943 = vmatpush.msra.mxu0 %v2270
      %2944 = vmatpush.msra.mxu0 %v2269
      %2945 = vmatpush.msra.mxu0 %v2268
      %2946 = vmatpush.msra.mxu0 %v2267
      %2947 = vmatpush.msra.mxu0 %v2266
      %2948 = vmatmul.f32.gmra.mxu0 %v2202
      %v2949 = vpop.f32.mrf.mxu0
      %v2950 = vadd.f32 %v2837, %v2949
      %2951 = vmatmul.f32.gmra.mxu0 %v2203
      %v2952 = vpop.f32.mrf.mxu0
      %v2953 = vadd.f32 %v2840, %v2952
      %2954 = vmatmul.f32.gmra.mxu0 %v2204
      %v2955 = vpop.f32.mrf.mxu0
      %v2956 = vadd.f32 %v2843, %v2955
      %2957 = vmatmul.f32.gmra.mxu0 %v2205
      %v2958 = vpop.f32.mrf.mxu0
      %v2959 = vadd.f32 %v2846, %v2958
      %2960 = vmatmul.f32.gmra.mxu0 %v2206
      %v2961 = vpop.f32.mrf.mxu0
      %v2962 = vadd.f32 %v2849, %v2961
      %2963 = vmatmul.f32.gmra.mxu0 %v2207
      %v2964 = vpop.f32.mrf.mxu0
      %v2965 = vadd.f32 %v2852, %v2964
      %2966 = vmatmul.f32.gmra.mxu0 %v2208
      %v2967 = vpop.f32.mrf.mxu0
      %v2968 = vadd.f32 %v2855, %v2967
      %2969 = vmatmul.f32.gmra.mxu0 %v2209
      %v2970 = vpop.f32.mrf.mxu0
      %v2971 = vadd.f32 %v2858, %v2970
      %2972 = vmatmul.f32.gmra.mxu0 %v2210
      %v2973 = vpop.f32.mrf.mxu0
      %v2974 = vadd.f32 %v2861, %v2973
      %2975 = vmatmul.f32.gmra.mxu0 %v2211
      %v2976 = vpop.f32.mrf.mxu0
      %v2977 = vadd.f32 %v2864, %v2976
      %2978 = vmatmul.f32.gmra.mxu0 %v2212
      %v2979 = vpop.f32.mrf.mxu0
      %v2980 = vadd.f32 %v2867, %v2979
      %2981 = vmatmul.f32.gmra.mxu0 %v2213
      %v2982 = vpop.f32.mrf.mxu0
      %v2983 = vadd.f32 %v2870, %v2982
      %2984 = vmatmul.f32.gmra.mxu0 %v2214
      %v2985 = vpop.f32.mrf.mxu0
      %v2986 = vadd.f32 %v2873, %v2985
      %2987 = vmatmul.f32.gmra.mxu0 %v2215
      %v2988 = vpop.f32.mrf.mxu0
      %v2989 = vadd.f32 %v2876, %v2988
      %2990 = vmatmul.f32.gmra.mxu0 %v2216
      %v2991 = vpop.f32.mrf.mxu0
      %v2992 = vadd.f32 %v2879, %v2991
      %2993 = vmatmul.f32.gmra.mxu0 %v2217
      %v2994 = vpop.f32.mrf.mxu0
      %v2995 = vadd.f32 %v2882, %v2994
      %2996 = vmatmul.f32.gmra.mxu0 %v2218
      %v2997 = vpop.f32.mrf.mxu0
      %v2998 = vadd.f32 %v2885, %v2997
      %2999 = vmatmul.f32.gmra.mxu0 %v2219
      %v3000 = vpop.f32.mrf.mxu0
      %v3001 = vadd.f32 %v2888, %v3000
      %3002 = vmatmul.f32.gmra.mxu0 %v2220
      %v3003 = vpop.f32.mrf.mxu0
      %v3004 = vadd.f32 %v2891, %v3003
      %3005 = vmatmul.f32.gmra.mxu0 %v2221
      %v3006 = vpop.f32.mrf.mxu0
      %v3007 = vadd.f32 %v2894, %v3006
      %3008 = vmatmul.f32.gmra.mxu0 %v2222
      %v3009 = vpop.f32.mrf.mxu0
      %v3010 = vadd.f32 %v2897, %v3009
      %3011 = vmatmul.f32.gmra.mxu0 %v2223
      %v3012 = vpop.f32.mrf.mxu0
      %v3013 = vadd.f32 %v2900, %v3012
      %3014 = vmatmul.f32.gmra.mxu0 %v2224
      %v3015 = vpop.f32.mrf.mxu0
      %v3016 = vadd.f32 %v2903, %v3015
      %3017 = vmatmul.f32.gmra.mxu0 %v2225
      %v3018 = vpop.f32.mrf.mxu0
      %v3019 = vadd.f32 %v2906, %v3018
      %3020 = vmatmul.f32.gmra.mxu0 %v2226
      %v3021 = vpop.f32.mrf.mxu0
      %v3022 = vadd.f32 %v2909, %v3021
      %3023 = vmatmul.f32.gmra.mxu0 %v2227
      %v3024 = vpop.f32.mrf.mxu0
      %v3025 = vadd.f32 %v2912, %v3024
      %3026 = vmatmul.f32.gmra.mxu0 %v2228
      %v3027 = vpop.f32.mrf.mxu0
      %v3028 = vadd.f32 %v2915, %v3027
      %3029 = vmatmul.f32.gmra.mxu0 %v2229
      %v3030 = vpop.f32.mrf.mxu0
      %v3031 = vadd.f32 %v2918, %v3030
      %3032 = vmatmul.f32.gmra.mxu0 %v2230
      %v3033 = vpop.f32.mrf.mxu0
      %v3034 = vadd.f32 %v2921, %v3033
      %3035 = vmatmul.f32.gmra.mxu0 %v2231
      %v3036 = vpop.f32.mrf.mxu0
      %v3037 = vadd.f32 %v2924, %v3036
      %3038 = vmatmul.f32.gmra.mxu0 %v2232
      %v3039 = vpop.f32.mrf.mxu0
      %v3040 = vadd.f32 %v2927, %v3039
      %3041 = vmatmul.f32.gmra.mxu0 %v2233
      %v3042 = vpop.f32.mrf.mxu0
      %v3043 = vadd.f32 %v2930, %v3042
      %3044 = vdwg.mxu0
      %v3045 = vld [vmem:[#allocation3 + $0x2] sm:$0xff]
      %v3046 = vld [vmem:[#allocation3 + $0xa] sm:$0xff]
      %v3047 = vld [vmem:[#allocation3 + $0x1a] sm:$0xff]
      %v3048 = vld [vmem:[#allocation3 + $0x22] sm:$0xff]
      %v3049 = vld [vmem:[#allocation3 + $0x32] sm:$0xff]
      %v3050 = vld [vmem:[#allocation3 + $0x3a] sm:$0xff]
      %v3051 = vld [vmem:[#allocation3 + $0x4a] sm:$0xff]
      %v3052 = vld [vmem:[#allocation3 + $0x52] sm:$0xff]
      %v3053 = vld [vmem:[#allocation3 + $0x62] sm:$0xff]
      %v3054 = vld [vmem:[#allocation3 + $0x6a] sm:$0xff]
      %v3055 = vld [vmem:[#allocation3 + $0x7a] sm:$0xff]
      %v3056 = vld [vmem:[#allocation3 + $0x82] sm:$0xff]
      %v3057 = vld [vmem:[#allocation3 + $0x92] sm:$0xff]
      %v3058 = vld [vmem:[#allocation3 + $0x9a] sm:$0xff]
      %v3059 = vld [vmem:[#allocation3 + $0xaa] sm:$0xff]
      %v3060 = vld [vmem:[#allocation3 + $0xb2] sm:$0xff]
      %v3061 = vld [vmem:[#allocation3 + $0xc2] sm:$0xff]
      %v3062 = vld [vmem:[#allocation3 + $0xca] sm:$0xff]
      %v3063 = vld [vmem:[#allocation3 + $0xda] sm:$0xff]
      %v3064 = vld [vmem:[#allocation3 + $0xe2] sm:$0xff]
      %v3065 = vld [vmem:[#allocation3 + $0xf2] sm:$0xff]
      %v3066 = vld [vmem:[#allocation3 + $0xfa] sm:$0xff]
      %v3067 = vld [vmem:[#allocation3 + $0x10a] sm:$0xff]
      %v3068 = vld [vmem:[#allocation3 + $0x112] sm:$0xff]
      %v3069 = vld [vmem:[#allocation3 + $0x122] sm:$0xff]
      %v3070 = vld [vmem:[#allocation3 + $0x12a] sm:$0xff]
      %v3071 = vld [vmem:[#allocation3 + $0x13a] sm:$0xff]
      %v3072 = vld [vmem:[#allocation3 + $0x142] sm:$0xff]
      %v3073 = vld [vmem:[#allocation3 + $0x152] sm:$0xff]
      %v3074 = vld [vmem:[#allocation3 + $0x15a] sm:$0xff]
      %v3075 = vld [vmem:[#allocation3 + $0x16a] sm:$0xff]
      %v3076 = vld [vmem:[#allocation3 + $0x172] sm:$0xff]
      %v3077 = vld [vmem:[#allocation3 + $0x182] sm:$0xff]
      %v3078 = vld [vmem:[#allocation3 + $0x18a] sm:$0xff]
      %v3079 = vld [vmem:[#allocation3 + $0x19a] sm:$0xff]
      %v3080 = vld [vmem:[#allocation3 + $0x1a2] sm:$0xff]
      %s3081 = scalar_lea.vmem %s3, 768
      %v3082 = vld [vmem:[%s3081] sm:$0xff]
      %v3083 = vld [vmem:[%s3081 + $0x8] sm:$0xff]
      %v3084 = vld [vmem:[%s3081 + $0x10] sm:$0xff]
      %v3085 = vld [vmem:[%s3081 + $0x18] sm:$0xff]
      %v3086 = vld [vmem:[%s3081 + $0x20] sm:$0xff]
      %v3087 = vld [vmem:[%s3081 + $0x28] sm:$0xff]
      %v3088 = vld [vmem:[%s3081 + $0x30] sm:$0xff]
      %v3089 = vld [vmem:[%s3081 + $0x38] sm:$0xff]
      %v3090 = vld [vmem:[%s3081 + $0x40] sm:$0xff]
      %v3091 = vld [vmem:[%s3081 + $0x48] sm:$0xff]
      %v3092 = vld [vmem:[%s3081 + $0x50] sm:$0xff]
      %v3093 = vld [vmem:[%s3081 + $0x58] sm:$0xff]
      %v3094 = vld [vmem:[%s3081 + $0x60] sm:$0xff]
      %v3095 = vld [vmem:[%s3081 + $0x68] sm:$0xff]
      %v3096 = vld [vmem:[%s3081 + $0x70] sm:$0xff]
      %v3097 = vld [vmem:[%s3081 + $0x78] sm:$0xff]
      %v3098 = vld [vmem:[%s3081 + $0x80] sm:$0xff]
      %v3099 = vld [vmem:[%s3081 + $0x88] sm:$0xff]
      %v3100 = vld [vmem:[%s3081 + $0x90] sm:$0xff]
      %v3101 = vld [vmem:[%s3081 + $0x98] sm:$0xff]
      %v3102 = vld [vmem:[%s3081 + $0xa0] sm:$0xff]
      %v3103 = vld [vmem:[%s3081 + $0xa8] sm:$0xff]
      %v3104 = vld [vmem:[%s3081 + $0xb0] sm:$0xff]
      %v3105 = vld [vmem:[%s3081 + $0xb8] sm:$0xff]
      %v3106 = vld [vmem:[%s3081 + $0xc0] sm:$0xff]
      %v3107 = vld [vmem:[%s3081 + $0xc8] sm:$0xff]
      %v3108 = vld [vmem:[%s3081 + $0xd0] sm:$0xff]
      %v3109 = vld [vmem:[%s3081 + $0xd8] sm:$0xff]
      %v3110 = vld [vmem:[%s3081 + $0xe0] sm:$0xff]
      %v3111 = vld [vmem:[%s3081 + $0xe8] sm:$0xff]
      %v3112 = vld [vmem:[%s3081 + $0xf0] sm:$0xff]
      %v3113 = vld [vmem:[%s3081 + $0xf8] sm:$0xff]
      %v3114 = vld [vmem:[%s3081 + $0x100] sm:$0xff]
      %v3115 = vld [vmem:[%s3081 + $0x108] sm:$0xff]
      %v3116 = vld [vmem:[%s3081 + $0x110] sm:$0xff]
      %v3117 = vld [vmem:[%s3081 + $0x118] sm:$0xff]
      %v3118 = vld [vmem:[%s3081 + $0x120] sm:$0xff]
      %v3119 = vld [vmem:[%s3081 + $0x128] sm:$0xff]
      %v3120 = vld [vmem:[%s3081 + $0x130] sm:$0xff]
      %v3121 = vld [vmem:[%s3081 + $0x138] sm:$0xff]
      %v3122 = vld [vmem:[%s3081 + $0x140] sm:$0xff]
      %v3123 = vld [vmem:[%s3081 + $0x148] sm:$0xff]
      %v3124 = vld [vmem:[%s3081 + $0x150] sm:$0xff]
      %v3125 = vld [vmem:[%s3081 + $0x158] sm:$0xff]
      %v3126 = vld [vmem:[%s3081 + $0x160] sm:$0xff]
      %v3127 = vld [vmem:[%s3081 + $0x168] sm:$0xff]
      %v3128 = vld [vmem:[%s3081 + $0x170] sm:$0xff]
      %v3129 = vld [vmem:[%s3081 + $0x178] sm:$0xff]
      %3130 = vmatpush.msra.mxu0 %v3097
      %3131 = vmatpush.msra.mxu0 %v3096
      %3132 = vmatpush.msra.mxu0 %v3095
      %3133 = vmatpush.msra.mxu0 %v3094
      %3134 = vmatpush.msra.mxu0 %v3093
      %3135 = vmatpush.msra.mxu0 %v3092
      %3136 = vmatpush.msra.mxu0 %v3091
      %3137 = vmatpush.msra.mxu0 %v3090
      %3138 = vmatpush.msra.mxu0 %v3089
      %3139 = vmatpush.msra.mxu0 %v3088
      %3140 = vmatpush.msra.mxu0 %v3087
      %3141 = vmatpush.msra.mxu0 %v3086
      %3142 = vmatpush.msra.mxu0 %v3085
      %3143 = vmatpush.msra.mxu0 %v3084
      %3144 = vmatpush.msra.mxu0 %v3083
      %3145 = vmatpush.msra.mxu0 %v3082
      %3146 = vmatmul.f32.gmra.mxu0 %v3045
      %v3147 = vpop.f32.mrf.mxu0
      %v3148 = vadd.f32 0.0, %v3147
      %3149 = vmatmul.f32.gmra.mxu0 %v3046
      %v3150 = vpop.f32.mrf.mxu0
      %v3151 = vadd.f32 0.0, %v3150
      %3152 = vmatmul.f32.gmra.mxu0 %v3047
      %v3153 = vpop.f32.mrf.mxu0
      %v3154 = vadd.f32 0.0, %v3153
      %3155 = vmatmul.f32.gmra.mxu0 %v3048
      %v3156 = vpop.f32.mrf.mxu0
      %v3157 = vadd.f32 0.0, %v3156
      %3158 = vmatmul.f32.gmra.mxu0 %v3049
      %v3159 = vpop.f32.mrf.mxu0
      %v3160 = vadd.f32 0.0, %v3159
      %3161 = vmatmul.f32.gmra.mxu0 %v3050
      %v3162 = vpop.f32.mrf.mxu0
      %v3163 = vadd.f32 0.0, %v3162
      %3164 = vmatmul.f32.gmra.mxu0 %v3051
      %v3165 = vpop.f32.mrf.mxu0
      %v3166 = vadd.f32 0.0, %v3165
      %3167 = vmatmul.f32.gmra.mxu0 %v3052
      %v3168 = vpop.f32.mrf.mxu0
      %v3169 = vadd.f32 0.0, %v3168
      %3170 = vmatmul.f32.gmra.mxu0 %v3053
      %v3171 = vpop.f32.mrf.mxu0
      %v3172 = vadd.f32 0.0, %v3171
      %3173 = vmatmul.f32.gmra.mxu0 %v3054
      %v3174 = vpop.f32.mrf.mxu0
      %v3175 = vadd.f32 0.0, %v3174
      %3176 = vmatmul.f32.gmra.mxu0 %v3055
      %v3177 = vpop.f32.mrf.mxu0
      %v3178 = vadd.f32 0.0, %v3177
      %3179 = vmatmul.f32.gmra.mxu0 %v3056
      %v3180 = vpop.f32.mrf.mxu0
      %v3181 = vadd.f32 0.0, %v3180
      %3182 = vmatmul.f32.gmra.mxu0 %v3057
      %v3183 = vpop.f32.mrf.mxu0
      %v3184 = vadd.f32 0.0, %v3183
      %3185 = vmatmul.f32.gmra.mxu0 %v3058
      %v3186 = vpop.f32.mrf.mxu0
      %v3187 = vadd.f32 0.0, %v3186
      %3188 = vmatmul.f32.gmra.mxu0 %v3059
      %v3189 = vpop.f32.mrf.mxu0
      %v3190 = vadd.f32 0.0, %v3189
      %3191 = vmatmul.f32.gmra.mxu0 %v3060
      %v3192 = vpop.f32.mrf.mxu0
      %v3193 = vadd.f32 0.0, %v3192
      %3194 = vmatmul.f32.gmra.mxu0 %v3061
      %v3195 = vpop.f32.mrf.mxu0
      %v3196 = vadd.f32 0.0, %v3195
      %3197 = vmatmul.f32.gmra.mxu0 %v3062
      %v3198 = vpop.f32.mrf.mxu0
      %v3199 = vadd.f32 0.0, %v3198
      %3200 = vmatmul.f32.gmra.mxu0 %v3063
      %v3201 = vpop.f32.mrf.mxu0
      %v3202 = vadd.f32 0.0, %v3201
      %3203 = vmatmul.f32.gmra.mxu0 %v3064
      %v3204 = vpop.f32.mrf.mxu0
      %v3205 = vadd.f32 0.0, %v3204
      %3206 = vmatmul.f32.gmra.mxu0 %v3065
      %v3207 = vpop.f32.mrf.mxu0
      %v3208 = vadd.f32 0.0, %v3207
      %3209 = vmatmul.f32.gmra.mxu0 %v3066
      %v3210 = vpop.f32.mrf.mxu0
      %v3211 = vadd.f32 0.0, %v3210
      %3212 = vmatmul.f32.gmra.mxu0 %v3067
      %v3213 = vpop.f32.mrf.mxu0
      %v3214 = vadd.f32 0.0, %v3213
      %3215 = vmatmul.f32.gmra.mxu0 %v3068
      %v3216 = vpop.f32.mrf.mxu0
      %v3217 = vadd.f32 0.0, %v3216
      %3218 = vmatmul.f32.gmra.mxu0 %v3069
      %v3219 = vpop.f32.mrf.mxu0
      %v3220 = vadd.f32 0.0, %v3219
      %3221 = vmatmul.f32.gmra.mxu0 %v3070
      %v3222 = vpop.f32.mrf.mxu0
      %v3223 = vadd.f32 0.0, %v3222
      %3224 = vmatmul.f32.gmra.mxu0 %v3071
      %v3225 = vpop.f32.mrf.mxu0
      %v3226 = vadd.f32 0.0, %v3225
      %3227 = vmatmul.f32.gmra.mxu0 %v3072
      %v3228 = vpop.f32.mrf.mxu0
      %v3229 = vadd.f32 0.0, %v3228
      %3230 = vmatmul.f32.gmra.mxu0 %v3073
      %v3231 = vpop.f32.mrf.mxu0
      %v3232 = vadd.f32 0.0, %v3231
      %3233 = vmatmul.f32.gmra.mxu0 %v3074
      %v3234 = vpop.f32.mrf.mxu0
      %v3235 = vadd.f32 0.0, %v3234
      %3236 = vmatmul.f32.gmra.mxu0 %v3075
      %v3237 = vpop.f32.mrf.mxu0
      %v3238 = vadd.f32 0.0, %v3237
      %3239 = vmatmul.f32.gmra.mxu0 %v3076
      %v3240 = vpop.f32.mrf.mxu0
      %v3241 = vadd.f32 0.0, %v3240
      %3242 = vdwg.mxu0
      %3243 = vmatpush.msra.mxu0 %v3113
      %3244 = vmatpush.msra.mxu0 %v3112
      %3245 = vmatpush.msra.mxu0 %v3111
      %3246 = vmatpush.msra.mxu0 %v3110
      %3247 = vmatpush.msra.mxu0 %v3109
      %3248 = vmatpush.msra.mxu0 %v3108
      %3249 = vmatpush.msra.mxu0 %v3107
      %3250 = vmatpush.msra.mxu0 %v3106
      %3251 = vmatpush.msra.mxu0 %v3105
      %3252 = vmatpush.msra.mxu0 %v3104
      %3253 = vmatpush.msra.mxu0 %v3103
      %3254 = vmatpush.msra.mxu0 %v3102
      %3255 = vmatpush.msra.mxu0 %v3101
      %3256 = vmatpush.msra.mxu0 %v3100
      %3257 = vmatpush.msra.mxu0 %v3099
      %3258 = vmatpush.msra.mxu0 %v3098
      %3259 = vmatmul.f32.gmra.mxu0 %v3047
      %v3260 = vpop.f32.mrf.mxu0
      %v3261 = vadd.f32 %v3148, %v3260
      %3262 = vmatmul.f32.gmra.mxu0 %v3048
      %v3263 = vpop.f32.mrf.mxu0
      %v3264 = vadd.f32 %v3151, %v3263
      %3265 = vmatmul.f32.gmra.mxu0 %v3049
      %v3266 = vpop.f32.mrf.mxu0
      %v3267 = vadd.f32 %v3154, %v3266
      %3268 = vmatmul.f32.gmra.mxu0 %v3050
      %v3269 = vpop.f32.mrf.mxu0
      %v3270 = vadd.f32 %v3157, %v3269
      %3271 = vmatmul.f32.gmra.mxu0 %v3051
      %v3272 = vpop.f32.mrf.mxu0
      %v3273 = vadd.f32 %v3160, %v3272
      %3274 = vmatmul.f32.gmra.mxu0 %v3052
      %v3275 = vpop.f32.mrf.mxu0
      %v3276 = vadd.f32 %v3163, %v3275
      %3277 = vmatmul.f32.gmra.mxu0 %v3053
      %v3278 = vpop.f32.mrf.mxu0
      %v3279 = vadd.f32 %v3166, %v3278
      %3280 = vmatmul.f32.gmra.mxu0 %v3054
      %v3281 = vpop.f32.mrf.mxu0
      %v3282 = vadd.f32 %v3169, %v3281
      %3283 = vmatmul.f32.gmra.mxu0 %v3055
      %v3284 = vpop.f32.mrf.mxu0
      %v3285 = vadd.f32 %v3172, %v3284
      %3286 = vmatmul.f32.gmra.mxu0 %v3056
      %v3287 = vpop.f32.mrf.mxu0
      %v3288 = vadd.f32 %v3175, %v3287
      %3289 = vmatmul.f32.gmra.mxu0 %v3057
      %v3290 = vpop.f32.mrf.mxu0
      %v3291 = vadd.f32 %v3178, %v3290
      %3292 = vmatmul.f32.gmra.mxu0 %v3058
      %v3293 = vpop.f32.mrf.mxu0
      %v3294 = vadd.f32 %v3181, %v3293
      %3295 = vmatmul.f32.gmra.mxu0 %v3059
      %v3296 = vpop.f32.mrf.mxu0
      %v3297 = vadd.f32 %v3184, %v3296
      %3298 = vmatmul.f32.gmra.mxu0 %v3060
      %v3299 = vpop.f32.mrf.mxu0
      %v3300 = vadd.f32 %v3187, %v3299
      %3301 = vmatmul.f32.gmra.mxu0 %v3061
      %v3302 = vpop.f32.mrf.mxu0
      %v3303 = vadd.f32 %v3190, %v3302
      %3304 = vmatmul.f32.gmra.mxu0 %v3062
      %v3305 = vpop.f32.mrf.mxu0
      %v3306 = vadd.f32 %v3193, %v3305
      %3307 = vmatmul.f32.gmra.mxu0 %v3063
      %v3308 = vpop.f32.mrf.mxu0
      %v3309 = vadd.f32 %v3196, %v3308
      %3310 = vmatmul.f32.gmra.mxu0 %v3064
      %v3311 = vpop.f32.mrf.mxu0
      %v3312 = vadd.f32 %v3199, %v3311
      %3313 = vmatmul.f32.gmra.mxu0 %v3065
      %v3314 = vpop.f32.mrf.mxu0
      %v3315 = vadd.f32 %v3202, %v3314
      %3316 = vmatmul.f32.gmra.mxu0 %v3066
      %v3317 = vpop.f32.mrf.mxu0
      %v3318 = vadd.f32 %v3205, %v3317
      %3319 = vmatmul.f32.gmra.mxu0 %v3067
      %v3320 = vpop.f32.mrf.mxu0
      %v3321 = vadd.f32 %v3208, %v3320
      %3322 = vmatmul.f32.gmra.mxu0 %v3068
      %v3323 = vpop.f32.mrf.mxu0
      %v3324 = vadd.f32 %v3211, %v3323
      %3325 = vmatmul.f32.gmra.mxu0 %v3069
      %v3326 = vpop.f32.mrf.mxu0
      %v3327 = vadd.f32 %v3214, %v3326
      %3328 = vmatmul.f32.gmra.mxu0 %v3070
      %v3329 = vpop.f32.mrf.mxu0
      %v3330 = vadd.f32 %v3217, %v3329
      %3331 = vmatmul.f32.gmra.mxu0 %v3071
      %v3332 = vpop.f32.mrf.mxu0
      %v3333 = vadd.f32 %v3220, %v3332
      %3334 = vmatmul.f32.gmra.mxu0 %v3072
      %v3335 = vpop.f32.mrf.mxu0
      %v3336 = vadd.f32 %v3223, %v3335
      %3337 = vmatmul.f32.gmra.mxu0 %v3073
      %v3338 = vpop.f32.mrf.mxu0
      %v3339 = vadd.f32 %v3226, %v3338
      %3340 = vmatmul.f32.gmra.mxu0 %v3074
      %v3341 = vpop.f32.mrf.mxu0
      %v3342 = vadd.f32 %v3229, %v3341
      %3343 = vmatmul.f32.gmra.mxu0 %v3075
      %v3344 = vpop.f32.mrf.mxu0
      %v3345 = vadd.f32 %v3232, %v3344
      %3346 = vmatmul.f32.gmra.mxu0 %v3076
      %v3347 = vpop.f32.mrf.mxu0
      %v3348 = vadd.f32 %v3235, %v3347
      %3349 = vmatmul.f32.gmra.mxu0 %v3077
      %v3350 = vpop.f32.mrf.mxu0
      %v3351 = vadd.f32 %v3238, %v3350
      %3352 = vmatmul.f32.gmra.mxu0 %v3078
      %v3353 = vpop.f32.mrf.mxu0
      %v3354 = vadd.f32 %v3241, %v3353
      %3355 = vdwg.mxu0
      %3356 = vmatpush.msra.mxu0 %v3129
      %3357 = vmatpush.msra.mxu0 %v3128
      %3358 = vmatpush.msra.mxu0 %v3127
      %3359 = vmatpush.msra.mxu0 %v3126
      %3360 = vmatpush.msra.mxu0 %v3125
      %3361 = vmatpush.msra.mxu0 %v3124
      %3362 = vmatpush.msra.mxu0 %v3123
      %3363 = vmatpush.msra.mxu0 %v3122
      %3364 = vmatpush.msra.mxu0 %v3121
      %3365 = vmatpush.msra.mxu0 %v3120
      %3366 = vmatpush.msra.mxu0 %v3119
      %3367 = vmatpush.msra.mxu0 %v3118
      %3368 = vmatpush.msra.mxu0 %v3117
      %3369 = vmatpush.msra.mxu0 %v3116
      %3370 = vmatpush.msra.mxu0 %v3115
      %3371 = vmatpush.msra.mxu0 %v3114
      %3372 = vmatmul.f32.gmra.mxu0 %v3049
      %v3373 = vpop.f32.mrf.mxu0
      %v3374 = vadd.f32 %v3261, %v3373
      %3375 = vmatmul.f32.gmra.mxu0 %v3050
      %v3376 = vpop.f32.mrf.mxu0
      %v3377 = vadd.f32 %v3264, %v3376
      %3378 = vmatmul.f32.gmra.mxu0 %v3051
      %v3379 = vpop.f32.mrf.mxu0
      %v3380 = vadd.f32 %v3267, %v3379
      %3381 = vmatmul.f32.gmra.mxu0 %v3052
      %v3382 = vpop.f32.mrf.mxu0
      %v3383 = vadd.f32 %v3270, %v3382
      %3384 = vmatmul.f32.gmra.mxu0 %v3053
      %v3385 = vpop.f32.mrf.mxu0
      %v3386 = vadd.f32 %v3273, %v3385
      %3387 = vmatmul.f32.gmra.mxu0 %v3054
      %v3388 = vpop.f32.mrf.mxu0
      %v3389 = vadd.f32 %v3276, %v3388
      %3390 = vmatmul.f32.gmra.mxu0 %v3055
      %v3391 = vpop.f32.mrf.mxu0
      %v3392 = vadd.f32 %v3279, %v3391
      %3393 = vmatmul.f32.gmra.mxu0 %v3056
      %v3394 = vpop.f32.mrf.mxu0
      %v3395 = vadd.f32 %v3282, %v3394
      %3396 = vmatmul.f32.gmra.mxu0 %v3057
      %v3397 = vpop.f32.mrf.mxu0
      %v3398 = vadd.f32 %v3285, %v3397
      %3399 = vmatmul.f32.gmra.mxu0 %v3058
      %v3400 = vpop.f32.mrf.mxu0
      %v3401 = vadd.f32 %v3288, %v3400
      %3402 = vmatmul.f32.gmra.mxu0 %v3059
      %v3403 = vpop.f32.mrf.mxu0
      %v3404 = vadd.f32 %v3291, %v3403
      %3405 = vmatmul.f32.gmra.mxu0 %v3060
      %v3406 = vpop.f32.mrf.mxu0
      %v3407 = vadd.f32 %v3294, %v3406
      %3408 = vmatmul.f32.gmra.mxu0 %v3061
      %v3409 = vpop.f32.mrf.mxu0
      %v3410 = vadd.f32 %v3297, %v3409
      %3411 = vmatmul.f32.gmra.mxu0 %v3062
      %v3412 = vpop.f32.mrf.mxu0
      %v3413 = vadd.f32 %v3300, %v3412
      %3414 = vmatmul.f32.gmra.mxu0 %v3063
      %v3415 = vpop.f32.mrf.mxu0
      %v3416 = vadd.f32 %v3303, %v3415
      %3417 = vmatmul.f32.gmra.mxu0 %v3064
      %v3418 = vpop.f32.mrf.mxu0
      %v3419 = vadd.f32 %v3306, %v3418
      %3420 = vmatmul.f32.gmra.mxu0 %v3065
      %v3421 = vpop.f32.mrf.mxu0
      %v3422 = vadd.f32 %v3309, %v3421
      %3423 = vmatmul.f32.gmra.mxu0 %v3066
      %v3424 = vpop.f32.mrf.mxu0
      %v3425 = vadd.f32 %v3312, %v3424
      %3426 = vmatmul.f32.gmra.mxu0 %v3067
      %v3427 = vpop.f32.mrf.mxu0
      %v3428 = vadd.f32 %v3315, %v3427
      %3429 = vmatmul.f32.gmra.mxu0 %v3068
      %v3430 = vpop.f32.mrf.mxu0
      %v3431 = vadd.f32 %v3318, %v3430
      %3432 = vmatmul.f32.gmra.mxu0 %v3069
      %v3433 = vpop.f32.mrf.mxu0
      %v3434 = vadd.f32 %v3321, %v3433
      %3435 = vmatmul.f32.gmra.mxu0 %v3070
      %v3436 = vpop.f32.mrf.mxu0
      %v3437 = vadd.f32 %v3324, %v3436
      %3438 = vmatmul.f32.gmra.mxu0 %v3071
      %v3439 = vpop.f32.mrf.mxu0
      %v3440 = vadd.f32 %v3327, %v3439
      %3441 = vmatmul.f32.gmra.mxu0 %v3072
      %v3442 = vpop.f32.mrf.mxu0
      %v3443 = vadd.f32 %v3330, %v3442
      %3444 = vmatmul.f32.gmra.mxu0 %v3073
      %v3445 = vpop.f32.mrf.mxu0
      %v3446 = vadd.f32 %v3333, %v3445
      %3447 = vmatmul.f32.gmra.mxu0 %v3074
      %v3448 = vpop.f32.mrf.mxu0
      %v3449 = vadd.f32 %v3336, %v3448
      %3450 = vmatmul.f32.gmra.mxu0 %v3075
      %v3451 = vpop.f32.mrf.mxu0
      %v3452 = vadd.f32 %v3339, %v3451
      %3453 = vmatmul.f32.gmra.mxu0 %v3076
      %v3454 = vpop.f32.mrf.mxu0
      %v3455 = vadd.f32 %v3342, %v3454
      %3456 = vmatmul.f32.gmra.mxu0 %v3077
      %v3457 = vpop.f32.mrf.mxu0
      %v3458 = vadd.f32 %v3345, %v3457
      %3459 = vmatmul.f32.gmra.mxu0 %v3078
      %v3460 = vpop.f32.mrf.mxu0
      %v3461 = vadd.f32 %v3348, %v3460
      %3462 = vmatmul.f32.gmra.mxu0 %v3079
      %v3463 = vpop.f32.mrf.mxu0
      %v3464 = vadd.f32 %v3351, %v3463
      %3465 = vmatmul.f32.gmra.mxu0 %v3080
      %v3466 = vpop.f32.mrf.mxu0
      %v3467 = vadd.f32 %v3354, %v3466
      %3468 = vdwg.mxu0
      %v3469 = vadd.f32 %v2950, %v3374
      %v3470 = vadd.f32 %v2953, %v3377
      %v3471 = vadd.f32 %v2956, %v3380
      %v3472 = vadd.f32 %v2959, %v3383
      %v3473 = vadd.f32 %v2962, %v3386
      %v3474 = vadd.f32 %v2965, %v3389
      %v3475 = vadd.f32 %v2968, %v3392
      %v3476 = vadd.f32 %v2971, %v3395
      %v3477 = vadd.f32 %v2974, %v3398
      %v3478 = vadd.f32 %v2977, %v3401
      %v3479 = vadd.f32 %v2980, %v3404
      %v3480 = vadd.f32 %v2983, %v3407
      %v3481 = vadd.f32 %v2986, %v3410
      %v3482 = vadd.f32 %v2989, %v3413
      %v3483 = vadd.f32 %v2992, %v3416
      %v3484 = vadd.f32 %v2995, %v3419
      %v3485 = vadd.f32 %v2998, %v3422
      %v3486 = vadd.f32 %v3001, %v3425
      %v3487 = vadd.f32 %v3004, %v3428
      %v3488 = vadd.f32 %v3007, %v3431
      %v3489 = vadd.f32 %v3010, %v3434
      %v3490 = vadd.f32 %v3013, %v3437
      %v3491 = vadd.f32 %v3016, %v3440
      %v3492 = vadd.f32 %v3019, %v3443
      %v3493 = vadd.f32 %v3022, %v3446
      %v3494 = vadd.f32 %v3025, %v3449
      %v3495 = vadd.f32 %v3028, %v3452
      %v3496 = vadd.f32 %v3031, %v3455
      %v3497 = vadd.f32 %v3034, %v3458
      %v3498 = vadd.f32 %v3037, %v3461
      %v3499 = vadd.f32 %v3040, %v3464
      %v3500 = vadd.f32 %v3043, %v3467
      %v3501 = vld [vmem:[%s4 + $0x2] sm:$0x1]
      %v3502 = vperm.slane %v3501, 0
      %v3503 = vmul.f32 %v3469, %v3502
      %v3504 = vmul.f32 %v3470, %v3502
      %v3505 = vmul.f32 %v3471, %v3502
      %v3506 = vmul.f32 %v3472, %v3502
      %v3507 = vmul.f32 %v3473, %v3502
      %v3508 = vmul.f32 %v3474, %v3502
      %v3509 = vmul.f32 %v3475, %v3502
      %v3510 = vmul.f32 %v3476, %v3502
      %v3511 = vmul.f32 %v3477, %v3502
      %v3512 = vmul.f32 %v3478, %v3502
      %v3513 = vmul.f32 %v3479, %v3502
      %v3514 = vmul.f32 %v3480, %v3502
      %v3515 = vmul.f32 %v3481, %v3502
      %v3516 = vmul.f32 %v3482, %v3502
      %v3517 = vmul.f32 %v3483, %v3502
      %v3518 = vmul.f32 %v3484, %v3502
      %v3519 = vmul.f32 %v3485, %v3502
      %v3520 = vmul.f32 %v3486, %v3502
      %v3521 = vmul.f32 %v3487, %v3502
      %v3522 = vmul.f32 %v3488, %v3502
      %v3523 = vmul.f32 %v3489, %v3502
      %v3524 = vmul.f32 %v3490, %v3502
      %v3525 = vmul.f32 %v3491, %v3502
      %v3526 = vmul.f32 %v3492, %v3502
      %v3527 = vmul.f32 %v3493, %v3502
      %v3528 = vmul.f32 %v3494, %v3502
      %v3529 = vmul.f32 %v3495, %v3502
      %v3530 = vmul.f32 %v3496, %v3502
      %v3531 = vmul.f32 %v3497, %v3502
      %v3532 = vmul.f32 %v3498, %v3502
      %v3533 = vmul.f32 %v3499, %v3502
      %v3534 = vmul.f32 %v3500, %v3502
      %v3535 = vld [vmem:[%s4 + $0x3] sm:$0x1]
      %v3536 = vperm.slane %v3535, 0
      %v3537 = vadd.f32 %v3503, %v3536
      %v3538 = vadd.f32 %v3504, %v3536
      %v3539 = vadd.f32 %v3505, %v3536
      %v3540 = vadd.f32 %v3506, %v3536
      %v3541 = vadd.f32 %v3507, %v3536
      %v3542 = vadd.f32 %v3508, %v3536
      %v3543 = vadd.f32 %v3509, %v3536
      %v3544 = vadd.f32 %v3510, %v3536
      %v3545 = vadd.f32 %v3511, %v3536
      %v3546 = vadd.f32 %v3512, %v3536
      %v3547 = vadd.f32 %v3513, %v3536
      %v3548 = vadd.f32 %v3514, %v3536
      %v3549 = vadd.f32 %v3515, %v3536
      %v3550 = vadd.f32 %v3516, %v3536
      %v3551 = vadd.f32 %v3517, %v3536
      %v3552 = vadd.f32 %v3518, %v3536
      %v3553 = vadd.f32 %v3519, %v3536
      %v3554 = vadd.f32 %v3520, %v3536
      %v3555 = vadd.f32 %v3521, %v3536
      %v3556 = vadd.f32 %v3522, %v3536
      %v3557 = vadd.f32 %v3523, %v3536
      %v3558 = vadd.f32 %v3524, %v3536
      %v3559 = vadd.f32 %v3525, %v3536
      %v3560 = vadd.f32 %v3526, %v3536
      %v3561 = vadd.f32 %v3527, %v3536
      %v3562 = vadd.f32 %v3528, %v3536
      %v3563 = vadd.f32 %v3529, %v3536
      %v3564 = vadd.f32 %v3530, %v3536
      %v3565 = vadd.f32 %v3531, %v3536
      %v3566 = vadd.f32 %v3532, %v3536
      %v3567 = vadd.f32 %v3533, %v3536
      %v3568 = vadd.f32 %v3534, %v3536
      %v3569 = vmax.f32 %v3537, 0.0
      %v3570 = vmax.f32 %v3538, 0.0
      %v3571 = vmax.f32 %v3539, 0.0
      %v3572 = vmax.f32 %v3540, 0.0
      %v3573 = vmax.f32 %v3541, 0.0
      %v3574 = vmax.f32 %v3542, 0.0
      %v3575 = vmax.f32 %v3543, 0.0
      %v3576 = vmax.f32 %v3544, 0.0
      %v3577 = vmax.f32 %v3545, 0.0
      %v3578 = vmax.f32 %v3546, 0.0
      %v3579 = vmax.f32 %v3547, 0.0
      %v3580 = vmax.f32 %v3548, 0.0
      %v3581 = vmax.f32 %v3549, 0.0
      %v3582 = vmax.f32 %v3550, 0.0
      %v3583 = vmax.f32 %v3551, 0.0
      %v3584 = vmax.f32 %v3552, 0.0
      %v3585 = vmax.f32 %v3553, 0.0
      %v3586 = vmax.f32 %v3554, 0.0
      %v3587 = vmax.f32 %v3555, 0.0
      %v3588 = vmax.f32 %v3556, 0.0
      %v3589 = vmax.f32 %v3557, 0.0
      %v3590 = vmax.f32 %v3558, 0.0
      %v3591 = vmax.f32 %v3559, 0.0
      %v3592 = vmax.f32 %v3560, 0.0
      %v3593 = vmax.f32 %v3561, 0.0
      %v3594 = vmax.f32 %v3562, 0.0
      %v3595 = vmax.f32 %v3563, 0.0
      %v3596 = vmax.f32 %v3564, 0.0
      %v3597 = vmax.f32 %v3565, 0.0
      %v3598 = vmax.f32 %v3566, 0.0
      %v3599 = vmax.f32 %v3567, 0.0
      %v3600 = vmax.f32 %v3568, 0.0
      %3601 = vst [vmem:[%s244] sm:$0xff] %v3569
      %3602 = vst [vmem:[%s244 + $0x8] sm:$0xff] %v3570
      %3603 = vst [vmem:[%s244 + $0x10] sm:$0xff] %v3571
      %3604 = vst [vmem:[%s244 + $0x18] sm:$0xff] %v3572
      %3605 = vst [vmem:[%s244 + $0x20] sm:$0xff] %v3573
      %3606 = vst [vmem:[%s244 + $0x28] sm:$0xff] %v3574
      %3607 = vst [vmem:[%s244 + $0x30] sm:$0xff] %v3575
      %3608 = vst [vmem:[%s244 + $0x38] sm:$0xff] %v3576
      %3609 = vst [vmem:[%s244 + $0x40] sm:$0xff] %v3577
      %3610 = vst [vmem:[%s244 + $0x48] sm:$0xff] %v3578
      %3611 = vst [vmem:[%s244 + $0x50] sm:$0xff] %v3579
      %3612 = vst [vmem:[%s244 + $0x58] sm:$0xff] %v3580
      %3613 = vst [vmem:[%s244 + $0x60] sm:$0xff] %v3581
      %3614 = vst [vmem:[%s244 + $0x68] sm:$0xff] %v3582
      %3615 = vst [vmem:[%s244 + $0x70] sm:$0xff] %v3583
      %3616 = vst [vmem:[%s244 + $0x78] sm:$0xff] %v3584
      %3617 = vst [vmem:[%s244 + $0x80] sm:$0xff] %v3585
      %3618 = vst [vmem:[%s244 + $0x88] sm:$0xff] %v3586
      %3619 = vst [vmem:[%s244 + $0x90] sm:$0xff] %v3587
      %3620 = vst [vmem:[%s244 + $0x98] sm:$0xff] %v3588
      %3621 = vst [vmem:[%s244 + $0xa0] sm:$0xff] %v3589
      %3622 = vst [vmem:[%s244 + $0xa8] sm:$0xff] %v3590
      %3623 = vst [vmem:[%s244 + $0xb0] sm:$0xff] %v3591
      %3624 = vst [vmem:[%s244 + $0xb8] sm:$0xff] %v3592
      %3625 = vst [vmem:[%s244 + $0xc0] sm:$0xff] %v3593
      %3626 = vst [vmem:[%s244 + $0xc8] sm:$0xff] %v3594
      %3627 = vst [vmem:[%s244 + $0xd0] sm:$0xff] %v3595
      %3628 = vst [vmem:[%s244 + $0xd8] sm:$0xff] %v3596
      %3629 = vst [vmem:[%s244 + $0xe0] sm:$0xff] %v3597
      %3630 = vst [vmem:[%s244 + $0xe8] sm:$0xff] %v3598
      %3631 = vst [vmem:[%s244 + $0xf0] sm:$0xff] %v3599
      %3632 = vst [vmem:[%s244 + $0xf8] sm:$0xff] %v3600
      %p3633 = scmp.lt.s32.totalorder %s16, 1
      %s3634 = scalar_select %p3633, %s16, 1
      %s3635 = smul.addr %s3634, 32
      %s3636 = smul.addr %s3635, 8
      %s3637 = scalar_lea.vmem %s5, %s3636
      // Predicated region
      $region41: #{decoder_block_forward.1} parent=39 // pred_check
        %p3638 = pneg %p149
      $region42: #{decoder_block_forward.1} parent=39 // pred_check_branch
        %3640 = sbr.rel (%p3638) target = $region44
      $region43: #{decoder_block_forward.1} parent=39 // pred_region
        _
      $region44: #{decoder_block_forward.1} parent=39 // pred_fallthru
        _
    $region40: #{decoder_block_forward.1} parent=5 // pred_fallthru
      _
    %p3641 = scmp.le.s32.totalorder 2, %s11
    // Predicated region
    $region45: #{decoder_block_forward.1} parent=5 // pred_check
      %p3642 = pneg %p3641
    $region46: #{decoder_block_forward.1} parent=5 // pred_check_branch
      %3644 = sbr.rel (%p3642) target = $region48
    $region47: #{decoder_block_forward.1} parent=5 // pred_region
      %s3645 = ssub.s32 %s11, 2
      // Predicated region
      $region49: #{decoder_block_forward.1} parent=47 // pred_check
        %p3646 = pneg %p155
      $region50: #{decoder_block_forward.1} parent=47 // pred_check_branch
        %3648 = sbr.rel (%p3646) target = $region52
      $region51: #{decoder_block_forward.1} parent=47 // pred_region
        %p3649 = scmp.lt.s32.totalorder %s17, 1
        %s3650 = scalar_select %p3649, %s17, 1
        %s3651 = smul.addr %s3650, 32
        %s3652 = smul.addr %s3651, 8
        %s3653 = scalar_lea.vmem %s5, %s3652
      $region52: #{decoder_block_forward.1} parent=47 // pred_fallthru
        _
    $region48: #{decoder_block_forward.1} parent=5 // pred_fallthru
      _
  $region6: #{decoder_block_forward.1} parent=0 // loop_footer
    %s15 = sadd.s32 1, %s11
  $region7: #{decoder_block_forward.1} parent=0 // loop_footer_branch
    %10 = sbr.rel target = $region3
  $region8: #{decoder_block_forward.1} parent=0 // loop_exit
    _

</llo_original>
